<compile_context>
chip_gen: v5e
topology: v5e:2x2
jax: 0.10.0
libtpu: 0.0.40
codegen_flags: <defaults>
</compile_context>

<pallas_src>
import math
import jax
import jax.numpy as jnp
from jax.experimental import pallas as pl
from jax.experimental.pallas import tpu as pltpu

INPUT_DIM = 784          # 28 * 28 (fc1 in, fc4 out)
HIDDEN_DIM = 400
LATENT_DIM = 20
HIDDEN_PAD = 512         # 400 -> 512: lane-dense h1 / h3
HEAD_PAD = 256           # fused [mu | log_var] head width
LV_OFF = 128             # log_var block starts at lane 128 (vreg-aligned)


def _vae_kernel(x_ref, w1_ref, b1_ref, wh_ref, bh_ref,
                w3_ref, b3_ref, w4_ref, b4_ref, eps_ref,
                recon_ref, mu_ref, lv_ref):
    # encode: h1 = relu(x @ W1 + b1)
    # x arrives f32 (no wrapper-side cast); bf16 only at the MXU operand.
    h1 = jnp.dot(x_ref[...].astype(jnp.bfloat16), w1_ref[...],
                 preferred_element_type=jnp.float32) + b1_ref[...]
    h1 = jnp.maximum(h1, 0.0)

    # fused [mu | log_var] head kept in f32 (tiny matmul, tighter KL inputs).
    # log_var columns start at lane 128 so both slices are vreg-aligned.
    head = jnp.dot(h1, wh_ref[...],
                   preferred_element_type=jnp.float32) + bh_ref[...]
    mu = head[:, :LATENT_DIM]
    log_var = head[:, LV_OFF:LV_OFF + LATENT_DIM]

    # reparameterize (f32 elementwise; exp goes to the EUP slot)
    z = mu + eps_ref[...] * jnp.exp(0.5 * log_var)

    # decode: sigmoid(relu(z @ W3 + b3) @ W4 + b4)
    h3 = jnp.dot(z.astype(jnp.bfloat16), w3_ref[...],
                 preferred_element_type=jnp.float32) + b3_ref[...]
    h3 = jnp.maximum(h3, 0.0)
    logits = jnp.dot(h3.astype(jnp.bfloat16), w4_ref[...],
                     preferred_element_type=jnp.float32) + b4_ref[...]

    recon_ref[...] = jax.nn.sigmoid(logits).astype(recon_ref.dtype)
    mu_ref[...] = mu
    lv_ref[...] = log_var


def _round_up(n, m):
    return ((n + m - 1) // m) * m


def _default_block_m():
    # v5e / v6e: 128 MiB VMEM -> larger batch tiles; v7x: 64 MiB per TC.
    try:
        info = pltpu.get_tpu_info()
        if int(getattr(info, "vmem_capacity_bytes", 0)) >= (100 << 20):
            return 1024
    except Exception:
        pass
    return 512


def pack_params(params):
    """One-time parameter packing (padding + casts), hoisted out of the
    per-step hot path.  Weights are stored (in, out) so the kernel computes
    x @ W + b."""
    w1 = jnp.zeros((INPUT_DIM, HIDDEN_PAD), jnp.float32)
    w1 = w1.at[:, :HIDDEN_DIM].set(params["w1"])
    b1 = jnp.zeros((1, HIDDEN_PAD), jnp.float32)
    b1 = b1.at[:, :HIDDEN_DIM].set(params["b1"])

    wh = jnp.zeros((HIDDEN_PAD, HEAD_PAD), jnp.float32)
    wh = wh.at[:HIDDEN_DIM, :LATENT_DIM].set(params["w21"])
    wh = wh.at[:HIDDEN_DIM, LV_OFF:LV_OFF + LATENT_DIM].set(params["w22"])
    bh = jnp.zeros((1, HEAD_PAD), jnp.float32)
    bh = bh.at[:, :LATENT_DIM].set(params["b21"])
    bh = bh.at[:, LV_OFF:LV_OFF + LATENT_DIM].set(params["b22"])

    w3 = jnp.zeros((LATENT_DIM, HIDDEN_PAD), jnp.float32)
    w3 = w3.at[:, :HIDDEN_DIM].set(params["w3"])
    b3 = jnp.zeros((1, HIDDEN_PAD), jnp.float32)
    b3 = b3.at[:, :HIDDEN_DIM].set(params["b3"])

    w4 = jnp.zeros((HIDDEN_PAD, INPUT_DIM), jnp.float32)
    w4 = w4.at[:HIDDEN_DIM, :].set(params["w4"])
    b4 = params["b4"].astype(jnp.float32).reshape(1, INPUT_DIM)

    return dict(
        w1=w1.astype(jnp.bfloat16), b1=b1,
        wh=wh, bh=bh,                              # head kept in f32
        w3=w3.astype(jnp.bfloat16), b3=b3,
        w4=w4.astype(jnp.bfloat16), b4=b4,
    )


def vae_forward(x, packed, eps, *, block_m=None):
    """x: any shape flattening to (B, 784) f32; eps: (B, 20) f32.
    Returns (recon[bf16], mu[f32], log_var[f32])."""
    x2d = x.reshape(-1, INPUT_DIM).astype(jnp.float32)
    eps = eps.astype(jnp.float32)
    B = x2d.shape[0]

    if block_m is None:
        block_m = _default_block_m()

    # Batch tile: multiple of 16, and >= 2 grid steps whenever the batch is
    # large enough so both v7x TensorCores get work under ("parallel",).
    half = _round_up(-(-max(B, 1) // 2), 16)
    bm = max(16, min(block_m, half))
    padded_b = _round_up(max(B, 1), bm)
    if padded_b != B:
        x2d = jnp.pad(x2d, ((0, padded_b - B), (0, 0)))
        eps = jnp.pad(eps, ((0, padded_b - B), (0, 0)))

    grid = (padded_b // bm,)

    def tiled(last):
        return pl.BlockSpec((bm, last), lambda i: (i, 0))

    def resident(shape):
        return pl.BlockSpec(shape, lambda i: (0, 0))

    w1, b1 = packed["w1"], packed["b1"]
    wh, bh = packed["wh"], packed["bh"]
    w3, b3 = packed["w3"], packed["b3"]
    w4, b4 = packed["w4"], packed["b4"]

    weight_bytes = sum(int(a.size * a.dtype.itemsize)
                       for a in (w1, b1, wh, bh, w3, b3, w4, b4))
    cost = pl.CostEstimate(
        flops=2 * padded_b * (INPUT_DIM * HIDDEN_PAD + HIDDEN_PAD * HEAD_PAD
                              + LATENT_DIM * HIDDEN_PAD + HIDDEN_PAD * INPUT_DIM),
        transcendentals=padded_b * (LATENT_DIM + INPUT_DIM),
        bytes_accessed=int(4 * x2d.size + 4 * eps.size
                           + 2 * padded_b * INPUT_DIM          # recon (bf16)
                           + 4 * padded_b * 2 * LATENT_DIM     # mu, log_var
                           + weight_bytes),
    )

    vmem_limit = (96 << 20) if bm > 512 else (64 << 20)

    recon, mu, log_var = pl.pallas_call(
        _vae_kernel,
        out_shape=(
            jax.ShapeDtypeStruct((padded_b, INPUT_DIM), jnp.bfloat16),
            jax.ShapeDtypeStruct((padded_b, LATENT_DIM), jnp.float32),
            jax.ShapeDtypeStruct((padded_b, LATENT_DIM), jnp.float32),
        ),
        grid=grid,
        in_specs=[
            tiled(INPUT_DIM),                      # x (f32)
            resident((INPUT_DIM, HIDDEN_PAD)),     # w1 (bf16)
            resident((1, HIDDEN_PAD)),             # b1
            resident((HIDDEN_PAD, HEAD_PAD)),      # w_head (f32)
            resident((1, HEAD_PAD)),               # b_head
            resident((LATENT_DIM, HIDDEN_PAD)),    # w3 (bf16)
            resident((1, HIDDEN_PAD)),             # b3
            resident((HIDDEN_PAD, INPUT_DIM)),     # w4 (bf16)
            resident((1, INPUT_DIM)),              # b4
            tiled(LATENT_DIM),                     # eps
        ],
        out_specs=(tiled(INPUT_DIM), tiled(LATENT_DIM), tiled(LATENT_DIM)),
        compiler_params=pltpu.CompilerParams(
            dimension_semantics=("parallel",),
            vmem_limit_bytes=vmem_limit,
        ),
        cost_estimate=cost,
    )(x2d, w1, b1, wh, bh, w3, b3, w4, b4, eps)

    return recon[:B], mu[:B], log_var[:B]


def init_params(key):
    """Matches torch.nn.Linear default init U(-1/sqrt(fan_in), 1/sqrt(fan_in)).
    Raw (unpadded, unfused) parameters; feed through pack_params() once."""
    def linear(k, fan_in, fan_out):
        kw, kb = jax.random.split(k)
        bound = 1.0 / math.sqrt(fan_in)
        w = jax.random.uniform(kw, (fan_in, fan_out), jnp.float32, -bound, bound)
        b = jax.random.uniform(kb, (1, fan_out), jnp.float32, -bound, bound)
        return w, b

    k1, k21, k22, k3, k4 = jax.random.split(key, 5)
    w1, b1 = linear(k1, INPUT_DIM, HIDDEN_DIM)
    w21, b21 = linear(k21, HIDDEN_DIM, LATENT_DIM)
    w22, b22 = linear(k22, HIDDEN_DIM, LATENT_DIM)
    w3, b3 = linear(k3, LATENT_DIM, HIDDEN_DIM)
    w4, b4 = linear(k4, HIDDEN_DIM, INPUT_DIM)
    return dict(w1=w1, b1=b1, w21=w21, b21=b21, w22=w22, b22=b22,
                w3=w3, b3=b3, w4=w4, b4=b4)


def _reference(x, params, eps):
    """Pure-JAX f32 reference (matches the PyTorch forward)."""
    x2d = x.reshape(-1, INPUT_DIM)
    h1 = jnp.maximum(x2d @ params["w1"] + params["b1"], 0.0)
    mu = h1 @ params["w21"] + params["b21"]
    log_var = h1 @ params["w22"] + params["b22"]
    z = mu + eps * jnp.exp(0.5 * log_var)
    h3 = jnp.maximum(z @ params["w3"] + params["b3"], 0.0)
    recon = jax.nn.sigmoid(h3 @ params["w4"] + params["b4"])
    return recon, mu, log_var


if __name__ == "__main__":
    key = jax.random.PRNGKey(0)
    k_params, k_x, k_eps = jax.random.split(key, 3)

    B = 2
    # NCHW image input, as the PyTorch module receives (view(-1, 784)).
    x = jax.random.normal(k_x, (B, 1, 28, 28), jnp.float32)
    # eps corresponds to torch.randn_like(std); supplied externally so the
    # kernel stays deterministic.
    eps = jax.random.normal(k_eps, (B, LATENT_DIM), jnp.float32)

    params = init_params(k_params)
    packed = pack_params(params)          # one-time, outside the hot path

    recon, mu, log_var = vae_forward(x, packed, eps)
    jax.block_until_ready((recon, mu, log_var))

    # Sanity check against the f32 reference (recon is bf16 + bf16-operand
    # matmuls with f32 accumulation -> relaxed tolerance; mu/log_var go
    # through an f32 head so they are tighter).
    r_ref, mu_ref, lv_ref = _reference(x, params, eps)
    assert recon.shape == (B, INPUT_DIM) and recon.dtype == jnp.bfloat16
    assert mu.shape == (B, LATENT_DIM) and log_var.shape == (B, LATENT_DIM)
    assert jnp.allclose(recon.astype(jnp.float32), r_ref, atol=3e-2, rtol=3e-2)
    assert jnp.allclose(mu, mu_ref, atol=2e-2, rtol=2e-2)
    assert jnp.allclose(log_var, lv_ref, atol=2e-2, rtol=2e-2)

    print("KERNEL_OK")
</pallas_src>

<mosaic_0001>
module attributes {stable_mosaic.version = 11 : i64} {
  func.func @_vae_kernel(%arg0: i32, %arg1: memref<16x784xf32, #tpu.memory_space<vmem>>, %arg2: memref<784x512xbf16, #tpu.memory_space<vmem>>, %arg3: memref<1x512xf32, #tpu.memory_space<vmem>>, %arg4: memref<512x256xf32, #tpu.memory_space<vmem>>, %arg5: memref<1x256xf32, #tpu.memory_space<vmem>>, %arg6: memref<20x512xbf16, #tpu.memory_space<vmem>>, %arg7: memref<1x512xf32, #tpu.memory_space<vmem>>, %arg8: memref<512x784xbf16, #tpu.memory_space<vmem>>, %arg9: memref<1x784xf32, #tpu.memory_space<vmem>>, %arg10: memref<16x20xf32, #tpu.memory_space<vmem>>, %arg11: memref<16x784xbf16, #tpu.memory_space<vmem>>, %arg12: memref<16x20xf32, #tpu.memory_space<vmem>>, %arg13: memref<16x20xf32, #tpu.memory_space<vmem>>) attributes {dimension_semantics = [#tpu.dimension_semantics<parallel>], iteration_bounds = array<i64: 1>, scalar_prefetch = 0 : i64, scratch_operands = 0 : i64, tpu.core_type = #tpu.core_type<tc>, window_params = [{transform_indices = @transform_0, window_bounds = array<i64: 16, 784>}, {pipeline_mode = #tpu.pipeline_mode<synchronous>, transform_indices = @transform_1, window_bounds = array<i64: 784, 512>}, {pipeline_mode = #tpu.pipeline_mode<synchronous>, transform_indices = @transform_2, window_bounds = array<i64: 1, 512>}, {pipeline_mode = #tpu.pipeline_mode<synchronous>, transform_indices = @transform_3, window_bounds = array<i64: 512, 256>}, {pipeline_mode = #tpu.pipeline_mode<synchronous>, transform_indices = @transform_4, window_bounds = array<i64: 1, 256>}, {pipeline_mode = #tpu.pipeline_mode<synchronous>, transform_indices = @transform_5, window_bounds = array<i64: 20, 512>}, {pipeline_mode = #tpu.pipeline_mode<synchronous>, transform_indices = @transform_6, window_bounds = array<i64: 1, 512>}, {pipeline_mode = #tpu.pipeline_mode<synchronous>, transform_indices = @transform_7, window_bounds = array<i64: 512, 784>}, {pipeline_mode = #tpu.pipeline_mode<synchronous>, transform_indices = @transform_8, window_bounds = array<i64: 1, 784>}, {transform_indices = @transform_9, window_bounds = array<i64: 16, 20>}, {transform_indices = @transform_10, window_bounds = array<i64: 16, 784>}, {transform_indices = @transform_11, window_bounds = array<i64: 16, 20>}, {transform_indices = @transform_12, window_bounds = array<i64: 16, 20>}]} {
    %c0 = arith.constant 0 : index
    %c0_0 = arith.constant 0 : index
    %0 = vector.load %arg1[%c0, %c0_0] : memref<16x784xf32, #tpu.memory_space<vmem>>, vector<16x784xf32>
    %1 = arith.truncf %0 : vector<16x784xf32> to vector<16x784xbf16>
    %c0_1 = arith.constant 0 : index
    %c0_2 = arith.constant 0 : index
    %2 = vector.load %arg2[%c0_1, %c0_2] : memref<784x512xbf16, #tpu.memory_space<vmem>>, vector<784x512xbf16>
    %cst = arith.constant dense<0.000000e+00> : vector<16x512xf32>
    %3 = tpu.matmul %1, %2, %cst {dimension_numbers = #tpu.dot_dimension_numbers<[1], [0], [0], [1], [0, 0, 1, 1], [], []>} : vector<16x784xbf16>, vector<784x512xbf16>, vector<16x512xf32> -> vector<16x512xf32>
    %c0_3 = arith.constant 0 : index
    %c0_4 = arith.constant 0 : index
    %4 = vector.load %arg3[%c0_3, %c0_4] : memref<1x512xf32, #tpu.memory_space<vmem>>, vector<1x512xf32>
    %5 = vector.broadcast %4 : vector<1x512xf32> to vector<16x512xf32>
    %6 = arith.addf %3, %5 : vector<16x512xf32>
    %cst_5 = arith.constant 0.000000e+00 : f32
    %7 = vector.broadcast %cst_5 : f32 to vector<16x512xf32>
    %8 = arith.maximumf %6, %7 : vector<16x512xf32>
    %c0_6 = arith.constant 0 : index
    %c0_7 = arith.constant 0 : index
    %9 = vector.load %arg4[%c0_6, %c0_7] : memref<512x256xf32, #tpu.memory_space<vmem>>, vector<512x256xf32>
    %cst_8 = arith.constant dense<0.000000e+00> : vector<16x256xf32>
    %10 = tpu.matmul %8, %9, %cst_8 {dimension_numbers = #tpu.dot_dimension_numbers<[1], [0], [0], [1], [0, 0, 1, 1], [], []>} : vector<16x512xf32>, vector<512x256xf32>, vector<16x256xf32> -> vector<16x256xf32>
    %c0_9 = arith.constant 0 : index
    %c0_10 = arith.constant 0 : index
    %11 = vector.load %arg5[%c0_9, %c0_10] : memref<1x256xf32, #tpu.memory_space<vmem>>, vector<1x256xf32>
    %12 = vector.broadcast %11 : vector<1x256xf32> to vector<16x256xf32>
    %13 = arith.addf %10, %12 : vector<16x256xf32>
    %14 = vector.extract_strided_slice %13 {offsets = [0, 0], sizes = [16, 20], strides = [1, 1]} : vector<16x256xf32> to vector<16x20xf32>
    %15 = vector.extract_strided_slice %13 {offsets = [0, 128], sizes = [16, 20], strides = [1, 1]} : vector<16x256xf32> to vector<16x20xf32>
    %c0_11 = arith.constant 0 : index
    %c0_12 = arith.constant 0 : index
    %16 = vector.load %arg10[%c0_11, %c0_12] : memref<16x20xf32, #tpu.memory_space<vmem>>, vector<16x20xf32>
    %cst_13 = arith.constant 5.000000e-01 : f32
    %17 = vector.broadcast %cst_13 : f32 to vector<16x20xf32>
    %18 = arith.mulf %17, %15 : vector<16x20xf32>
    %19 = math.exp %18 : vector<16x20xf32>
    %20 = arith.mulf %16, %19 : vector<16x20xf32>
    %21 = arith.addf %14, %20 : vector<16x20xf32>
    %22 = arith.truncf %21 : vector<16x20xf32> to vector<16x20xbf16>
    %c0_14 = arith.constant 0 : index
    %c0_15 = arith.constant 0 : index
    %23 = vector.load %arg6[%c0_14, %c0_15] : memref<20x512xbf16, #tpu.memory_space<vmem>>, vector<20x512xbf16>
    %cst_16 = arith.constant dense<0.000000e+00> : vector<16x512xf32>
    %24 = tpu.matmul %22, %23, %cst_16 {dimension_numbers = #tpu.dot_dimension_numbers<[1], [0], [0], [1], [0, 0, 1, 1], [], []>} : vector<16x20xbf16>, vector<20x512xbf16>, vector<16x512xf32> -> vector<16x512xf32>
    %c0_17 = arith.constant 0 : index
    %c0_18 = arith.constant 0 : index
    %25 = vector.load %arg7[%c0_17, %c0_18] : memref<1x512xf32, #tpu.memory_space<vmem>>, vector<1x512xf32>
    %26 = vector.broadcast %25 : vector<1x512xf32> to vector<16x512xf32>
    %27 = arith.addf %24, %26 : vector<16x512xf32>
    %cst_19 = arith.constant 0.000000e+00 : f32
    %28 = vector.broadcast %cst_19 : f32 to vector<16x512xf32>
    %29 = arith.maximumf %27, %28 : vector<16x512xf32>
    %30 = arith.truncf %29 : vector<16x512xf32> to vector<16x512xbf16>
    %c0_20 = arith.constant 0 : index
    %c0_21 = arith.constant 0 : index
    %31 = vector.load %arg8[%c0_20, %c0_21] : memref<512x784xbf16, #tpu.memory_space<vmem>>, vector<512x784xbf16>
    %cst_22 = arith.constant dense<0.000000e+00> : vector<16x784xf32>
    %32 = tpu.matmul %30, %31, %cst_22 {dimension_numbers = #tpu.dot_dimension_numbers<[1], [0], [0], [1], [0, 0, 1, 1], [], []>} : vector<16x512xbf16>, vector<512x784xbf16>, vector<16x784xf32> -> vector<16x784xf32>
    %c0_23 = arith.constant 0 : index
    %c0_24 = arith.constant 0 : index
    %33 = vector.load %arg9[%c0_23, %c0_24] : memref<1x784xf32, #tpu.memory_space<vmem>>, vector<1x784xf32>
    %34 = vector.broadcast %33 : vector<1x784xf32> to vector<16x784xf32>
    %35 = arith.addf %32, %34 : vector<16x784xf32>
    %36 = arith.negf %35 : vector<16x784xf32>
    %37 = math.exp %36 : vector<16x784xf32>
    %cst_25 = arith.constant 1.000000e+00 : f32
    %38 = vector.broadcast %cst_25 : f32 to vector<16x784xf32>
    %39 = arith.addf %38, %37 : vector<16x784xf32>
    %40 = arith.divf %38, %39 : vector<16x784xf32>
    %41 = arith.truncf %40 : vector<16x784xf32> to vector<16x784xbf16>
    %c0_26 = arith.constant 0 : index
    %c0_27 = arith.constant 0 : index
    %42 = vector.load %arg11[%c0_26, %c0_27] : memref<16x784xbf16, #tpu.memory_space<vmem>>, vector<16x784xbf16>
    tpu.vector_store %arg11[%c0_26, %c0_27], %41 {strides = array<i32>} : memref<16x784xbf16, #tpu.memory_space<vmem>>, vector<16x784xbf16>,
    %c0_28 = arith.constant 0 : index
    %c0_29 = arith.constant 0 : index
    %43 = vector.load %arg12[%c0_28, %c0_29] : memref<16x20xf32, #tpu.memory_space<vmem>>, vector<16x20xf32>
    tpu.vector_store %arg12[%c0_28, %c0_29], %14 {strides = array<i32>} : memref<16x20xf32, #tpu.memory_space<vmem>>, vector<16x20xf32>,
    %c0_30 = arith.constant 0 : index
    %c0_31 = arith.constant 0 : index
    %44 = vector.load %arg13[%c0_30, %c0_31] : memref<16x20xf32, #tpu.memory_space<vmem>>, vector<16x20xf32>
    tpu.vector_store %arg13[%c0_30, %c0_31], %15 {strides = array<i32>} : memref<16x20xf32, #tpu.memory_space<vmem>>, vector<16x20xf32>,
    return
  }
  func.func @transform_0(%arg0: i32) -> (i32, i32) {
    %c0_i32 = arith.constant 0 : i32
    %c0_i32_0 = arith.constant 0 : i32
    return %arg0, %c0_i32 : i32, i32
  }
  func.func @transform_1(%arg0: i32) -> (i32, i32) {
    %c0_i32 = arith.constant 0 : i32
    %c0_i32_0 = arith.constant 0 : i32
    %c0_i32_1 = arith.constant 0 : i32
    return %c0_i32, %c0_i32_0 : i32, i32
  }
  func.func @transform_2(%arg0: i32) -> (i32, i32) {
    %c0_i32 = arith.constant 0 : i32
    %c0_i32_0 = arith.constant 0 : i32
    %c0_i32_1 = arith.constant 0 : i32
    return %c0_i32, %c0_i32_0 : i32, i32
  }
  func.func @transform_3(%arg0: i32) -> (i32, i32) {
    %c0_i32 = arith.constant 0 : i32
    %c0_i32_0 = arith.constant 0 : i32
    %c0_i32_1 = arith.constant 0 : i32
    return %c0_i32, %c0_i32_0 : i32, i32
  }
  func.func @transform_4(%arg0: i32) -> (i32, i32) {
    %c0_i32 = arith.constant 0 : i32
    %c0_i32_0 = arith.constant 0 : i32
    %c0_i32_1 = arith.constant 0 : i32
    return %c0_i32, %c0_i32_0 : i32, i32
  }
  func.func @transform_5(%arg0: i32) -> (i32, i32) {
    %c0_i32 = arith.constant 0 : i32
    %c0_i32_0 = arith.constant 0 : i32
    %c0_i32_1 = arith.constant 0 : i32
    return %c0_i32, %c0_i32_0 : i32, i32
  }
  func.func @transform_6(%arg0: i32) -> (i32, i32) {
    %c0_i32 = arith.constant 0 : i32
    %c0_i32_0 = arith.constant 0 : i32
    %c0_i32_1 = arith.constant 0 : i32
    return %c0_i32, %c0_i32_0 : i32, i32
  }
  func.func @transform_7(%arg0: i32) -> (i32, i32) {
    %c0_i32 = arith.constant 0 : i32
    %c0_i32_0 = arith.constant 0 : i32
    %c0_i32_1 = arith.constant 0 : i32
    return %c0_i32, %c0_i32_0 : i32, i32
  }
  func.func @transform_8(%arg0: i32) -> (i32, i32) {
    %c0_i32 = arith.constant 0 : i32
    %c0_i32_0 = arith.constant 0 : i32
    %c0_i32_1 = arith.constant 0 : i32
    return %c0_i32, %c0_i32_0 : i32, i32
  }
  func.func @transform_9(%arg0: i32) -> (i32, i32) {
    %c0_i32 = arith.constant 0 : i32
    %c0_i32_0 = arith.constant 0 : i32
    return %arg0, %c0_i32 : i32, i32
  }
  func.func @transform_10(%arg0: i32) -> (i32, i32) {
    %c0_i32 = arith.constant 0 : i32
    %c0_i32_0 = arith.constant 0 : i32
    return %arg0, %c0_i32 : i32, i32
  }
  func.func @transform_11(%arg0: i32) -> (i32, i32) {
    %c0_i32 = arith.constant 0 : i32
    %c0_i32_0 = arith.constant 0 : i32
    return %arg0, %c0_i32 : i32, i32
  }
  func.func @transform_12(%arg0: i32) -> (i32, i32) {
    %c0_i32 = arith.constant 0 : i32
    %c0_i32_0 = arith.constant 0 : i32
    return %arg0, %c0_i32 : i32, i32
  }
}

</mosaic_0001>

<llo_original>
// kernel: tpu_custom_call.1
$region0: #{tpu_custom_call.1}
  #allocation0 [shape = 'u32[]', space=smem, size = 0x4, offset = 0x4, fixed_abs, tag = 'smem constant byte address 0x4 - core index']
  #allocation1 [shape = 'u32[72,128]{1,0:T(1,128)}', space=vmem, size = 0x9000, scoped, tag = 'internal scratch']
  %s0 = inlined_call_operand.vmem [shape: f32[16,784], index: 0, kind: input, shape index: {}]
  %s1 = inlined_call_operand.vmem [shape: bf16[784,512], index: 1, kind: input, shape index: {}]
  %s2 = inlined_call_operand.vmem [shape: f32[1,512], index: 2, kind: input, shape index: {}]
  %s3 = inlined_call_operand.vmem [shape: f32[512,256], index: 3, kind: input, shape index: {}]
  %s4 = inlined_call_operand.vmem [shape: f32[1,256], index: 4, kind: input, shape index: {}]
  %s5 = inlined_call_operand.vmem [shape: bf16[20,512], index: 5, kind: input, shape index: {}]
  %s6 = inlined_call_operand.vmem [shape: f32[1,512], index: 6, kind: input, shape index: {}]
  %s7 = inlined_call_operand.vmem [shape: bf16[512,784], index: 7, kind: input, shape index: {}]
  %s8 = inlined_call_operand.vmem [shape: f32[1,784], index: 8, kind: input, shape index: {}]
  %s9 = inlined_call_operand.vmem [shape: f32[16,20], index: 9, kind: input, shape index: {}]
  %s10 = inlined_call_operand.hbm [shape: bf16[16,784], index: 10, kind: output, shape index: {0}]
  %s11 = inlined_call_operand.hbm [shape: f32[16,20], index: 11, kind: output, shape index: {1}]
  %s12 = inlined_call_operand.hbm [shape: f32[16,20], index: 12, kind: output, shape index: {2}]
  %13 = xla_tuple %s10, %s11, %s12
  %s14 = sld [smem:[#allocation0]]
  $region66: #{tpu_custom_call.1} parent=0
    _
  %s16 = ssub.s32 1, %s14
  %s17 = scalar_select 0, %s16, %s14
  $region1: #{tpu_custom_call.1} parent=0
    #allocation2 [shape = 'u8[28672]{0}', space=vmem, size = 0x7000, scoped, tag = 'output window, operand 0, single buffered']
    #allocation3 [shape = 's32[1]{0}', space=sflag, size = 0x4, scoped, tag = 'scoped memory for tpu_custom_call.1']
    #allocation4 [shape = 'u8[8192]{0}', space=vmem, size = 0x2000, scoped, tag = 'output window, operand 1, single buffered']
    #allocation5 [shape = 's32[1]{0}', space=sflag, size = 0x4, scoped, tag = 'scoped memory for tpu_custom_call.1']
    #allocation6 [shape = 'u8[8192]{0}', space=vmem, size = 0x2000, scoped, tag = 'output window, operand 2, single buffered']
    %18 = vsyncpa [#allocation3], 0
    %19 = vsyncpa [#allocation5], 0
    // Predicated region
    $region2: #{tpu_custom_call.1} parent=1 // pred_check
      _
    $region3: #{tpu_custom_call.1} parent=1 // pred_check_branch
      %21 = sbr.rel (0) target = $region5
    $region4: #{tpu_custom_call.1} parent=1 // pred_region
      _
    $region5: #{tpu_custom_call.1} parent=1 // pred_fallthru
      _
    // Predicated region
    $region6: #{tpu_custom_call.1} parent=1 // pred_check
      _
    $region7: #{tpu_custom_call.1} parent=1 // pred_check_branch
      %23 = sbr.rel (0) target = $region9
    $region8: #{tpu_custom_call.1} parent=1 // pred_region
      _
    $region9: #{tpu_custom_call.1} parent=1 // pred_fallthru
      _
    // Predicated region
    $region10: #{tpu_custom_call.1} parent=1 // pred_check
      _
    $region11: #{tpu_custom_call.1} parent=1 // pred_check_branch
      %25 = sbr.rel (0) target = $region13
    $region12: #{tpu_custom_call.1} parent=1 // pred_region
      _
    $region13: #{tpu_custom_call.1} parent=1 // pred_fallthru
      _
    // Predicated region
    $region14: #{tpu_custom_call.1} parent=1 // pred_check
      _
    $region15: #{tpu_custom_call.1} parent=1 // pred_check_branch
      %27 = sbr.rel (0) target = $region17
    $region16: #{tpu_custom_call.1} parent=1 // pred_region
      _
    $region17: #{tpu_custom_call.1} parent=1 // pred_fallthru
      _
    // Predicated region
    $region18: #{tpu_custom_call.1} parent=1 // pred_check
      _
    $region19: #{tpu_custom_call.1} parent=1 // pred_check_branch
      %29 = sbr.rel (0) target = $region21
    $region20: #{tpu_custom_call.1} parent=1 // pred_region
      _
    $region21: #{tpu_custom_call.1} parent=1 // pred_fallthru
      _
    // Predicated region
    $region22: #{tpu_custom_call.1} parent=1 // pred_check
      _
    $region23: #{tpu_custom_call.1} parent=1 // pred_check_branch
      %31 = sbr.rel (0) target = $region25
    $region24: #{tpu_custom_call.1} parent=1 // pred_region
      _
    $region25: #{tpu_custom_call.1} parent=1 // pred_fallthru
      _
    // Predicated region
    $region26: #{tpu_custom_call.1} parent=1 // pred_check
      _
    $region27: #{tpu_custom_call.1} parent=1 // pred_check_branch
      %33 = sbr.rel (0) target = $region29
    $region28: #{tpu_custom_call.1} parent=1 // pred_region
      _
    $region29: #{tpu_custom_call.1} parent=1 // pred_fallthru
      _
    // Predicated region
    $region30: #{tpu_custom_call.1} parent=1 // pred_check
      _
    $region31: #{tpu_custom_call.1} parent=1 // pred_check_branch
      %35 = sbr.rel (0) target = $region33
    $region32: #{tpu_custom_call.1} parent=1 // pred_region
      _
    $region33: #{tpu_custom_call.1} parent=1 // pred_fallthru
      _
    // Predicated region
    $region34: #{tpu_custom_call.1} parent=1 // pred_check
      _
    $region35: #{tpu_custom_call.1} parent=1 // pred_check_branch
      %37 = sbr.rel (0) target = $region37
    $region36: #{tpu_custom_call.1} parent=1 // pred_region
      _
    $region37: #{tpu_custom_call.1} parent=1 // pred_fallthru
      _
    // Predicated region
    $region38: #{tpu_custom_call.1} parent=1 // pred_check
      _
    $region39: #{tpu_custom_call.1} parent=1 // pred_check_branch
      %39 = sbr.rel (0) target = $region41
    $region40: #{tpu_custom_call.1} parent=1 // pred_region
      _
    $region41: #{tpu_custom_call.1} parent=1 // pred_fallthru
      _
    %v41 = vld [vmem:[%s0] sm:$0xff]
    %v42 = vld [vmem:[%s0 + $0x8] sm:$0xff]
    %v43 = vld [vmem:[%s0 + $0x10] sm:$0xff]
    %v44 = vld [vmem:[%s0 + $0x18] sm:$0xff]
    %v45 = vld [vmem:[%s0 + $0x20] sm:$0xff]
    %v46 = vld [vmem:[%s0 + $0x28] sm:$0xff]
    %v47 = vld [vmem:[%s0 + $0x30] sm:$0xff]
    %v48 = vld [vmem:[%s0 + $0x38] sm:$0xff]
    %v49 = vld [vmem:[%s0 + $0x40] sm:$0xff]
    %v50 = vld [vmem:[%s0 + $0x48] sm:$0xff]
    %v51 = vld [vmem:[%s0 + $0x50] sm:$0xff]
    %v52 = vld [vmem:[%s0 + $0x58] sm:$0xff]
    %v53 = vld [vmem:[%s0 + $0x60] sm:$0xff]
    %v54 = vld [vmem:[%s0 + $0x68] sm:$0xff]
    %v55 = vpack.c.bf16 %v48, %v41
    %v56 = vpack.c.bf16 %v49, %v42
    %v57 = vpack.c.bf16 %v50, %v43
    %v58 = vpack.c.bf16 %v51, %v44
    %v59 = vpack.c.bf16 %v52, %v45
    %v60 = vpack.c.bf16 %v53, %v46
    %v61 = vpack.c.bf16 %v54, %v47
    %v62 = vld [vmem:[%s1] sm:$0xff]
    %v63 = vld [vmem:[%s1 + $0x8] sm:$0xff]
    %v64 = vld [vmem:[%s1 + $0x10] sm:$0xff]
    %v65 = vld [vmem:[%s1 + $0x18] sm:$0xff]
    %v66 = vld [vmem:[%s1 + $0x20] sm:$0xff]
    %v67 = vld [vmem:[%s1 + $0x28] sm:$0xff]
    %v68 = vld [vmem:[%s1 + $0x30] sm:$0xff]
    %v69 = vld [vmem:[%s1 + $0x38] sm:$0xff]
    %v70 = vld [vmem:[%s1 + $0x40] sm:$0xff]
    %v71 = vld [vmem:[%s1 + $0x48] sm:$0xff]
    %v72 = vld [vmem:[%s1 + $0x50] sm:$0xff]
    %v73 = vld [vmem:[%s1 + $0x58] sm:$0xff]
    %v74 = vld [vmem:[%s1 + $0x60] sm:$0xff]
    %v75 = vld [vmem:[%s1 + $0x68] sm:$0xff]
    %v76 = vld [vmem:[%s1 + $0x70] sm:$0xff]
    %v77 = vld [vmem:[%s1 + $0x78] sm:$0xff]
    %v78 = vld [vmem:[%s1 + $0x80] sm:$0xff]
    %v79 = vld [vmem:[%s1 + $0x88] sm:$0xff]
    %v80 = vld [vmem:[%s1 + $0x90] sm:$0xff]
    %v81 = vld [vmem:[%s1 + $0x98] sm:$0xff]
    %v82 = vld [vmem:[%s1 + $0xa0] sm:$0xff]
    %v83 = vld [vmem:[%s1 + $0xa8] sm:$0xff]
    %v84 = vld [vmem:[%s1 + $0xb0] sm:$0xff]
    %v85 = vld [vmem:[%s1 + $0xb8] sm:$0xff]
    %v86 = vld [vmem:[%s1 + $0xc0] sm:$0xff]
    %v87 = vld [vmem:[%s1 + $0xc8] sm:$0xff]
    %v88 = vld [vmem:[%s1 + $0xd0] sm:$0xff]
    %v89 = vld [vmem:[%s1 + $0xd8] sm:$0xff]
    %v90 = vld [vmem:[%s1 + $0xe0] sm:$0xff]
    %v91 = vld [vmem:[%s1 + $0xe8] sm:$0xff]
    %v92 = vld [vmem:[%s1 + $0xf0] sm:$0xff]
    %v93 = vld [vmem:[%s1 + $0xf8] sm:$0xff]
    %v94 = vld [vmem:[%s1 + $0x100] sm:$0xff]
    %v95 = vld [vmem:[%s1 + $0x108] sm:$0xff]
    %v96 = vld [vmem:[%s1 + $0x110] sm:$0xff]
    %v97 = vld [vmem:[%s1 + $0x118] sm:$0xff]
    %v98 = vld [vmem:[%s1 + $0x120] sm:$0xff]
    %v99 = vld [vmem:[%s1 + $0x128] sm:$0xff]
    %v100 = vld [vmem:[%s1 + $0x130] sm:$0xff]
    %v101 = vld [vmem:[%s1 + $0x138] sm:$0xff]
    %v102 = vld [vmem:[%s1 + $0x140] sm:$0xff]
    %v103 = vld [vmem:[%s1 + $0x148] sm:$0xff]
    %v104 = vld [vmem:[%s1 + $0x150] sm:$0xff]
    %v105 = vld [vmem:[%s1 + $0x158] sm:$0xff]
    %v106 = vld [vmem:[%s1 + $0x160] sm:$0xff]
    %v107 = vld [vmem:[%s1 + $0x168] sm:$0xff]
    %v108 = vld [vmem:[%s1 + $0x170] sm:$0xff]
    %v109 = vld [vmem:[%s1 + $0x178] sm:$0xff]
    %v110 = vld [vmem:[%s1 + $0x180] sm:$0xff]
    %v111 = vld [vmem:[%s1 + $0x188] sm:$0xff]
    %v112 = vld [vmem:[%s1 + $0x190] sm:$0xff]
    %v113 = vld [vmem:[%s1 + $0x198] sm:$0xff]
    %v114 = vld [vmem:[%s1 + $0x1a0] sm:$0xff]
    %v115 = vld [vmem:[%s1 + $0x1a8] sm:$0xff]
    %v116 = vld [vmem:[%s1 + $0x1b0] sm:$0xff]
    %v117 = vld [vmem:[%s1 + $0x1b8] sm:$0xff]
    %v118 = vld [vmem:[%s1 + $0x1c0] sm:$0xff]
    %v119 = vld [vmem:[%s1 + $0x1c8] sm:$0xff]
    %v120 = vld [vmem:[%s1 + $0x1d0] sm:$0xff]
    %v121 = vld [vmem:[%s1 + $0x1d8] sm:$0xff]
    %v122 = vld [vmem:[%s1 + $0x1e0] sm:$0xff]
    %v123 = vld [vmem:[%s1 + $0x1e8] sm:$0xff]
    %v124 = vld [vmem:[%s1 + $0x1f0] sm:$0xff]
    %v125 = vld [vmem:[%s1 + $0x1f8] sm:$0xff]
    %v126 = vld [vmem:[%s1 + $0x200] sm:$0xff]
    %v127 = vld [vmem:[%s1 + $0x208] sm:$0xff]
    %v128 = vld [vmem:[%s1 + $0x210] sm:$0xff]
    %v129 = vld [vmem:[%s1 + $0x218] sm:$0xff]
    %v130 = vld [vmem:[%s1 + $0x220] sm:$0xff]
    %v131 = vld [vmem:[%s1 + $0x228] sm:$0xff]
    %v132 = vld [vmem:[%s1 + $0x230] sm:$0xff]
    %v133 = vld [vmem:[%s1 + $0x238] sm:$0xff]
    %v134 = vld [vmem:[%s1 + $0x240] sm:$0xff]
    %v135 = vld [vmem:[%s1 + $0x248] sm:$0xff]
    %v136 = vld [vmem:[%s1 + $0x250] sm:$0xff]
    %v137 = vld [vmem:[%s1 + $0x258] sm:$0xff]
    %v138 = vld [vmem:[%s1 + $0x260] sm:$0xff]
    %v139 = vld [vmem:[%s1 + $0x268] sm:$0xff]
    %v140 = vld [vmem:[%s1 + $0x270] sm:$0xff]
    %v141 = vld [vmem:[%s1 + $0x278] sm:$0xff]
    %v142 = vld [vmem:[%s1 + $0x280] sm:$0xff]
    %v143 = vld [vmem:[%s1 + $0x288] sm:$0xff]
    %v144 = vld [vmem:[%s1 + $0x290] sm:$0xff]
    %v145 = vld [vmem:[%s1 + $0x298] sm:$0xff]
    %v146 = vld [vmem:[%s1 + $0x2a0] sm:$0xff]
    %v147 = vld [vmem:[%s1 + $0x2a8] sm:$0xff]
    %v148 = vld [vmem:[%s1 + $0x2b0] sm:$0xff]
    %v149 = vld [vmem:[%s1 + $0x2b8] sm:$0xff]
    %v150 = vld [vmem:[%s1 + $0x2c0] sm:$0xff]
    %v151 = vld [vmem:[%s1 + $0x2c8] sm:$0xff]
    %v152 = vld [vmem:[%s1 + $0x2d0] sm:$0xff]
    %v153 = vld [vmem:[%s1 + $0x2d8] sm:$0xff]
    %v154 = vld [vmem:[%s1 + $0x2e0] sm:$0xff]
    %v155 = vld [vmem:[%s1 + $0x2e8] sm:$0xff]
    %v156 = vld [vmem:[%s1 + $0x2f0] sm:$0xff]
    %v157 = vld [vmem:[%s1 + $0x2f8] sm:$0xff]
    %v158 = vld [vmem:[%s1 + $0x300] sm:$0xff]
    %v159 = vld [vmem:[%s1 + $0x308] sm:$0xff]
    %v160 = vld [vmem:[%s1 + $0x310] sm:$0xff]
    %v161 = vld [vmem:[%s1 + $0x318] sm:$0xff]
    %v162 = vld [vmem:[%s1 + $0x320] sm:$0xff]
    %v163 = vld [vmem:[%s1 + $0x328] sm:$0xff]
    %v164 = vld [vmem:[%s1 + $0x330] sm:$0xff]
    %v165 = vld [vmem:[%s1 + $0x338] sm:$0xff]
    %v166 = vld [vmem:[%s1 + $0x340] sm:$0xff]
    %v167 = vld [vmem:[%s1 + $0x348] sm:$0xff]
    %v168 = vld [vmem:[%s1 + $0x350] sm:$0xff]
    %v169 = vld [vmem:[%s1 + $0x358] sm:$0xff]
    %v170 = vld [vmem:[%s1 + $0x360] sm:$0xff]
    %v171 = vld [vmem:[%s1 + $0x368] sm:$0xff]
    %v172 = vld [vmem:[%s1 + $0x370] sm:$0xff]
    %v173 = vld [vmem:[%s1 + $0x378] sm:$0xff]
    %v174 = vld [vmem:[%s1 + $0x380] sm:$0xff]
    %v175 = vld [vmem:[%s1 + $0x388] sm:$0xff]
    %v176 = vld [vmem:[%s1 + $0x390] sm:$0xff]
    %v177 = vld [vmem:[%s1 + $0x398] sm:$0xff]
    %v178 = vld [vmem:[%s1 + $0x3a0] sm:$0xff]
    %v179 = vld [vmem:[%s1 + $0x3a8] sm:$0xff]
    %v180 = vld [vmem:[%s1 + $0x3b0] sm:$0xff]
    %v181 = vld [vmem:[%s1 + $0x3b8] sm:$0xff]
    %v182 = vld [vmem:[%s1 + $0x3c0] sm:$0xff]
    %v183 = vld [vmem:[%s1 + $0x3c8] sm:$0xff]
    %v184 = vld [vmem:[%s1 + $0x3d0] sm:$0xff]
    %v185 = vld [vmem:[%s1 + $0x3d8] sm:$0xff]
    %v186 = vld [vmem:[%s1 + $0x3e0] sm:$0xff]
    %v187 = vld [vmem:[%s1 + $0x3e8] sm:$0xff]
    %v188 = vld [vmem:[%s1 + $0x3f0] sm:$0xff]
    %v189 = vld [vmem:[%s1 + $0x3f8] sm:$0xff]
    %v190 = vld [vmem:[%s1 + $0x400] sm:$0xff]
    %v191 = vld [vmem:[%s1 + $0x408] sm:$0xff]
    %v192 = vld [vmem:[%s1 + $0x410] sm:$0xff]
    %v193 = vld [vmem:[%s1 + $0x418] sm:$0xff]
    %v194 = vld [vmem:[%s1 + $0x420] sm:$0xff]
    %v195 = vld [vmem:[%s1 + $0x428] sm:$0xff]
    %v196 = vld [vmem:[%s1 + $0x430] sm:$0xff]
    %v197 = vld [vmem:[%s1 + $0x438] sm:$0xff]
    %v198 = vld [vmem:[%s1 + $0x440] sm:$0xff]
    %v199 = vld [vmem:[%s1 + $0x448] sm:$0xff]
    %v200 = vld [vmem:[%s1 + $0x450] sm:$0xff]
    %v201 = vld [vmem:[%s1 + $0x458] sm:$0xff]
    %v202 = vld [vmem:[%s1 + $0x460] sm:$0xff]
    %v203 = vld [vmem:[%s1 + $0x468] sm:$0xff]
    %v204 = vld [vmem:[%s1 + $0x470] sm:$0xff]
    %v205 = vld [vmem:[%s1 + $0x478] sm:$0xff]
    %v206 = vld [vmem:[%s1 + $0x480] sm:$0xff]
    %v207 = vld [vmem:[%s1 + $0x488] sm:$0xff]
    %v208 = vld [vmem:[%s1 + $0x490] sm:$0xff]
    %v209 = vld [vmem:[%s1 + $0x498] sm:$0xff]
    %v210 = vld [vmem:[%s1 + $0x4a0] sm:$0xff]
    %v211 = vld [vmem:[%s1 + $0x4a8] sm:$0xff]
    %v212 = vld [vmem:[%s1 + $0x4b0] sm:$0xff]
    %v213 = vld [vmem:[%s1 + $0x4b8] sm:$0xff]
    %v214 = vld [vmem:[%s1 + $0x4c0] sm:$0xff]
    %v215 = vld [vmem:[%s1 + $0x4c8] sm:$0xff]
    %v216 = vld [vmem:[%s1 + $0x4d0] sm:$0xff]
    %v217 = vld [vmem:[%s1 + $0x4d8] sm:$0xff]
    %v218 = vld [vmem:[%s1 + $0x4e0] sm:$0xff]
    %v219 = vld [vmem:[%s1 + $0x4e8] sm:$0xff]
    %v220 = vld [vmem:[%s1 + $0x4f0] sm:$0xff]
    %v221 = vld [vmem:[%s1 + $0x4f8] sm:$0xff]
    %v222 = vld [vmem:[%s1 + $0x500] sm:$0xff]
    %v223 = vld [vmem:[%s1 + $0x508] sm:$0xff]
    %v224 = vld [vmem:[%s1 + $0x510] sm:$0xff]
    %v225 = vld [vmem:[%s1 + $0x518] sm:$0xff]
    %v226 = vld [vmem:[%s1 + $0x520] sm:$0xff]
    %v227 = vld [vmem:[%s1 + $0x528] sm:$0xff]
    %v228 = vld [vmem:[%s1 + $0x530] sm:$0xff]
    %v229 = vld [vmem:[%s1 + $0x538] sm:$0xff]
    %v230 = vld [vmem:[%s1 + $0x540] sm:$0xff]
    %v231 = vld [vmem:[%s1 + $0x548] sm:$0xff]
    %v232 = vld [vmem:[%s1 + $0x550] sm:$0xff]
    %v233 = vld [vmem:[%s1 + $0x558] sm:$0xff]
    %v234 = vld [vmem:[%s1 + $0x560] sm:$0xff]
    %v235 = vld [vmem:[%s1 + $0x568] sm:$0xff]
    %v236 = vld [vmem:[%s1 + $0x570] sm:$0xff]
    %v237 = vld [vmem:[%s1 + $0x578] sm:$0xff]
    %v238 = vld [vmem:[%s1 + $0x580] sm:$0xff]
    %v239 = vld [vmem:[%s1 + $0x588] sm:$0xff]
    %v240 = vld [vmem:[%s1 + $0x590] sm:$0xff]
    %v241 = vld [vmem:[%s1 + $0x598] sm:$0xff]
    %v242 = vld [vmem:[%s1 + $0x5a0] sm:$0xff]
    %v243 = vld [vmem:[%s1 + $0x5a8] sm:$0xff]
    %v244 = vld [vmem:[%s1 + $0x5b0] sm:$0xff]
    %v245 = vld [vmem:[%s1 + $0x5b8] sm:$0xff]
    %v246 = vld [vmem:[%s1 + $0x5c0] sm:$0xff]
    %v247 = vld [vmem:[%s1 + $0x5c8] sm:$0xff]
    %v248 = vld [vmem:[%s1 + $0x5d0] sm:$0xff]
    %v249 = vld [vmem:[%s1 + $0x5d8] sm:$0xff]
    %v250 = vld [vmem:[%s1 + $0x5e0] sm:$0xff]
    %v251 = vld [vmem:[%s1 + $0x5e8] sm:$0xff]
    %v252 = vld [vmem:[%s1 + $0x5f0] sm:$0xff]
    %v253 = vld [vmem:[%s1 + $0x5f8] sm:$0xff]
    %v254 = vld [vmem:[%s1 + $0x600] sm:$0xff]
    %v255 = vld [vmem:[%s1 + $0x608] sm:$0xff]
    %v256 = vld [vmem:[%s1 + $0x610] sm:$0xff]
    %v257 = vld [vmem:[%s1 + $0x618] sm:$0xff]
    %v258 = vld [vmem:[%s2] sm:$0xf]
    %v260 = vperm.slane %v258, 0
    %v261 = vperm.slane %v258, 1
    %v262 = vperm.slane %v258, 2
    %v263 = vperm.slane %v258, 3
    %v464 = vunpack.c.l.b16 %v62
    %v465 = vunpack.c.h.b16 %v62
    %v466 = vunpack.c.l.b16 %v63
    %v467 = vunpack.c.h.b16 %v63
    %v468 = vunpack.c.l.b16 %v64
    %v469 = vunpack.c.h.b16 %v64
    %v470 = vunpack.c.l.b16 %v65
    %v471 = vunpack.c.h.b16 %v65
    %v472 = vunpack.c.l.b16 %v66
    %v473 = vunpack.c.h.b16 %v66
    %v474 = vunpack.c.l.b16 %v67
    %v475 = vunpack.c.h.b16 %v67
    %v476 = vunpack.c.l.b16 %v68
    %v477 = vunpack.c.h.b16 %v68
    %v478 = vunpack.c.l.b16 %v69
    %v479 = vunpack.c.h.b16 %v69
    %v480 = vunpack.c.l.b16 %v70
    %v481 = vunpack.c.h.b16 %v70
    %v482 = vunpack.c.l.b16 %v71
    %v483 = vunpack.c.h.b16 %v71
    %v484 = vunpack.c.l.b16 %v72
    %v485 = vunpack.c.h.b16 %v72
    %v486 = vunpack.c.l.b16 %v73
    %v487 = vunpack.c.h.b16 %v73
    %v488 = vunpack.c.l.b16 %v74
    %v489 = vunpack.c.h.b16 %v74
    %v490 = vunpack.c.l.b16 %v75
    %v491 = vunpack.c.h.b16 %v75
    %v492 = vunpack.c.l.b16 %v76
    %v493 = vunpack.c.h.b16 %v76
    %v494 = vunpack.c.l.b16 %v77
    %v495 = vunpack.c.h.b16 %v77
    %v496 = vunpack.c.l.b16 %v78
    %v497 = vunpack.c.h.b16 %v78
    %v498 = vunpack.c.l.b16 %v79
    %v499 = vunpack.c.h.b16 %v79
    %v500 = vunpack.c.l.b16 %v80
    %v501 = vunpack.c.h.b16 %v80
    %v502 = vunpack.c.l.b16 %v81
    %v503 = vunpack.c.h.b16 %v81
    %v504 = vunpack.c.l.b16 %v82
    %v505 = vunpack.c.h.b16 %v82
    %v506 = vunpack.c.l.b16 %v83
    %v507 = vunpack.c.h.b16 %v83
    %v508 = vunpack.c.l.b16 %v84
    %v509 = vunpack.c.h.b16 %v84
    %v510 = vunpack.c.l.b16 %v85
    %v511 = vunpack.c.h.b16 %v85
    %v512 = vunpack.c.l.b16 %v86
    %v513 = vunpack.c.h.b16 %v86
    %v514 = vunpack.c.l.b16 %v87
    %v515 = vunpack.c.h.b16 %v87
    %v516 = vunpack.c.l.b16 %v88
    %v517 = vunpack.c.h.b16 %v88
    %v518 = vunpack.c.l.b16 %v89
    %v519 = vunpack.c.h.b16 %v89
    %v520 = vunpack.c.l.b16 %v90
    %v521 = vunpack.c.h.b16 %v90
    %v522 = vunpack.c.l.b16 %v91
    %v523 = vunpack.c.h.b16 %v91
    %v524 = vunpack.c.l.b16 %v92
    %v525 = vunpack.c.h.b16 %v92
    %v526 = vunpack.c.l.b16 %v93
    %v527 = vunpack.c.h.b16 %v93
    %v528 = vunpack.c.l.b16 %v94
    %v529 = vunpack.c.h.b16 %v94
    %v530 = vunpack.c.l.b16 %v95
    %v531 = vunpack.c.h.b16 %v95
    %v532 = vunpack.c.l.b16 %v96
    %v533 = vunpack.c.h.b16 %v96
    %v534 = vunpack.c.l.b16 %v97
    %v535 = vunpack.c.h.b16 %v97
    %v536 = vunpack.c.l.b16 %v98
    %v537 = vunpack.c.h.b16 %v98
    %v538 = vunpack.c.l.b16 %v99
    %v539 = vunpack.c.h.b16 %v99
    %v540 = vunpack.c.l.b16 %v100
    %v541 = vunpack.c.h.b16 %v100
    %v542 = vunpack.c.l.b16 %v101
    %v543 = vunpack.c.h.b16 %v101
    %v544 = vunpack.c.l.b16 %v102
    %v545 = vunpack.c.h.b16 %v102
    %v546 = vunpack.c.l.b16 %v103
    %v547 = vunpack.c.h.b16 %v103
    %v548 = vunpack.c.l.b16 %v104
    %v549 = vunpack.c.h.b16 %v104
    %v550 = vunpack.c.l.b16 %v105
    %v551 = vunpack.c.h.b16 %v105
    %v552 = vunpack.c.l.b16 %v106
    %v553 = vunpack.c.h.b16 %v106
    %v554 = vunpack.c.l.b16 %v107
    %v555 = vunpack.c.h.b16 %v107
    %v556 = vunpack.c.l.b16 %v108
    %v557 = vunpack.c.h.b16 %v108
    %v558 = vunpack.c.l.b16 %v109
    %v559 = vunpack.c.h.b16 %v109
    %v560 = vunpack.c.l.b16 %v110
    %v561 = vunpack.c.h.b16 %v110
    %v562 = vunpack.c.l.b16 %v111
    %v563 = vunpack.c.h.b16 %v111
    %v564 = vunpack.c.l.b16 %v112
    %v565 = vunpack.c.h.b16 %v112
    %v566 = vunpack.c.l.b16 %v113
    %v567 = vunpack.c.h.b16 %v113
    %v568 = vunpack.c.l.b16 %v114
    %v569 = vunpack.c.h.b16 %v114
    %v570 = vunpack.c.l.b16 %v115
    %v571 = vunpack.c.h.b16 %v115
    %v572 = vunpack.c.l.b16 %v116
    %v573 = vunpack.c.h.b16 %v116
    %v574 = vunpack.c.l.b16 %v117
    %v575 = vunpack.c.h.b16 %v117
    %v576 = vunpack.c.l.b16 %v118
    %v577 = vunpack.c.h.b16 %v118
    %v578 = vunpack.c.l.b16 %v119
    %v579 = vunpack.c.h.b16 %v119
    %v580 = vunpack.c.l.b16 %v120
    %v581 = vunpack.c.h.b16 %v120
    %v582 = vunpack.c.l.b16 %v121
    %v583 = vunpack.c.h.b16 %v121
    %v584 = vunpack.c.l.b16 %v122
    %v585 = vunpack.c.h.b16 %v122
    %v586 = vunpack.c.l.b16 %v123
    %v587 = vunpack.c.h.b16 %v123
    %v588 = vunpack.c.l.b16 %v124
    %v589 = vunpack.c.h.b16 %v124
    %v590 = vunpack.c.l.b16 %v125
    %v591 = vunpack.c.h.b16 %v125
    %v592 = vunpack.c.l.b16 %v126
    %v593 = vunpack.c.h.b16 %v126
    %v594 = vunpack.c.l.b16 %v127
    %v595 = vunpack.c.h.b16 %v127
    %v596 = vunpack.c.l.b16 %v128
    %v597 = vunpack.c.h.b16 %v128
    %v598 = vunpack.c.l.b16 %v129
    %v599 = vunpack.c.h.b16 %v129
    %v600 = vunpack.c.l.b16 %v130
    %v601 = vunpack.c.h.b16 %v130
    %v602 = vunpack.c.l.b16 %v131
    %v603 = vunpack.c.h.b16 %v131
    %v604 = vunpack.c.l.b16 %v132
    %v605 = vunpack.c.h.b16 %v132
    %v606 = vunpack.c.l.b16 %v133
    %v607 = vunpack.c.h.b16 %v133
    %v608 = vunpack.c.l.b16 %v134
    %v609 = vunpack.c.h.b16 %v134
    %v610 = vunpack.c.l.b16 %v135
    %v611 = vunpack.c.h.b16 %v135
    %v612 = vunpack.c.l.b16 %v136
    %v613 = vunpack.c.h.b16 %v136
    %v614 = vunpack.c.l.b16 %v137
    %v615 = vunpack.c.h.b16 %v137
    %v616 = vunpack.c.l.b16 %v138
    %v617 = vunpack.c.h.b16 %v138
    %v618 = vunpack.c.l.b16 %v139
    %v619 = vunpack.c.h.b16 %v139
    %v620 = vunpack.c.l.b16 %v140
    %v621 = vunpack.c.h.b16 %v140
    %v622 = vunpack.c.l.b16 %v141
    %v623 = vunpack.c.h.b16 %v141
    %v624 = vunpack.c.l.b16 %v142
    %v625 = vunpack.c.h.b16 %v142
    %v626 = vunpack.c.l.b16 %v143
    %v627 = vunpack.c.h.b16 %v143
    %v628 = vunpack.c.l.b16 %v144
    %v629 = vunpack.c.h.b16 %v144
    %v630 = vunpack.c.l.b16 %v145
    %v631 = vunpack.c.h.b16 %v145
    %v632 = vunpack.c.l.b16 %v146
    %v633 = vunpack.c.h.b16 %v146
    %v634 = vunpack.c.l.b16 %v147
    %v635 = vunpack.c.h.b16 %v147
    %v636 = vunpack.c.l.b16 %v148
    %v637 = vunpack.c.h.b16 %v148
    %v638 = vunpack.c.l.b16 %v149
    %v639 = vunpack.c.h.b16 %v149
    %v640 = vunpack.c.l.b16 %v150
    %v641 = vunpack.c.h.b16 %v150
    %v642 = vunpack.c.l.b16 %v151
    %v643 = vunpack.c.h.b16 %v151
    %v644 = vunpack.c.l.b16 %v152
    %v645 = vunpack.c.h.b16 %v152
    %v646 = vunpack.c.l.b16 %v153
    %v647 = vunpack.c.h.b16 %v153
    %v648 = vunpack.c.l.b16 %v154
    %v649 = vunpack.c.h.b16 %v154
    %v650 = vunpack.c.l.b16 %v155
    %v651 = vunpack.c.h.b16 %v155
    %v652 = vunpack.c.l.b16 %v156
    %v653 = vunpack.c.h.b16 %v156
    %v654 = vunpack.c.l.b16 %v157
    %v655 = vunpack.c.h.b16 %v157
    %v656 = vunpack.c.l.b16 %v158
    %v657 = vunpack.c.h.b16 %v158
    %v658 = vunpack.c.l.b16 %v159
    %v659 = vunpack.c.h.b16 %v159
    %v660 = vunpack.c.l.b16 %v160
    %v661 = vunpack.c.h.b16 %v160
    %v662 = vunpack.c.l.b16 %v161
    %v663 = vunpack.c.h.b16 %v161
    %v664 = vunpack.c.l.b16 %v162
    %v665 = vunpack.c.h.b16 %v162
    %v666 = vunpack.c.l.b16 %v163
    %v667 = vunpack.c.h.b16 %v163
    %v668 = vunpack.c.l.b16 %v164
    %v669 = vunpack.c.h.b16 %v164
    %v670 = vunpack.c.l.b16 %v165
    %v671 = vunpack.c.h.b16 %v165
    %v672 = vunpack.c.l.b16 %v166
    %v673 = vunpack.c.h.b16 %v166
    %v674 = vunpack.c.l.b16 %v167
    %v675 = vunpack.c.h.b16 %v167
    %v676 = vunpack.c.l.b16 %v168
    %v677 = vunpack.c.h.b16 %v168
    %v678 = vunpack.c.l.b16 %v169
    %v679 = vunpack.c.h.b16 %v169
    %v680 = vunpack.c.l.b16 %v170
    %v681 = vunpack.c.h.b16 %v170
    %v682 = vunpack.c.l.b16 %v171
    %v683 = vunpack.c.h.b16 %v171
    %v684 = vunpack.c.l.b16 %v172
    %v685 = vunpack.c.h.b16 %v172
    %v686 = vunpack.c.l.b16 %v173
    %v687 = vunpack.c.h.b16 %v173
    %v688 = vunpack.c.l.b16 %v174
    %v689 = vunpack.c.h.b16 %v174
    %v690 = vunpack.c.l.b16 %v175
    %v691 = vunpack.c.h.b16 %v175
    %v692 = vunpack.c.l.b16 %v176
    %v693 = vunpack.c.h.b16 %v176
    %v694 = vunpack.c.l.b16 %v177
    %v695 = vunpack.c.h.b16 %v177
    %v696 = vunpack.c.l.b16 %v178
    %v697 = vunpack.c.h.b16 %v178
    %v698 = vunpack.c.l.b16 %v179
    %v699 = vunpack.c.h.b16 %v179
    %v700 = vunpack.c.l.b16 %v180
    %v701 = vunpack.c.h.b16 %v180
    %v702 = vunpack.c.l.b16 %v181
    %v703 = vunpack.c.h.b16 %v181
    %v704 = vunpack.c.l.b16 %v182
    %v705 = vunpack.c.h.b16 %v182
    %v706 = vunpack.c.l.b16 %v183
    %v707 = vunpack.c.h.b16 %v183
    %v708 = vunpack.c.l.b16 %v184
    %v709 = vunpack.c.h.b16 %v184
    %v710 = vunpack.c.l.b16 %v185
    %v711 = vunpack.c.h.b16 %v185
    %v712 = vunpack.c.l.b16 %v186
    %v713 = vunpack.c.h.b16 %v186
    %v714 = vunpack.c.l.b16 %v187
    %v715 = vunpack.c.h.b16 %v187
    %v716 = vunpack.c.l.b16 %v188
    %v717 = vunpack.c.h.b16 %v188
    %v718 = vunpack.c.l.b16 %v189
    %v719 = vunpack.c.h.b16 %v189
    %v720 = vunpack.c.l.b16 %v190
    %v721 = vunpack.c.h.b16 %v190
    %v722 = vunpack.c.l.b16 %v191
    %v723 = vunpack.c.h.b16 %v191
    %v724 = vunpack.c.l.b16 %v192
    %v725 = vunpack.c.h.b16 %v192
    %v726 = vunpack.c.l.b16 %v193
    %v727 = vunpack.c.h.b16 %v193
    %v728 = vunpack.c.l.b16 %v194
    %v729 = vunpack.c.h.b16 %v194
    %v730 = vunpack.c.l.b16 %v195
    %v731 = vunpack.c.h.b16 %v195
    %v732 = vunpack.c.l.b16 %v196
    %v733 = vunpack.c.h.b16 %v196
    %v734 = vunpack.c.l.b16 %v197
    %v735 = vunpack.c.h.b16 %v197
    %v736 = vunpack.c.l.b16 %v198
    %v737 = vunpack.c.h.b16 %v198
    %v738 = vunpack.c.l.b16 %v199
    %v739 = vunpack.c.h.b16 %v199
    %v740 = vunpack.c.l.b16 %v200
    %v741 = vunpack.c.h.b16 %v200
    %v742 = vunpack.c.l.b16 %v201
    %v743 = vunpack.c.h.b16 %v201
    %v744 = vunpack.c.l.b16 %v202
    %v745 = vunpack.c.h.b16 %v202
    %v746 = vunpack.c.l.b16 %v203
    %v747 = vunpack.c.h.b16 %v203
    %v748 = vunpack.c.l.b16 %v204
    %v749 = vunpack.c.h.b16 %v204
    %v750 = vunpack.c.l.b16 %v205
    %v751 = vunpack.c.h.b16 %v205
    %v752 = vunpack.c.l.b16 %v206
    %v753 = vunpack.c.h.b16 %v206
    %v754 = vunpack.c.l.b16 %v207
    %v755 = vunpack.c.h.b16 %v207
    %v756 = vunpack.c.l.b16 %v208
    %v757 = vunpack.c.h.b16 %v208
    %v758 = vunpack.c.l.b16 %v209
    %v759 = vunpack.c.h.b16 %v209
    %v760 = vunpack.c.l.b16 %v210
    %v761 = vunpack.c.h.b16 %v210
    %v762 = vunpack.c.l.b16 %v211
    %v763 = vunpack.c.h.b16 %v211
    %v764 = vunpack.c.l.b16 %v212
    %v765 = vunpack.c.h.b16 %v212
    %v766 = vunpack.c.l.b16 %v213
    %v767 = vunpack.c.h.b16 %v213
    %v768 = vunpack.c.l.b16 %v214
    %v769 = vunpack.c.h.b16 %v214
    %v770 = vunpack.c.l.b16 %v215
    %v771 = vunpack.c.h.b16 %v215
    %v772 = vunpack.c.l.b16 %v216
    %v773 = vunpack.c.h.b16 %v216
    %v774 = vunpack.c.l.b16 %v217
    %v775 = vunpack.c.h.b16 %v217
    %v776 = vunpack.c.l.b16 %v218
    %v777 = vunpack.c.h.b16 %v218
    %v778 = vunpack.c.l.b16 %v219
    %v779 = vunpack.c.h.b16 %v219
    %v780 = vunpack.c.l.b16 %v220
    %v781 = vunpack.c.h.b16 %v220
    %v782 = vunpack.c.l.b16 %v221
    %v783 = vunpack.c.h.b16 %v221
    %v784 = vunpack.c.l.b16 %v222
    %v785 = vunpack.c.h.b16 %v222
    %v786 = vunpack.c.l.b16 %v223
    %v787 = vunpack.c.h.b16 %v223
    %v788 = vunpack.c.l.b16 %v224
    %v789 = vunpack.c.h.b16 %v224
    %v790 = vunpack.c.l.b16 %v225
    %v791 = vunpack.c.h.b16 %v225
    %v792 = vunpack.c.l.b16 %v226
    %v793 = vunpack.c.h.b16 %v226
    %v794 = vunpack.c.l.b16 %v227
    %v795 = vunpack.c.h.b16 %v227
    %v796 = vunpack.c.l.b16 %v228
    %v797 = vunpack.c.h.b16 %v228
    %v798 = vunpack.c.l.b16 %v229
    %v799 = vunpack.c.h.b16 %v229
    %v800 = vunpack.c.l.b16 %v230
    %v801 = vunpack.c.h.b16 %v230
    %v802 = vunpack.c.l.b16 %v231
    %v803 = vunpack.c.h.b16 %v231
    %v804 = vunpack.c.l.b16 %v232
    %v805 = vunpack.c.h.b16 %v232
    %v806 = vunpack.c.l.b16 %v233
    %v807 = vunpack.c.h.b16 %v233
    %v808 = vunpack.c.l.b16 %v234
    %v809 = vunpack.c.h.b16 %v234
    %v810 = vunpack.c.l.b16 %v235
    %v811 = vunpack.c.h.b16 %v235
    %v812 = vunpack.c.l.b16 %v236
    %v813 = vunpack.c.h.b16 %v236
    %v814 = vunpack.c.l.b16 %v237
    %v815 = vunpack.c.h.b16 %v237
    %v816 = vunpack.c.l.b16 %v238
    %v817 = vunpack.c.h.b16 %v238
    %v818 = vunpack.c.l.b16 %v239
    %v819 = vunpack.c.h.b16 %v239
    %v820 = vunpack.c.l.b16 %v240
    %v821 = vunpack.c.h.b16 %v240
    %v822 = vunpack.c.l.b16 %v241
    %v823 = vunpack.c.h.b16 %v241
    %v824 = vunpack.c.l.b16 %v242
    %v825 = vunpack.c.h.b16 %v242
    %v826 = vunpack.c.l.b16 %v243
    %v827 = vunpack.c.h.b16 %v243
    %v828 = vunpack.c.l.b16 %v244
    %v829 = vunpack.c.h.b16 %v244
    %v830 = vunpack.c.l.b16 %v245
    %v831 = vunpack.c.h.b16 %v245
    %v832 = vunpack.c.l.b16 %v246
    %v833 = vunpack.c.h.b16 %v246
    %v834 = vunpack.c.l.b16 %v247
    %v835 = vunpack.c.h.b16 %v247
    %v836 = vunpack.c.l.b16 %v248
    %v837 = vunpack.c.h.b16 %v248
    %v838 = vunpack.c.l.b16 %v249
    %v839 = vunpack.c.h.b16 %v249
    %v840 = vunpack.c.l.b16 %v250
    %v841 = vunpack.c.h.b16 %v250
    %v842 = vunpack.c.l.b16 %v251
    %v843 = vunpack.c.h.b16 %v251
    %v844 = vunpack.c.l.b16 %v252
    %v845 = vunpack.c.h.b16 %v252
    %v846 = vunpack.c.l.b16 %v253
    %v847 = vunpack.c.h.b16 %v253
    %v848 = vunpack.c.l.b16 %v254
    %v849 = vunpack.c.h.b16 %v254
    %v850 = vunpack.c.l.b16 %v255
    %v851 = vunpack.c.h.b16 %v255
    %v852 = vunpack.c.l.b16 %v256
    %v853 = vunpack.c.h.b16 %v256
    %v854 = vunpack.c.l.b16 %v257
    %v855 = vunpack.c.h.b16 %v257
    %v856 = vpack.c.b16 %v468, %v464
    %v857 = vpack.c.b16 %v469, %v465
    %v858 = vpack.c.b16 %v470, %v466
    %v859 = vpack.c.b16 %v471, %v467
    %v860 = vpack.c.b16 %v476, %v472
    %v861 = vpack.c.b16 %v477, %v473
    %v862 = vpack.c.b16 %v478, %v474
    %v863 = vpack.c.b16 %v479, %v475
    %v864 = vpack.c.b16 %v484, %v480
    %v865 = vpack.c.b16 %v485, %v481
    %v866 = vpack.c.b16 %v486, %v482
    %v867 = vpack.c.b16 %v487, %v483
    %v868 = vpack.c.b16 %v492, %v488
    %v869 = vpack.c.b16 %v493, %v489
    %v870 = vpack.c.b16 %v494, %v490
    %v871 = vpack.c.b16 %v495, %v491
    %v872 = vpack.c.b16 %v500, %v496
    %v873 = vpack.c.b16 %v501, %v497
    %v874 = vpack.c.b16 %v502, %v498
    %v875 = vpack.c.b16 %v503, %v499
    %v876 = vpack.c.b16 %v508, %v504
    %v877 = vpack.c.b16 %v509, %v505
    %v878 = vpack.c.b16 %v510, %v506
    %v879 = vpack.c.b16 %v511, %v507
    %v880 = vpack.c.b16 %v516, %v512
    %v881 = vpack.c.b16 %v517, %v513
    %v882 = vpack.c.b16 %v518, %v514
    %v883 = vpack.c.b16 %v519, %v515
    %v884 = vpack.c.b16 %v524, %v520
    %v885 = vpack.c.b16 %v525, %v521
    %v886 = vpack.c.b16 %v526, %v522
    %v887 = vpack.c.b16 %v527, %v523
    %v888 = vpack.c.b16 %v532, %v528
    %v889 = vpack.c.b16 %v533, %v529
    %v890 = vpack.c.b16 %v534, %v530
    %v891 = vpack.c.b16 %v535, %v531
    %v892 = vpack.c.b16 %v540, %v536
    %v893 = vpack.c.b16 %v541, %v537
    %v894 = vpack.c.b16 %v542, %v538
    %v895 = vpack.c.b16 %v543, %v539
    %v896 = vpack.c.b16 %v548, %v544
    %v897 = vpack.c.b16 %v549, %v545
    %v898 = vpack.c.b16 %v550, %v546
    %v899 = vpack.c.b16 %v551, %v547
    %v900 = vpack.c.b16 %v556, %v552
    %v901 = vpack.c.b16 %v557, %v553
    %v902 = vpack.c.b16 %v558, %v554
    %v903 = vpack.c.b16 %v559, %v555
    %v904 = vpack.c.b16 %v564, %v560
    %v905 = vpack.c.b16 %v565, %v561
    %v906 = vpack.c.b16 %v566, %v562
    %v907 = vpack.c.b16 %v567, %v563
    %v908 = vpack.c.b16 %v572, %v568
    %v909 = vpack.c.b16 %v573, %v569
    %v910 = vpack.c.b16 %v574, %v570
    %v911 = vpack.c.b16 %v575, %v571
    %v912 = vpack.c.b16 %v580, %v576
    %v913 = vpack.c.b16 %v581, %v577
    %v914 = vpack.c.b16 %v582, %v578
    %v915 = vpack.c.b16 %v583, %v579
    %v916 = vpack.c.b16 %v588, %v584
    %v917 = vpack.c.b16 %v589, %v585
    %v918 = vpack.c.b16 %v590, %v586
    %v919 = vpack.c.b16 %v591, %v587
    %v920 = vpack.c.b16 %v596, %v592
    %v921 = vpack.c.b16 %v597, %v593
    %v922 = vpack.c.b16 %v598, %v594
    %v923 = vpack.c.b16 %v599, %v595
    %v924 = vpack.c.b16 %v604, %v600
    %v925 = vpack.c.b16 %v605, %v601
    %v926 = vpack.c.b16 %v606, %v602
    %v927 = vpack.c.b16 %v607, %v603
    %v928 = vpack.c.b16 %v612, %v608
    %v929 = vpack.c.b16 %v613, %v609
    %v930 = vpack.c.b16 %v614, %v610
    %v931 = vpack.c.b16 %v615, %v611
    %v932 = vpack.c.b16 %v620, %v616
    %v933 = vpack.c.b16 %v621, %v617
    %v934 = vpack.c.b16 %v622, %v618
    %v935 = vpack.c.b16 %v623, %v619
    %v936 = vpack.c.b16 %v628, %v624
    %v937 = vpack.c.b16 %v629, %v625
    %v938 = vpack.c.b16 %v630, %v626
    %v939 = vpack.c.b16 %v631, %v627
    %v940 = vpack.c.b16 %v636, %v632
    %v941 = vpack.c.b16 %v637, %v633
    %v942 = vpack.c.b16 %v638, %v634
    %v943 = vpack.c.b16 %v639, %v635
    %v944 = vpack.c.b16 %v644, %v640
    %v945 = vpack.c.b16 %v645, %v641
    %v946 = vpack.c.b16 %v646, %v642
    %v947 = vpack.c.b16 %v647, %v643
    %v948 = vpack.c.b16 %v652, %v648
    %v949 = vpack.c.b16 %v653, %v649
    %v950 = vpack.c.b16 %v654, %v650
    %v951 = vpack.c.b16 %v655, %v651
    %v952 = vpack.c.b16 %v660, %v656
    %v953 = vpack.c.b16 %v661, %v657
    %v954 = vpack.c.b16 %v662, %v658
    %v955 = vpack.c.b16 %v663, %v659
    %v956 = vpack.c.b16 %v668, %v664
    %v957 = vpack.c.b16 %v669, %v665
    %v958 = vpack.c.b16 %v670, %v666
    %v959 = vpack.c.b16 %v671, %v667
    %v960 = vpack.c.b16 %v676, %v672
    %v961 = vpack.c.b16 %v677, %v673
    %v962 = vpack.c.b16 %v678, %v674
    %v963 = vpack.c.b16 %v679, %v675
    %v964 = vpack.c.b16 %v684, %v680
    %v965 = vpack.c.b16 %v685, %v681
    %v966 = vpack.c.b16 %v686, %v682
    %v967 = vpack.c.b16 %v687, %v683
    %v968 = vpack.c.b16 %v692, %v688
    %v969 = vpack.c.b16 %v693, %v689
    %v970 = vpack.c.b16 %v694, %v690
    %v971 = vpack.c.b16 %v695, %v691
    %v972 = vpack.c.b16 %v700, %v696
    %v973 = vpack.c.b16 %v701, %v697
    %v974 = vpack.c.b16 %v702, %v698
    %v975 = vpack.c.b16 %v703, %v699
    %v976 = vpack.c.b16 %v708, %v704
    %v977 = vpack.c.b16 %v709, %v705
    %v978 = vpack.c.b16 %v710, %v706
    %v979 = vpack.c.b16 %v711, %v707
    %v980 = vpack.c.b16 %v716, %v712
    %v981 = vpack.c.b16 %v717, %v713
    %v982 = vpack.c.b16 %v718, %v714
    %v983 = vpack.c.b16 %v719, %v715
    %v984 = vpack.c.b16 %v724, %v720
    %v985 = vpack.c.b16 %v725, %v721
    %v986 = vpack.c.b16 %v726, %v722
    %v987 = vpack.c.b16 %v727, %v723
    %v988 = vpack.c.b16 %v732, %v728
    %v989 = vpack.c.b16 %v733, %v729
    %v990 = vpack.c.b16 %v734, %v730
    %v991 = vpack.c.b16 %v735, %v731
    %v992 = vpack.c.b16 %v740, %v736
    %v993 = vpack.c.b16 %v741, %v737
    %v994 = vpack.c.b16 %v742, %v738
    %v995 = vpack.c.b16 %v743, %v739
    %v996 = vpack.c.b16 %v748, %v744
    %v997 = vpack.c.b16 %v749, %v745
    %v998 = vpack.c.b16 %v750, %v746
    %v999 = vpack.c.b16 %v751, %v747
    %v1000 = vpack.c.b16 %v756, %v752
    %v1001 = vpack.c.b16 %v757, %v753
    %v1002 = vpack.c.b16 %v758, %v754
    %v1003 = vpack.c.b16 %v759, %v755
    %v1004 = vpack.c.b16 %v764, %v760
    %v1005 = vpack.c.b16 %v765, %v761
    %v1006 = vpack.c.b16 %v766, %v762
    %v1007 = vpack.c.b16 %v767, %v763
    %v1008 = vpack.c.b16 %v772, %v768
    %v1009 = vpack.c.b16 %v773, %v769
    %v1010 = vpack.c.b16 %v774, %v770
    %v1011 = vpack.c.b16 %v775, %v771
    %v1012 = vpack.c.b16 %v780, %v776
    %v1013 = vpack.c.b16 %v781, %v777
    %v1014 = vpack.c.b16 %v782, %v778
    %v1015 = vpack.c.b16 %v783, %v779
    %v1016 = vpack.c.b16 %v788, %v784
    %v1017 = vpack.c.b16 %v789, %v785
    %v1018 = vpack.c.b16 %v790, %v786
    %v1019 = vpack.c.b16 %v791, %v787
    %v1020 = vpack.c.b16 %v796, %v792
    %v1021 = vpack.c.b16 %v797, %v793
    %v1022 = vpack.c.b16 %v798, %v794
    %v1023 = vpack.c.b16 %v799, %v795
    %v1024 = vpack.c.b16 %v804, %v800
    %v1025 = vpack.c.b16 %v805, %v801
    %v1026 = vpack.c.b16 %v806, %v802
    %v1027 = vpack.c.b16 %v807, %v803
    %v1028 = vpack.c.b16 %v812, %v808
    %v1029 = vpack.c.b16 %v813, %v809
    %v1030 = vpack.c.b16 %v814, %v810
    %v1031 = vpack.c.b16 %v815, %v811
    %v1032 = vpack.c.b16 %v820, %v816
    %v1033 = vpack.c.b16 %v821, %v817
    %v1034 = vpack.c.b16 %v822, %v818
    %v1035 = vpack.c.b16 %v823, %v819
    %v1036 = vpack.c.b16 %v828, %v824
    %v1037 = vpack.c.b16 %v829, %v825
    %v1038 = vpack.c.b16 %v830, %v826
    %v1039 = vpack.c.b16 %v831, %v827
    %v1040 = vpack.c.b16 %v836, %v832
    %v1041 = vpack.c.b16 %v837, %v833
    %v1042 = vpack.c.b16 %v838, %v834
    %v1043 = vpack.c.b16 %v839, %v835
    %v1044 = vpack.c.b16 %v844, %v840
    %v1045 = vpack.c.b16 %v845, %v841
    %v1046 = vpack.c.b16 %v846, %v842
    %v1047 = vpack.c.b16 %v847, %v843
    %v1048 = vpack.c.b16 %v852, %v848
    %v1049 = vpack.c.b16 %v853, %v849
    %v1050 = vpack.c.b16 %v854, %v850
    %v1051 = vpack.c.b16 %v855, %v851
    %vm1248 = vcmask 130048
    %v1250 = vsel %vm1248, %v61, 0
    %1252 = vmatpush.bf16.msra.mxu0 %v884
    %1253 = vmatpush.bf16.msra.mxu0 %v880
    %1254 = vmatpush.bf16.msra.mxu0 %v876
    %1255 = vmatpush.bf16.msra.mxu0 %v872
    %1256 = vmatpush.bf16.msra.mxu0 %v868
    %1257 = vmatpush.bf16.msra.mxu0 %v864
    %1258 = vmatpush.bf16.msra.mxu0 %v860
    %1259 = vmatpush.bf16.msra.mxu0 %v856
    %1260 = vmatmul.bf16.gmra.mxu0 %v55
    %v1261 = vpop.f32.mrf.mxu0
    %v1262 = vadd.f32 %v260, %v1261
    %v1263 = vpop.f32.mrf.mxu0
    %v1264 = vadd.f32 %v260, %v1263
    %1265 = vdwg.mxu0
    %1266 = vmatpush.bf16.msra.mxu0 %v916
    %1267 = vmatpush.bf16.msra.mxu0 %v912
    %1268 = vmatpush.bf16.msra.mxu0 %v908
    %1269 = vmatpush.bf16.msra.mxu0 %v904
    %1270 = vmatpush.bf16.msra.mxu0 %v900
    %1271 = vmatpush.bf16.msra.mxu0 %v896
    %1272 = vmatpush.bf16.msra.mxu0 %v892
    %1273 = vmatpush.bf16.msra.mxu0 %v888
    %1274 = vmatmul.bf16.gmra.mxu0 %v56
    %v1275 = vpop.f32.mrf.mxu0
    %v1276 = vadd.f32 %v1262, %v1275
    %v1277 = vpop.f32.mrf.mxu0
    %v1278 = vadd.f32 %v1264, %v1277
    %1279 = vdwg.mxu0
    %1280 = vmatpush.bf16.msra.mxu0 %v948
    %1281 = vmatpush.bf16.msra.mxu0 %v944
    %1282 = vmatpush.bf16.msra.mxu0 %v940
    %1283 = vmatpush.bf16.msra.mxu0 %v936
    %1284 = vmatpush.bf16.msra.mxu0 %v932
    %1285 = vmatpush.bf16.msra.mxu0 %v928
    %1286 = vmatpush.bf16.msra.mxu0 %v924
    %1287 = vmatpush.bf16.msra.mxu0 %v920
    %1288 = vmatmul.bf16.gmra.mxu0 %v57
    %v1289 = vpop.f32.mrf.mxu0
    %v1290 = vadd.f32 %v1276, %v1289
    %v1291 = vpop.f32.mrf.mxu0
    %v1292 = vadd.f32 %v1278, %v1291
    %1293 = vdwg.mxu0
    %1294 = vmatpush.bf16.msra.mxu0 %v980
    %1295 = vmatpush.bf16.msra.mxu0 %v976
    %1296 = vmatpush.bf16.msra.mxu0 %v972
    %1297 = vmatpush.bf16.msra.mxu0 %v968
    %1298 = vmatpush.bf16.msra.mxu0 %v964
    %1299 = vmatpush.bf16.msra.mxu0 %v960
    %1300 = vmatpush.bf16.msra.mxu0 %v956
    %1301 = vmatpush.bf16.msra.mxu0 %v952
    %1302 = vmatmul.bf16.gmra.mxu0 %v58
    %v1303 = vpop.f32.mrf.mxu0
    %v1304 = vadd.f32 %v1290, %v1303
    %v1305 = vpop.f32.mrf.mxu0
    %v1306 = vadd.f32 %v1292, %v1305
    %1307 = vdwg.mxu0
    %1308 = vmatpush.bf16.msra.mxu0 %v1012
    %1309 = vmatpush.bf16.msra.mxu0 %v1008
    %1310 = vmatpush.bf16.msra.mxu0 %v1004
    %1311 = vmatpush.bf16.msra.mxu0 %v1000
    %1312 = vmatpush.bf16.msra.mxu0 %v996
    %1313 = vmatpush.bf16.msra.mxu0 %v992
    %1314 = vmatpush.bf16.msra.mxu0 %v988
    %1315 = vmatpush.bf16.msra.mxu0 %v984
    %1316 = vmatmul.bf16.gmra.mxu0 %v59
    %v1317 = vpop.f32.mrf.mxu0
    %v1318 = vadd.f32 %v1304, %v1317
    %v1319 = vpop.f32.mrf.mxu0
    %v1320 = vadd.f32 %v1306, %v1319
    %1321 = vdwg.mxu0
    %1322 = vmatpush.bf16.msra.mxu0 %v1044
    %1323 = vmatpush.bf16.msra.mxu0 %v1040
    %1324 = vmatpush.bf16.msra.mxu0 %v1036
    %1325 = vmatpush.bf16.msra.mxu0 %v1032
    %1326 = vmatpush.bf16.msra.mxu0 %v1028
    %1327 = vmatpush.bf16.msra.mxu0 %v1024
    %1328 = vmatpush.bf16.msra.mxu0 %v1020
    %1329 = vmatpush.bf16.msra.mxu0 %v1016
    %1330 = vmatmul.bf16.gmra.mxu0 %v60
    %v1331 = vpop.f32.mrf.mxu0
    %v1332 = vadd.f32 %v1318, %v1331
    %v1333 = vpop.f32.mrf.mxu0
    %v1334 = vadd.f32 %v1320, %v1333
    %1335 = vdwg.mxu0
    %1336 = vmatpush.bf16.msra.mxu0 0
    %1337 = vmatpush.bf16.msra.mxu0 0
    %1338 = vmatpush.bf16.msra.mxu0 0
    %1339 = vmatpush.bf16.msra.mxu0 0
    %1340 = vmatpush.bf16.msra.mxu0 0
    %1341 = vmatpush.bf16.msra.mxu0 0
    %1342 = vmatpush.bf16.msra.mxu0 0
    %1343 = vmatpush.bf16.msra.mxu0 %v1048
    %1344 = vmatmul.bf16.gmra.mxu0 %v1250
    %v1345 = vpop.f32.mrf.mxu0
    %v1346 = vadd.f32 %v1332, %v1345
    %v1347 = vpop.f32.mrf.mxu0
    %v1348 = vadd.f32 %v1334, %v1347
    %1349 = vdwg.mxu0
    %1350 = vmatpush.bf16.msra.mxu0 %v885
    %1351 = vmatpush.bf16.msra.mxu0 %v881
    %1352 = vmatpush.bf16.msra.mxu0 %v877
    %1353 = vmatpush.bf16.msra.mxu0 %v873
    %1354 = vmatpush.bf16.msra.mxu0 %v869
    %1355 = vmatpush.bf16.msra.mxu0 %v865
    %1356 = vmatpush.bf16.msra.mxu0 %v861
    %1357 = vmatpush.bf16.msra.mxu0 %v857
    %1358 = vmatmul.bf16.gmra.mxu0 %v55
    %v1359 = vpop.f32.mrf.mxu0
    %v1360 = vadd.f32 %v261, %v1359
    %v1361 = vpop.f32.mrf.mxu0
    %v1362 = vadd.f32 %v261, %v1361
    %1363 = vdwg.mxu0
    %1364 = vmatpush.bf16.msra.mxu0 %v917
    %1365 = vmatpush.bf16.msra.mxu0 %v913
    %1366 = vmatpush.bf16.msra.mxu0 %v909
    %1367 = vmatpush.bf16.msra.mxu0 %v905
    %1368 = vmatpush.bf16.msra.mxu0 %v901
    %1369 = vmatpush.bf16.msra.mxu0 %v897
    %1370 = vmatpush.bf16.msra.mxu0 %v893
    %1371 = vmatpush.bf16.msra.mxu0 %v889
    %1372 = vmatmul.bf16.gmra.mxu0 %v56
    %v1373 = vpop.f32.mrf.mxu0
    %v1374 = vadd.f32 %v1360, %v1373
    %v1375 = vpop.f32.mrf.mxu0
    %v1376 = vadd.f32 %v1362, %v1375
    %1377 = vdwg.mxu0
    %1378 = vmatpush.bf16.msra.mxu0 %v949
    %1379 = vmatpush.bf16.msra.mxu0 %v945
    %1380 = vmatpush.bf16.msra.mxu0 %v941
    %1381 = vmatpush.bf16.msra.mxu0 %v937
    %1382 = vmatpush.bf16.msra.mxu0 %v933
    %1383 = vmatpush.bf16.msra.mxu0 %v929
    %1384 = vmatpush.bf16.msra.mxu0 %v925
    %1385 = vmatpush.bf16.msra.mxu0 %v921
    %1386 = vmatmul.bf16.gmra.mxu0 %v57
    %v1387 = vpop.f32.mrf.mxu0
    %v1388 = vadd.f32 %v1374, %v1387
    %v1389 = vpop.f32.mrf.mxu0
    %v1390 = vadd.f32 %v1376, %v1389
    %1391 = vdwg.mxu0
    %1392 = vmatpush.bf16.msra.mxu0 %v981
    %1393 = vmatpush.bf16.msra.mxu0 %v977
    %1394 = vmatpush.bf16.msra.mxu0 %v973
    %1395 = vmatpush.bf16.msra.mxu0 %v969
    %1396 = vmatpush.bf16.msra.mxu0 %v965
    %1397 = vmatpush.bf16.msra.mxu0 %v961
    %1398 = vmatpush.bf16.msra.mxu0 %v957
    %1399 = vmatpush.bf16.msra.mxu0 %v953
    %1400 = vmatmul.bf16.gmra.mxu0 %v58
    %v1401 = vpop.f32.mrf.mxu0
    %v1402 = vadd.f32 %v1388, %v1401
    %v1403 = vpop.f32.mrf.mxu0
    %v1404 = vadd.f32 %v1390, %v1403
    %1405 = vdwg.mxu0
    %1406 = vmatpush.bf16.msra.mxu0 %v1013
    %1407 = vmatpush.bf16.msra.mxu0 %v1009
    %1408 = vmatpush.bf16.msra.mxu0 %v1005
    %1409 = vmatpush.bf16.msra.mxu0 %v1001
    %1410 = vmatpush.bf16.msra.mxu0 %v997
    %1411 = vmatpush.bf16.msra.mxu0 %v993
    %1412 = vmatpush.bf16.msra.mxu0 %v989
    %1413 = vmatpush.bf16.msra.mxu0 %v985
    %1414 = vmatmul.bf16.gmra.mxu0 %v59
    %v1415 = vpop.f32.mrf.mxu0
    %v1416 = vadd.f32 %v1402, %v1415
    %v1417 = vpop.f32.mrf.mxu0
    %v1418 = vadd.f32 %v1404, %v1417
    %1419 = vdwg.mxu0
    %1420 = vmatpush.bf16.msra.mxu0 %v1045
    %1421 = vmatpush.bf16.msra.mxu0 %v1041
    %1422 = vmatpush.bf16.msra.mxu0 %v1037
    %1423 = vmatpush.bf16.msra.mxu0 %v1033
    %1424 = vmatpush.bf16.msra.mxu0 %v1029
    %1425 = vmatpush.bf16.msra.mxu0 %v1025
    %1426 = vmatpush.bf16.msra.mxu0 %v1021
    %1427 = vmatpush.bf16.msra.mxu0 %v1017
    %1428 = vmatmul.bf16.gmra.mxu0 %v60
    %v1429 = vpop.f32.mrf.mxu0
    %v1430 = vadd.f32 %v1416, %v1429
    %v1431 = vpop.f32.mrf.mxu0
    %v1432 = vadd.f32 %v1418, %v1431
    %1433 = vdwg.mxu0
    %1434 = vmatpush.bf16.msra.mxu0 0
    %1435 = vmatpush.bf16.msra.mxu0 0
    %1436 = vmatpush.bf16.msra.mxu0 0
    %1437 = vmatpush.bf16.msra.mxu0 0
    %1438 = vmatpush.bf16.msra.mxu0 0
    %1439 = vmatpush.bf16.msra.mxu0 0
    %1440 = vmatpush.bf16.msra.mxu0 0
    %1441 = vmatpush.bf16.msra.mxu0 %v1049
    %1442 = vmatmul.bf16.gmra.mxu0 %v1250
    %v1443 = vpop.f32.mrf.mxu0
    %v1444 = vadd.f32 %v1430, %v1443
    %v1445 = vpop.f32.mrf.mxu0
    %v1446 = vadd.f32 %v1432, %v1445
    %1447 = vdwg.mxu0
    %1448 = vmatpush.bf16.msra.mxu0 %v886
    %1449 = vmatpush.bf16.msra.mxu0 %v882
    %1450 = vmatpush.bf16.msra.mxu0 %v878
    %1451 = vmatpush.bf16.msra.mxu0 %v874
    %1452 = vmatpush.bf16.msra.mxu0 %v870
    %1453 = vmatpush.bf16.msra.mxu0 %v866
    %1454 = vmatpush.bf16.msra.mxu0 %v862
    %1455 = vmatpush.bf16.msra.mxu0 %v858
    %1456 = vmatmul.bf16.gmra.mxu0 %v55
    %v1457 = vpop.f32.mrf.mxu0
    %v1458 = vadd.f32 %v262, %v1457
    %v1459 = vpop.f32.mrf.mxu0
    %v1460 = vadd.f32 %v262, %v1459
    %1461 = vdwg.mxu0
    %1462 = vmatpush.bf16.msra.mxu0 %v918
    %1463 = vmatpush.bf16.msra.mxu0 %v914
    %1464 = vmatpush.bf16.msra.mxu0 %v910
    %1465 = vmatpush.bf16.msra.mxu0 %v906
    %1466 = vmatpush.bf16.msra.mxu0 %v902
    %1467 = vmatpush.bf16.msra.mxu0 %v898
    %1468 = vmatpush.bf16.msra.mxu0 %v894
    %1469 = vmatpush.bf16.msra.mxu0 %v890
    %1470 = vmatmul.bf16.gmra.mxu0 %v56
    %v1471 = vpop.f32.mrf.mxu0
    %v1472 = vadd.f32 %v1458, %v1471
    %v1473 = vpop.f32.mrf.mxu0
    %v1474 = vadd.f32 %v1460, %v1473
    %1475 = vdwg.mxu0
    %1476 = vmatpush.bf16.msra.mxu0 %v950
    %1477 = vmatpush.bf16.msra.mxu0 %v946
    %1478 = vmatpush.bf16.msra.mxu0 %v942
    %1479 = vmatpush.bf16.msra.mxu0 %v938
    %1480 = vmatpush.bf16.msra.mxu0 %v934
    %1481 = vmatpush.bf16.msra.mxu0 %v930
    %1482 = vmatpush.bf16.msra.mxu0 %v926
    %1483 = vmatpush.bf16.msra.mxu0 %v922
    %1484 = vmatmul.bf16.gmra.mxu0 %v57
    %v1485 = vpop.f32.mrf.mxu0
    %v1486 = vadd.f32 %v1472, %v1485
    %v1487 = vpop.f32.mrf.mxu0
    %v1488 = vadd.f32 %v1474, %v1487
    %1489 = vdwg.mxu0
    %1490 = vmatpush.bf16.msra.mxu0 %v982
    %1491 = vmatpush.bf16.msra.mxu0 %v978
    %1492 = vmatpush.bf16.msra.mxu0 %v974
    %1493 = vmatpush.bf16.msra.mxu0 %v970
    %1494 = vmatpush.bf16.msra.mxu0 %v966
    %1495 = vmatpush.bf16.msra.mxu0 %v962
    %1496 = vmatpush.bf16.msra.mxu0 %v958
    %1497 = vmatpush.bf16.msra.mxu0 %v954
    %1498 = vmatmul.bf16.gmra.mxu0 %v58
    %v1499 = vpop.f32.mrf.mxu0
    %v1500 = vadd.f32 %v1486, %v1499
    %v1501 = vpop.f32.mrf.mxu0
    %v1502 = vadd.f32 %v1488, %v1501
    %1503 = vdwg.mxu0
    %1504 = vmatpush.bf16.msra.mxu0 %v1014
    %1505 = vmatpush.bf16.msra.mxu0 %v1010
    %1506 = vmatpush.bf16.msra.mxu0 %v1006
    %1507 = vmatpush.bf16.msra.mxu0 %v1002
    %1508 = vmatpush.bf16.msra.mxu0 %v998
    %1509 = vmatpush.bf16.msra.mxu0 %v994
    %1510 = vmatpush.bf16.msra.mxu0 %v990
    %1511 = vmatpush.bf16.msra.mxu0 %v986
    %1512 = vmatmul.bf16.gmra.mxu0 %v59
    %v1513 = vpop.f32.mrf.mxu0
    %v1514 = vadd.f32 %v1500, %v1513
    %v1515 = vpop.f32.mrf.mxu0
    %v1516 = vadd.f32 %v1502, %v1515
    %1517 = vdwg.mxu0
    %1518 = vmatpush.bf16.msra.mxu0 %v1046
    %1519 = vmatpush.bf16.msra.mxu0 %v1042
    %1520 = vmatpush.bf16.msra.mxu0 %v1038
    %1521 = vmatpush.bf16.msra.mxu0 %v1034
    %1522 = vmatpush.bf16.msra.mxu0 %v1030
    %1523 = vmatpush.bf16.msra.mxu0 %v1026
    %1524 = vmatpush.bf16.msra.mxu0 %v1022
    %1525 = vmatpush.bf16.msra.mxu0 %v1018
    %1526 = vmatmul.bf16.gmra.mxu0 %v60
    %v1527 = vpop.f32.mrf.mxu0
    %v1528 = vadd.f32 %v1514, %v1527
    %v1529 = vpop.f32.mrf.mxu0
    %v1530 = vadd.f32 %v1516, %v1529
    %1531 = vdwg.mxu0
    %1532 = vmatpush.bf16.msra.mxu0 0
    %1533 = vmatpush.bf16.msra.mxu0 0
    %1534 = vmatpush.bf16.msra.mxu0 0
    %1535 = vmatpush.bf16.msra.mxu0 0
    %1536 = vmatpush.bf16.msra.mxu0 0
    %1537 = vmatpush.bf16.msra.mxu0 0
    %1538 = vmatpush.bf16.msra.mxu0 0
    %1539 = vmatpush.bf16.msra.mxu0 %v1050
    %1540 = vmatmul.bf16.gmra.mxu0 %v1250
    %v1541 = vpop.f32.mrf.mxu0
    %v1542 = vadd.f32 %v1528, %v1541
    %v1543 = vpop.f32.mrf.mxu0
    %v1544 = vadd.f32 %v1530, %v1543
    %1545 = vdwg.mxu0
    %1546 = vmatpush.bf16.msra.mxu0 %v887
    %1547 = vmatpush.bf16.msra.mxu0 %v883
    %1548 = vmatpush.bf16.msra.mxu0 %v879
    %1549 = vmatpush.bf16.msra.mxu0 %v875
    %1550 = vmatpush.bf16.msra.mxu0 %v871
    %1551 = vmatpush.bf16.msra.mxu0 %v867
    %1552 = vmatpush.bf16.msra.mxu0 %v863
    %1553 = vmatpush.bf16.msra.mxu0 %v859
    %1554 = vmatmul.bf16.gmra.mxu0 %v55
    %v1555 = vpop.f32.mrf.mxu0
    %v1556 = vadd.f32 %v263, %v1555
    %v1557 = vpop.f32.mrf.mxu0
    %v1558 = vadd.f32 %v263, %v1557
    %1559 = vdwg.mxu0
    %1560 = vmatpush.bf16.msra.mxu0 %v919
    %1561 = vmatpush.bf16.msra.mxu0 %v915
    %1562 = vmatpush.bf16.msra.mxu0 %v911
    %1563 = vmatpush.bf16.msra.mxu0 %v907
    %1564 = vmatpush.bf16.msra.mxu0 %v903
    %1565 = vmatpush.bf16.msra.mxu0 %v899
    %1566 = vmatpush.bf16.msra.mxu0 %v895
    %1567 = vmatpush.bf16.msra.mxu0 %v891
    %1568 = vmatmul.bf16.gmra.mxu0 %v56
    %v1569 = vpop.f32.mrf.mxu0
    %v1570 = vadd.f32 %v1556, %v1569
    %v1571 = vpop.f32.mrf.mxu0
    %v1572 = vadd.f32 %v1558, %v1571
    %1573 = vdwg.mxu0
    %1574 = vmatpush.bf16.msra.mxu0 %v951
    %1575 = vmatpush.bf16.msra.mxu0 %v947
    %1576 = vmatpush.bf16.msra.mxu0 %v943
    %1577 = vmatpush.bf16.msra.mxu0 %v939
    %1578 = vmatpush.bf16.msra.mxu0 %v935
    %1579 = vmatpush.bf16.msra.mxu0 %v931
    %1580 = vmatpush.bf16.msra.mxu0 %v927
    %1581 = vmatpush.bf16.msra.mxu0 %v923
    %1582 = vmatmul.bf16.gmra.mxu0 %v57
    %v1583 = vpop.f32.mrf.mxu0
    %v1584 = vadd.f32 %v1570, %v1583
    %v1585 = vpop.f32.mrf.mxu0
    %v1586 = vadd.f32 %v1572, %v1585
    %1587 = vdwg.mxu0
    %1588 = vmatpush.bf16.msra.mxu0 %v983
    %1589 = vmatpush.bf16.msra.mxu0 %v979
    %1590 = vmatpush.bf16.msra.mxu0 %v975
    %1591 = vmatpush.bf16.msra.mxu0 %v971
    %1592 = vmatpush.bf16.msra.mxu0 %v967
    %1593 = vmatpush.bf16.msra.mxu0 %v963
    %1594 = vmatpush.bf16.msra.mxu0 %v959
    %1595 = vmatpush.bf16.msra.mxu0 %v955
    %1596 = vmatmul.bf16.gmra.mxu0 %v58
    %v1597 = vpop.f32.mrf.mxu0
    %v1598 = vadd.f32 %v1584, %v1597
    %v1599 = vpop.f32.mrf.mxu0
    %v1600 = vadd.f32 %v1586, %v1599
    %1601 = vdwg.mxu0
    %1602 = vmatpush.bf16.msra.mxu0 %v1015
    %1603 = vmatpush.bf16.msra.mxu0 %v1011
    %1604 = vmatpush.bf16.msra.mxu0 %v1007
    %1605 = vmatpush.bf16.msra.mxu0 %v1003
    %1606 = vmatpush.bf16.msra.mxu0 %v999
    %1607 = vmatpush.bf16.msra.mxu0 %v995
    %1608 = vmatpush.bf16.msra.mxu0 %v991
    %1609 = vmatpush.bf16.msra.mxu0 %v987
    %1610 = vmatmul.bf16.gmra.mxu0 %v59
    %v1611 = vpop.f32.mrf.mxu0
    %v1612 = vadd.f32 %v1598, %v1611
    %v1613 = vpop.f32.mrf.mxu0
    %v1614 = vadd.f32 %v1600, %v1613
    %1615 = vdwg.mxu0
    %1616 = vmatpush.bf16.msra.mxu0 %v1047
    %1617 = vmatpush.bf16.msra.mxu0 %v1043
    %1618 = vmatpush.bf16.msra.mxu0 %v1039
    %1619 = vmatpush.bf16.msra.mxu0 %v1035
    %1620 = vmatpush.bf16.msra.mxu0 %v1031
    %1621 = vmatpush.bf16.msra.mxu0 %v1027
    %1622 = vmatpush.bf16.msra.mxu0 %v1023
    %1623 = vmatpush.bf16.msra.mxu0 %v1019
    %1624 = vmatmul.bf16.gmra.mxu0 %v60
    %v1625 = vpop.f32.mrf.mxu0
    %v1626 = vadd.f32 %v1612, %v1625
    %v1627 = vpop.f32.mrf.mxu0
    %v1628 = vadd.f32 %v1614, %v1627
    %1629 = vdwg.mxu0
    %1630 = vmatpush.bf16.msra.mxu0 0
    %1631 = vmatpush.bf16.msra.mxu0 0
    %1632 = vmatpush.bf16.msra.mxu0 0
    %1633 = vmatpush.bf16.msra.mxu0 0
    %1634 = vmatpush.bf16.msra.mxu0 0
    %1635 = vmatpush.bf16.msra.mxu0 0
    %1636 = vmatpush.bf16.msra.mxu0 0
    %1637 = vmatpush.bf16.msra.mxu0 %v1051
    %1638 = vmatmul.bf16.gmra.mxu0 %v1250
    %v1639 = vpop.f32.mrf.mxu0
    %v1640 = vadd.f32 %v1626, %v1639
    %v1641 = vpop.f32.mrf.mxu0
    %v1642 = vadd.f32 %v1628, %v1641
    %1643 = vdwg.mxu0
    %v1644 = vmax.f32 %v1346, 0.0
    %v1645 = vmax.f32 %v1444, 0.0
    %v1646 = vmax.f32 %v1542, 0.0
    %v1647 = vmax.f32 %v1640, 0.0
    %v1648 = vmax.f32 %v1348, 0.0
    %v1649 = vmax.f32 %v1446, 0.0
    %v1650 = vmax.f32 %v1544, 0.0
    %v1651 = vmax.f32 %v1642, 0.0
    %v1652 = vld [vmem:[%s3] sm:$0xff]
    %v1653 = vld [vmem:[%s3 + $0x8] sm:$0xff]
    %v1654 = vld [vmem:[%s3 + $0x10] sm:$0xff]
    %v1655 = vld [vmem:[%s3 + $0x18] sm:$0xff]
    %v1656 = vld [vmem:[%s3 + $0x20] sm:$0xff]
    %v1657 = vld [vmem:[%s3 + $0x28] sm:$0xff]
    %v1658 = vld [vmem:[%s3 + $0x30] sm:$0xff]
    %v1659 = vld [vmem:[%s3 + $0x38] sm:$0xff]
    %v1660 = vld [vmem:[%s3 + $0x40] sm:$0xff]
    %v1661 = vld [vmem:[%s3 + $0x48] sm:$0xff]
    %v1662 = vld [vmem:[%s3 + $0x50] sm:$0xff]
    %v1663 = vld [vmem:[%s3 + $0x58] sm:$0xff]
    %v1664 = vld [vmem:[%s3 + $0x60] sm:$0xff]
    %v1665 = vld [vmem:[%s3 + $0x68] sm:$0xff]
    %v1666 = vld [vmem:[%s3 + $0x70] sm:$0xff]
    %v1667 = vld [vmem:[%s3 + $0x78] sm:$0xff]
    %v1668 = vld [vmem:[%s3 + $0x80] sm:$0xff]
    %v1669 = vld [vmem:[%s3 + $0x88] sm:$0xff]
    %v1670 = vld [vmem:[%s3 + $0x90] sm:$0xff]
    %v1671 = vld [vmem:[%s3 + $0x98] sm:$0xff]
    %v1672 = vld [vmem:[%s3 + $0xa0] sm:$0xff]
    %v1673 = vld [vmem:[%s3 + $0xa8] sm:$0xff]
    %v1674 = vld [vmem:[%s3 + $0xb0] sm:$0xff]
    %v1675 = vld [vmem:[%s3 + $0xb8] sm:$0xff]
    %v1676 = vld [vmem:[%s3 + $0xc0] sm:$0xff]
    %v1677 = vld [vmem:[%s3 + $0xc8] sm:$0xff]
    %v1678 = vld [vmem:[%s3 + $0xd0] sm:$0xff]
    %v1679 = vld [vmem:[%s3 + $0xd8] sm:$0xff]
    %v1680 = vld [vmem:[%s3 + $0xe0] sm:$0xff]
    %v1681 = vld [vmem:[%s3 + $0xe8] sm:$0xff]
    %v1682 = vld [vmem:[%s3 + $0xf0] sm:$0xff]
    %v1683 = vld [vmem:[%s3 + $0xf8] sm:$0xff]
    %v1684 = vld [vmem:[%s3 + $0x100] sm:$0xff]
    %v1685 = vld [vmem:[%s3 + $0x108] sm:$0xff]
    %v1686 = vld [vmem:[%s3 + $0x110] sm:$0xff]
    %v1687 = vld [vmem:[%s3 + $0x118] sm:$0xff]
    %v1688 = vld [vmem:[%s3 + $0x120] sm:$0xff]
    %v1689 = vld [vmem:[%s3 + $0x128] sm:$0xff]
    %v1690 = vld [vmem:[%s3 + $0x130] sm:$0xff]
    %v1691 = vld [vmem:[%s3 + $0x138] sm:$0xff]
    %v1692 = vld [vmem:[%s3 + $0x140] sm:$0xff]
    %v1693 = vld [vmem:[%s3 + $0x148] sm:$0xff]
    %v1694 = vld [vmem:[%s3 + $0x150] sm:$0xff]
    %v1695 = vld [vmem:[%s3 + $0x158] sm:$0xff]
    %v1696 = vld [vmem:[%s3 + $0x160] sm:$0xff]
    %v1697 = vld [vmem:[%s3 + $0x168] sm:$0xff]
    %v1698 = vld [vmem:[%s3 + $0x170] sm:$0xff]
    %v1699 = vld [vmem:[%s3 + $0x178] sm:$0xff]
    %v1700 = vld [vmem:[%s3 + $0x180] sm:$0xff]
    %v1701 = vld [vmem:[%s3 + $0x188] sm:$0xff]
    %v1702 = vld [vmem:[%s3 + $0x190] sm:$0xff]
    %v1703 = vld [vmem:[%s3 + $0x198] sm:$0xff]
    %v1704 = vld [vmem:[%s3 + $0x1a0] sm:$0xff]
    %v1705 = vld [vmem:[%s3 + $0x1a8] sm:$0xff]
    %v1706 = vld [vmem:[%s3 + $0x1b0] sm:$0xff]
    %v1707 = vld [vmem:[%s3 + $0x1b8] sm:$0xff]
    %v1708 = vld [vmem:[%s3 + $0x1c0] sm:$0xff]
    %v1709 = vld [vmem:[%s3 + $0x1c8] sm:$0xff]
    %v1710 = vld [vmem:[%s3 + $0x1d0] sm:$0xff]
    %v1711 = vld [vmem:[%s3 + $0x1d8] sm:$0xff]
    %v1712 = vld [vmem:[%s3 + $0x1e0] sm:$0xff]
    %v1713 = vld [vmem:[%s3 + $0x1e8] sm:$0xff]
    %v1714 = vld [vmem:[%s3 + $0x1f0] sm:$0xff]
    %v1715 = vld [vmem:[%s3 + $0x1f8] sm:$0xff]
    %v1716 = vld [vmem:[%s3 + $0x200] sm:$0xff]
    %v1717 = vld [vmem:[%s3 + $0x208] sm:$0xff]
    %v1718 = vld [vmem:[%s3 + $0x210] sm:$0xff]
    %v1719 = vld [vmem:[%s3 + $0x218] sm:$0xff]
    %v1720 = vld [vmem:[%s3 + $0x220] sm:$0xff]
    %v1721 = vld [vmem:[%s3 + $0x228] sm:$0xff]
    %v1722 = vld [vmem:[%s3 + $0x230] sm:$0xff]
    %v1723 = vld [vmem:[%s3 + $0x238] sm:$0xff]
    %v1724 = vld [vmem:[%s3 + $0x240] sm:$0xff]
    %v1725 = vld [vmem:[%s3 + $0x248] sm:$0xff]
    %v1726 = vld [vmem:[%s3 + $0x250] sm:$0xff]
    %v1727 = vld [vmem:[%s3 + $0x258] sm:$0xff]
    %v1728 = vld [vmem:[%s3 + $0x260] sm:$0xff]
    %v1729 = vld [vmem:[%s3 + $0x268] sm:$0xff]
    %v1730 = vld [vmem:[%s3 + $0x270] sm:$0xff]
    %v1731 = vld [vmem:[%s3 + $0x278] sm:$0xff]
    %v1732 = vld [vmem:[%s3 + $0x280] sm:$0xff]
    %v1733 = vld [vmem:[%s3 + $0x288] sm:$0xff]
    %v1734 = vld [vmem:[%s3 + $0x290] sm:$0xff]
    %v1735 = vld [vmem:[%s3 + $0x298] sm:$0xff]
    %v1736 = vld [vmem:[%s3 + $0x2a0] sm:$0xff]
    %v1737 = vld [vmem:[%s3 + $0x2a8] sm:$0xff]
    %v1738 = vld [vmem:[%s3 + $0x2b0] sm:$0xff]
    %v1739 = vld [vmem:[%s3 + $0x2b8] sm:$0xff]
    %v1740 = vld [vmem:[%s3 + $0x2c0] sm:$0xff]
    %v1741 = vld [vmem:[%s3 + $0x2c8] sm:$0xff]
    %v1742 = vld [vmem:[%s3 + $0x2d0] sm:$0xff]
    %v1743 = vld [vmem:[%s3 + $0x2d8] sm:$0xff]
    %v1744 = vld [vmem:[%s3 + $0x2e0] sm:$0xff]
    %v1745 = vld [vmem:[%s3 + $0x2e8] sm:$0xff]
    %v1746 = vld [vmem:[%s3 + $0x2f0] sm:$0xff]
    %v1747 = vld [vmem:[%s3 + $0x2f8] sm:$0xff]
    %v1748 = vld [vmem:[%s3 + $0x300] sm:$0xff]
    %v1749 = vld [vmem:[%s3 + $0x308] sm:$0xff]
    %v1750 = vld [vmem:[%s3 + $0x310] sm:$0xff]
    %v1751 = vld [vmem:[%s3 + $0x318] sm:$0xff]
    %v1752 = vld [vmem:[%s3 + $0x320] sm:$0xff]
    %v1753 = vld [vmem:[%s3 + $0x328] sm:$0xff]
    %v1754 = vld [vmem:[%s3 + $0x330] sm:$0xff]
    %v1755 = vld [vmem:[%s3 + $0x338] sm:$0xff]
    %v1756 = vld [vmem:[%s3 + $0x340] sm:$0xff]
    %v1757 = vld [vmem:[%s3 + $0x348] sm:$0xff]
    %v1758 = vld [vmem:[%s3 + $0x350] sm:$0xff]
    %v1759 = vld [vmem:[%s3 + $0x358] sm:$0xff]
    %v1760 = vld [vmem:[%s3 + $0x360] sm:$0xff]
    %v1761 = vld [vmem:[%s3 + $0x368] sm:$0xff]
    %v1762 = vld [vmem:[%s3 + $0x370] sm:$0xff]
    %v1763 = vld [vmem:[%s3 + $0x378] sm:$0xff]
    %v1764 = vld [vmem:[%s3 + $0x380] sm:$0xff]
    %v1765 = vld [vmem:[%s3 + $0x388] sm:$0xff]
    %v1766 = vld [vmem:[%s3 + $0x390] sm:$0xff]
    %v1767 = vld [vmem:[%s3 + $0x398] sm:$0xff]
    %v1768 = vld [vmem:[%s3 + $0x3a0] sm:$0xff]
    %v1769 = vld [vmem:[%s3 + $0x3a8] sm:$0xff]
    %v1770 = vld [vmem:[%s3 + $0x3b0] sm:$0xff]
    %v1771 = vld [vmem:[%s3 + $0x3b8] sm:$0xff]
    %v1772 = vld [vmem:[%s3 + $0x3c0] sm:$0xff]
    %v1773 = vld [vmem:[%s3 + $0x3c8] sm:$0xff]
    %v1774 = vld [vmem:[%s3 + $0x3d0] sm:$0xff]
    %v1775 = vld [vmem:[%s3 + $0x3d8] sm:$0xff]
    %v1776 = vld [vmem:[%s3 + $0x3e0] sm:$0xff]
    %v1777 = vld [vmem:[%s3 + $0x3e8] sm:$0xff]
    %v1778 = vld [vmem:[%s3 + $0x3f0] sm:$0xff]
    %v1779 = vld [vmem:[%s3 + $0x3f8] sm:$0xff]
    %v1780 = vld [vmem:[%s4] sm:$0x3]
    %v1782 = vperm.slane %v1780, 0
    %v1783 = vperm.slane %v1780, 1
    %1786 = vmatpush.msra.mxu0 %v1682
    %1787 = vmatpush.msra.mxu0 %v1680
    %1788 = vmatpush.msra.mxu0 %v1678
    %1789 = vmatpush.msra.mxu0 %v1676
    %1790 = vmatpush.msra.mxu0 %v1674
    %1791 = vmatpush.msra.mxu0 %v1672
    %1792 = vmatpush.msra.mxu0 %v1670
    %1793 = vmatpush.msra.mxu0 %v1668
    %1794 = vmatpush.msra.mxu0 %v1666
    %1795 = vmatpush.msra.mxu0 %v1664
    %1796 = vmatpush.msra.mxu0 %v1662
    %1797 = vmatpush.msra.mxu0 %v1660
    %1798 = vmatpush.msra.mxu0 %v1658
    %1799 = vmatpush.msra.mxu0 %v1656
    %1800 = vmatpush.msra.mxu0 %v1654
    %1801 = vmatpush.msra.mxu0 %v1652
    %1802 = vmatmul.f32.gmra.mxu0 %v1644
    %v1803 = vpop.f32.mrf.mxu0
    %v1804 = vadd.f32 %v1782, %v1803
    %1805 = vmatmul.f32.gmra.mxu0 %v1648
    %v1806 = vpop.f32.mrf.mxu0
    %v1807 = vadd.f32 %v1782, %v1806
    %1808 = vdwg.mxu0
    %1809 = vmatpush.msra.mxu0 %v1714
    %1810 = vmatpush.msra.mxu0 %v1712
    %1811 = vmatpush.msra.mxu0 %v1710
    %1812 = vmatpush.msra.mxu0 %v1708
    %1813 = vmatpush.msra.mxu0 %v1706
    %1814 = vmatpush.msra.mxu0 %v1704
    %1815 = vmatpush.msra.mxu0 %v1702
    %1816 = vmatpush.msra.mxu0 %v1700
    %1817 = vmatpush.msra.mxu0 %v1698
    %1818 = vmatpush.msra.mxu0 %v1696
    %1819 = vmatpush.msra.mxu0 %v1694
    %1820 = vmatpush.msra.mxu0 %v1692
    %1821 = vmatpush.msra.mxu0 %v1690
    %1822 = vmatpush.msra.mxu0 %v1688
    %1823 = vmatpush.msra.mxu0 %v1686
    %1824 = vmatpush.msra.mxu0 %v1684
    %1825 = vmatmul.f32.gmra.mxu0 %v1645
    %v1826 = vpop.f32.mrf.mxu0
    %v1827 = vadd.f32 %v1804, %v1826
    %1828 = vmatmul.f32.gmra.mxu0 %v1649
    %v1829 = vpop.f32.mrf.mxu0
    %v1830 = vadd.f32 %v1807, %v1829
    %1831 = vdwg.mxu0
    %1832 = vmatpush.msra.mxu0 %v1746
    %1833 = vmatpush.msra.mxu0 %v1744
    %1834 = vmatpush.msra.mxu0 %v1742
    %1835 = vmatpush.msra.mxu0 %v1740
    %1836 = vmatpush.msra.mxu0 %v1738
    %1837 = vmatpush.msra.mxu0 %v1736
    %1838 = vmatpush.msra.mxu0 %v1734
    %1839 = vmatpush.msra.mxu0 %v1732
    %1840 = vmatpush.msra.mxu0 %v1730
    %1841 = vmatpush.msra.mxu0 %v1728
    %1842 = vmatpush.msra.mxu0 %v1726
    %1843 = vmatpush.msra.mxu0 %v1724
    %1844 = vmatpush.msra.mxu0 %v1722
    %1845 = vmatpush.msra.mxu0 %v1720
    %1846 = vmatpush.msra.mxu0 %v1718
    %1847 = vmatpush.msra.mxu0 %v1716
    %1848 = vmatmul.f32.gmra.mxu0 %v1646
    %v1849 = vpop.f32.mrf.mxu0
    %v1850 = vadd.f32 %v1827, %v1849
    %1851 = vmatmul.f32.gmra.mxu0 %v1650
    %v1852 = vpop.f32.mrf.mxu0
    %v1853 = vadd.f32 %v1830, %v1852
    %1854 = vdwg.mxu0
    %1855 = vmatpush.msra.mxu0 %v1778
    %1856 = vmatpush.msra.mxu0 %v1776
    %1857 = vmatpush.msra.mxu0 %v1774
    %1858 = vmatpush.msra.mxu0 %v1772
    %1859 = vmatpush.msra.mxu0 %v1770
    %1860 = vmatpush.msra.mxu0 %v1768
    %1861 = vmatpush.msra.mxu0 %v1766
    %1862 = vmatpush.msra.mxu0 %v1764
    %1863 = vmatpush.msra.mxu0 %v1762
    %1864 = vmatpush.msra.mxu0 %v1760
    %1865 = vmatpush.msra.mxu0 %v1758
    %1866 = vmatpush.msra.mxu0 %v1756
    %1867 = vmatpush.msra.mxu0 %v1754
    %1868 = vmatpush.msra.mxu0 %v1752
    %1869 = vmatpush.msra.mxu0 %v1750
    %1870 = vmatpush.msra.mxu0 %v1748
    %1871 = vmatmul.f32.gmra.mxu0 %v1647
    %v1872 = vpop.f32.mrf.mxu0
    %v1873 = vadd.f32 %v1850, %v1872
    %1874 = vmatmul.f32.gmra.mxu0 %v1651
    %v1875 = vpop.f32.mrf.mxu0
    %v1876 = vadd.f32 %v1853, %v1875
    %1877 = vdwg.mxu0
    %1878 = vmatpush.msra.mxu0 %v1683
    %1879 = vmatpush.msra.mxu0 %v1681
    %1880 = vmatpush.msra.mxu0 %v1679
    %1881 = vmatpush.msra.mxu0 %v1677
    %1882 = vmatpush.msra.mxu0 %v1675
    %1883 = vmatpush.msra.mxu0 %v1673
    %1884 = vmatpush.msra.mxu0 %v1671
    %1885 = vmatpush.msra.mxu0 %v1669
    %1886 = vmatpush.msra.mxu0 %v1667
    %1887 = vmatpush.msra.mxu0 %v1665
    %1888 = vmatpush.msra.mxu0 %v1663
    %1889 = vmatpush.msra.mxu0 %v1661
    %1890 = vmatpush.msra.mxu0 %v1659
    %1891 = vmatpush.msra.mxu0 %v1657
    %1892 = vmatpush.msra.mxu0 %v1655
    %1893 = vmatpush.msra.mxu0 %v1653
    %1894 = vmatmul.f32.gmra.mxu0 %v1644
    %v1895 = vpop.f32.mrf.mxu0
    %v1896 = vadd.f32 %v1783, %v1895
    %1897 = vmatmul.f32.gmra.mxu0 %v1648
    %v1898 = vpop.f32.mrf.mxu0
    %v1899 = vadd.f32 %v1783, %v1898
    %1900 = vdwg.mxu0
    %1901 = vmatpush.msra.mxu0 %v1715
    %1902 = vmatpush.msra.mxu0 %v1713
    %1903 = vmatpush.msra.mxu0 %v1711
    %1904 = vmatpush.msra.mxu0 %v1709
    %1905 = vmatpush.msra.mxu0 %v1707
    %1906 = vmatpush.msra.mxu0 %v1705
    %1907 = vmatpush.msra.mxu0 %v1703
    %1908 = vmatpush.msra.mxu0 %v1701
    %1909 = vmatpush.msra.mxu0 %v1699
    %1910 = vmatpush.msra.mxu0 %v1697
    %1911 = vmatpush.msra.mxu0 %v1695
    %1912 = vmatpush.msra.mxu0 %v1693
    %1913 = vmatpush.msra.mxu0 %v1691
    %1914 = vmatpush.msra.mxu0 %v1689
    %1915 = vmatpush.msra.mxu0 %v1687
    %1916 = vmatpush.msra.mxu0 %v1685
    %1917 = vmatmul.f32.gmra.mxu0 %v1645
    %v1918 = vpop.f32.mrf.mxu0
    %v1919 = vadd.f32 %v1896, %v1918
    %1920 = vmatmul.f32.gmra.mxu0 %v1649
    %v1921 = vpop.f32.mrf.mxu0
    %v1922 = vadd.f32 %v1899, %v1921
    %1923 = vdwg.mxu0
    %1924 = vmatpush.msra.mxu0 %v1747
    %1925 = vmatpush.msra.mxu0 %v1745
    %1926 = vmatpush.msra.mxu0 %v1743
    %1927 = vmatpush.msra.mxu0 %v1741
    %1928 = vmatpush.msra.mxu0 %v1739
    %1929 = vmatpush.msra.mxu0 %v1737
    %1930 = vmatpush.msra.mxu0 %v1735
    %1931 = vmatpush.msra.mxu0 %v1733
    %1932 = vmatpush.msra.mxu0 %v1731
    %1933 = vmatpush.msra.mxu0 %v1729
    %1934 = vmatpush.msra.mxu0 %v1727
    %1935 = vmatpush.msra.mxu0 %v1725
    %1936 = vmatpush.msra.mxu0 %v1723
    %1937 = vmatpush.msra.mxu0 %v1721
    %1938 = vmatpush.msra.mxu0 %v1719
    %1939 = vmatpush.msra.mxu0 %v1717
    %1940 = vmatmul.f32.gmra.mxu0 %v1646
    %v1941 = vpop.f32.mrf.mxu0
    %v1942 = vadd.f32 %v1919, %v1941
    %1943 = vmatmul.f32.gmra.mxu0 %v1650
    %v1944 = vpop.f32.mrf.mxu0
    %v1945 = vadd.f32 %v1922, %v1944
    %1946 = vdwg.mxu0
    %1947 = vmatpush.msra.mxu0 %v1779
    %1948 = vmatpush.msra.mxu0 %v1777
    %1949 = vmatpush.msra.mxu0 %v1775
    %1950 = vmatpush.msra.mxu0 %v1773
    %1951 = vmatpush.msra.mxu0 %v1771
    %1952 = vmatpush.msra.mxu0 %v1769
    %1953 = vmatpush.msra.mxu0 %v1767
    %1954 = vmatpush.msra.mxu0 %v1765
    %1955 = vmatpush.msra.mxu0 %v1763
    %1956 = vmatpush.msra.mxu0 %v1761
    %1957 = vmatpush.msra.mxu0 %v1759
    %1958 = vmatpush.msra.mxu0 %v1757
    %1959 = vmatpush.msra.mxu0 %v1755
    %1960 = vmatpush.msra.mxu0 %v1753
    %1961 = vmatpush.msra.mxu0 %v1751
    %1962 = vmatpush.msra.mxu0 %v1749
    %1963 = vmatmul.f32.gmra.mxu0 %v1647
    %v1964 = vpop.f32.mrf.mxu0
    %v1965 = vadd.f32 %v1942, %v1964
    %1966 = vmatmul.f32.gmra.mxu0 %v1651
    %v1967 = vpop.f32.mrf.mxu0
    %v1968 = vadd.f32 %v1945, %v1967
    %1969 = vdwg.mxu0
    %v1970 = vld [vmem:[%s9] sm:$0xff]
    %v1971 = vld [vmem:[%s9 + $0x8] sm:$0xff]
    %v1972 = vmul.f32 %v1965, 0.5
    %v1973 = vmul.f32 %v1968, 0.5
    %v1974 = vmul.f32 %v1972, 1.442695
    %v1975 = vpow.pop %v1974
    %v1976 = vmul.f32 %v1973, 1.442695
    %v1977 = vpow.pop %v1976
    %v1978 = vmul.f32 %v1970, %v1975
    %v1979 = vmul.f32 %v1971, %v1977
    %v1980 = vadd.f32 %v1873, %v1978
    %v1981 = vadd.f32 %v1876, %v1979
    %v1982 = vpack.c.bf16 %v1981, %v1980
    %v1983 = vld [vmem:[%s5] sm:$0xff]
    %v1984 = vld [vmem:[%s5 + $0x8] sm:$0xff]
    %v1985 = vld [vmem:[%s5 + $0x10] sm:$0xff]
    %v1986 = vld [vmem:[%s5 + $0x18] sm:$0xff]
    %v1987 = vld [vmem:[%s5 + $0x20] sm:$0x33]
    %v1988 = vld [vmem:[%s5 + $0x28] sm:$0x33]
    %v1989 = vld [vmem:[%s6] sm:$0xf]
    %v1991 = vperm.slane %v1989, 0
    %v1992 = vperm.slane %v1989, 1
    %v1993 = vperm.slane %v1989, 2
    %v1994 = vperm.slane %v1989, 3
    %v2005 = vunpack.c.l.b16 %v1983
    %v2006 = vunpack.c.h.b16 %v1983
    %v2007 = vunpack.c.l.b16 %v1984
    %v2008 = vunpack.c.h.b16 %v1984
    %v2009 = vunpack.c.l.b16 %v1985
    %v2010 = vunpack.c.h.b16 %v1985
    %v2011 = vunpack.c.l.b16 %v1986
    %v2012 = vunpack.c.h.b16 %v1986
    %v2013 = vunpack.c.l.b16 %v1987
    %v2014 = vunpack.c.h.b16 %v1987
    %v2015 = vunpack.c.l.b16 %v1988
    %v2016 = vunpack.c.h.b16 %v1988
    %v2017 = vpack.c.b16 %v2009, %v2005
    %v2018 = vpack.c.b16 %v2010, %v2006
    %v2019 = vpack.c.b16 %v2011, %v2007
    %v2020 = vpack.c.b16 %v2012, %v2008
    %v2021 = vpack.c.b16 %v2013, %v2013
    %v2022 = vpack.c.b16 %v2014, %v2014
    %v2023 = vpack.c.b16 %v2015, %v2015
    %v2024 = vpack.c.b16 %v2016, %v2016
    %vm2029 = vcmask 162816
    %v2031 = vsel %vm2029, %v1982, 0
    %vm2033 = vcmask 1041408
    %v2035 = vsel %vm2033, %v2021, 0
    %v2038 = vsel %vm2033, %v2022, 0
    %v2041 = vsel %vm2033, %v2023, 0
    %v2044 = vsel %vm2033, %v2024, 0
    %2046 = vmatpush.bf16.msra.mxu0 0
    %2047 = vmatpush.bf16.msra.mxu0 0
    %2048 = vmatpush.bf16.msra.mxu0 0
    %2049 = vmatpush.bf16.msra.mxu0 0
    %2050 = vmatpush.bf16.msra.mxu0 0
    %2051 = vmatpush.bf16.msra.mxu0 0
    %2052 = vmatpush.bf16.msra.mxu0 %v2035
    %2053 = vmatpush.bf16.msra.mxu0 %v2017
    %2054 = vmatmul.bf16.gmra.mxu0 %v2031
    %v2055 = vpop.f32.mrf.mxu0
    %v2056 = vadd.f32 %v1991, %v2055
    %v2057 = vpop.f32.mrf.mxu0
    %v2058 = vadd.f32 %v1991, %v2057
    %2059 = vdwg.mxu0
    %2060 = vmatpush.bf16.msra.mxu0 0
    %2061 = vmatpush.bf16.msra.mxu0 0
    %2062 = vmatpush.bf16.msra.mxu0 0
    %2063 = vmatpush.bf16.msra.mxu0 0
    %2064 = vmatpush.bf16.msra.mxu0 0
    %2065 = vmatpush.bf16.msra.mxu0 0
    %2066 = vmatpush.bf16.msra.mxu0 %v2038
    %2067 = vmatpush.bf16.msra.mxu0 %v2018
    %2068 = vmatmul.bf16.gmra.mxu0 %v2031
    %v2069 = vpop.f32.mrf.mxu0
    %v2070 = vadd.f32 %v1992, %v2069
    %v2071 = vpop.f32.mrf.mxu0
    %v2072 = vadd.f32 %v1992, %v2071
    %2073 = vdwg.mxu0
    %2074 = vmatpush.bf16.msra.mxu0 0
    %2075 = vmatpush.bf16.msra.mxu0 0
    %2076 = vmatpush.bf16.msra.mxu0 0
    %2077 = vmatpush.bf16.msra.mxu0 0
    %2078 = vmatpush.bf16.msra.mxu0 0
    %2079 = vmatpush.bf16.msra.mxu0 0
    %2080 = vmatpush.bf16.msra.mxu0 %v2041
    %2081 = vmatpush.bf16.msra.mxu0 %v2019
    %2082 = vmatmul.bf16.gmra.mxu0 %v2031
    %v2083 = vpop.f32.mrf.mxu0
    %v2084 = vadd.f32 %v1993, %v2083
    %v2085 = vpop.f32.mrf.mxu0
    %v2086 = vadd.f32 %v1993, %v2085
    %2087 = vdwg.mxu0
    %2088 = vmatpush.bf16.msra.mxu0 0
    %2089 = vmatpush.bf16.msra.mxu0 0
    %2090 = vmatpush.bf16.msra.mxu0 0
    %2091 = vmatpush.bf16.msra.mxu0 0
    %2092 = vmatpush.bf16.msra.mxu0 0
    %2093 = vmatpush.bf16.msra.mxu0 0
    %2094 = vmatpush.bf16.msra.mxu0 %v2044
    %2095 = vmatpush.bf16.msra.mxu0 %v2020
    %2096 = vmatmul.bf16.gmra.mxu0 %v2031
    %v2097 = vpop.f32.mrf.mxu0
    %v2098 = vadd.f32 %v1994, %v2097
    %v2099 = vpop.f32.mrf.mxu0
    %v2100 = vadd.f32 %v1994, %v2099
    %2101 = vdwg.mxu0
    %v2102 = vmax.f32 %v2056, 0.0
    %v2103 = vmax.f32 %v2070, 0.0
    %v2104 = vmax.f32 %v2084, 0.0
    %v2105 = vmax.f32 %v2098, 0.0
    %v2106 = vmax.f32 %v2058, 0.0
    %v2107 = vmax.f32 %v2072, 0.0
    %v2108 = vmax.f32 %v2086, 0.0
    %v2109 = vmax.f32 %v2100, 0.0
    %v2110 = vpack.c.bf16 %v2106, %v2102
    %v2111 = vpack.c.bf16 %v2107, %v2103
    %v2112 = vpack.c.bf16 %v2108, %v2104
    %v2113 = vpack.c.bf16 %v2109, %v2105
    %v2114 = vld [vmem:[%s7] sm:$0xff]
    %v2115 = vld [vmem:[%s7 + $0x8] sm:$0xff]
    %v2116 = vld [vmem:[%s7 + $0x10] sm:$0xff]
    %v2117 = vld [vmem:[%s7 + $0x18] sm:$0xf]
    %v2118 = vld [vmem:[%s7 + $0x1c] sm:$0xff]
    %v2119 = vld [vmem:[%s7 + $0x24] sm:$0xff]
    %v2120 = vld [vmem:[%s7 + $0x2c] sm:$0xff]
    %v2121 = vld [vmem:[%s7 + $0x34] sm:$0xf]
    %v2122 = vld [vmem:[%s7 + $0x38] sm:$0xff]
    %v2123 = vld [vmem:[%s7 + $0x40] sm:$0xff]
    %v2124 = vld [vmem:[%s7 + $0x48] sm:$0xff]
    %v2125 = vld [vmem:[%s7 + $0x50] sm:$0xf]
    %v2126 = vld [vmem:[%s7 + $0x54] sm:$0xff]
    %v2127 = vld [vmem:[%s7 + $0x5c] sm:$0xff]
    %v2128 = vld [vmem:[%s7 + $0x64] sm:$0xff]
    %v2129 = vld [vmem:[%s7 + $0x6c] sm:$0xf]
    %v2130 = vld [vmem:[%s7 + $0x70] sm:$0xff]
    %v2131 = vld [vmem:[%s7 + $0x78] sm:$0xff]
    %v2132 = vld [vmem:[%s7 + $0x80] sm:$0xff]
    %v2133 = vld [vmem:[%s7 + $0x88] sm:$0xf]
    %v2134 = vld [vmem:[%s7 + $0x8c] sm:$0xff]
    %v2135 = vld [vmem:[%s7 + $0x94] sm:$0xff]
    %v2136 = vld [vmem:[%s7 + $0x9c] sm:$0xff]
    %v2137 = vld [vmem:[%s7 + $0xa4] sm:$0xf]
    %v2138 = vld [vmem:[%s7 + $0xa8] sm:$0xff]
    %v2139 = vld [vmem:[%s7 + $0xb0] sm:$0xff]
    %v2140 = vld [vmem:[%s7 + $0xb8] sm:$0xff]
    %v2141 = vld [vmem:[%s7 + $0xc0] sm:$0xf]
    %v2142 = vld [vmem:[%s7 + $0xc4] sm:$0xff]
    %v2143 = vld [vmem:[%s7 + $0xcc] sm:$0xff]
    %v2144 = vld [vmem:[%s7 + $0xd4] sm:$0xff]
    %v2145 = vld [vmem:[%s7 + $0xdc] sm:$0xf]
    %v2146 = vld [vmem:[%s7 + $0xe0] sm:$0xff]
    %v2147 = vld [vmem:[%s7 + $0xe8] sm:$0xff]
    %v2148 = vld [vmem:[%s7 + $0xf0] sm:$0xff]
    %v2149 = vld [vmem:[%s7 + $0xf8] sm:$0xf]
    %v2150 = vld [vmem:[%s7 + $0xfc] sm:$0xff]
    %v2151 = vld [vmem:[%s7 + $0x104] sm:$0xff]
    %v2152 = vld [vmem:[%s7 + $0x10c] sm:$0xff]
    %v2153 = vld [vmem:[%s7 + $0x114] sm:$0xf]
    %v2154 = vld [vmem:[%s7 + $0x118] sm:$0xff]
    %v2155 = vld [vmem:[%s7 + $0x120] sm:$0xff]
    %v2156 = vld [vmem:[%s7 + $0x128] sm:$0xff]
    %v2157 = vld [vmem:[%s7 + $0x130] sm:$0xf]
    %v2158 = vld [vmem:[%s7 + $0x134] sm:$0xff]
    %v2159 = vld [vmem:[%s7 + $0x13c] sm:$0xff]
    %v2160 = vld [vmem:[%s7 + $0x144] sm:$0xff]
    %v2161 = vld [vmem:[%s7 + $0x14c] sm:$0xf]
    %v2162 = vld [vmem:[%s7 + $0x150] sm:$0xff]
    %v2163 = vld [vmem:[%s7 + $0x158] sm:$0xff]
    %v2164 = vld [vmem:[%s7 + $0x160] sm:$0xff]
    %v2165 = vld [vmem:[%s7 + $0x168] sm:$0xf]
    %v2166 = vld [vmem:[%s7 + $0x16c] sm:$0xff]
    %v2167 = vld [vmem:[%s7 + $0x174] sm:$0xff]
    %v2168 = vld [vmem:[%s7 + $0x17c] sm:$0xff]
    %v2169 = vld [vmem:[%s7 + $0x184] sm:$0xf]
    %v2170 = vld [vmem:[%s7 + $0x188] sm:$0xff]
    %v2171 = vld [vmem:[%s7 + $0x190] sm:$0xff]
    %v2172 = vld [vmem:[%s7 + $0x198] sm:$0xff]
    %v2173 = vld [vmem:[%s7 + $0x1a0] sm:$0xf]
    %v2174 = vld [vmem:[%s7 + $0x1a4] sm:$0xff]
    %v2175 = vld [vmem:[%s7 + $0x1ac] sm:$0xff]
    %v2176 = vld [vmem:[%s7 + $0x1b4] sm:$0xff]
    %v2177 = vld [vmem:[%s7 + $0x1bc] sm:$0xf]
    %v2178 = vld [vmem:[%s7 + $0x1c0] sm:$0xff]
    %v2179 = vld [vmem:[%s7 + $0x1c8] sm:$0xff]
    %v2180 = vld [vmem:[%s7 + $0x1d0] sm:$0xff]
    %v2181 = vld [vmem:[%s7 + $0x1d8] sm:$0xf]
    %v2182 = vld [vmem:[%s7 + $0x1dc] sm:$0xff]
    %v2183 = vld [vmem:[%s7 + $0x1e4] sm:$0xff]
    %v2184 = vld [vmem:[%s7 + $0x1ec] sm:$0xff]
    %v2185 = vld [vmem:[%s7 + $0x1f4] sm:$0xf]
    %v2186 = vld [vmem:[%s7 + $0x1f8] sm:$0xff]
    %v2187 = vld [vmem:[%s7 + $0x200] sm:$0xff]
    %v2188 = vld [vmem:[%s7 + $0x208] sm:$0xff]
    %v2189 = vld [vmem:[%s7 + $0x210] sm:$0xf]
    %v2190 = vld [vmem:[%s7 + $0x214] sm:$0xff]
    %v2191 = vld [vmem:[%s7 + $0x21c] sm:$0xff]
    %v2192 = vld [vmem:[%s7 + $0x224] sm:$0xff]
    %v2193 = vld [vmem:[%s7 + $0x22c] sm:$0xf]
    %v2194 = vld [vmem:[%s7 + $0x230] sm:$0xff]
    %v2195 = vld [vmem:[%s7 + $0x238] sm:$0xff]
    %v2196 = vld [vmem:[%s7 + $0x240] sm:$0xff]
    %v2197 = vld [vmem:[%s7 + $0x248] sm:$0xf]
    %v2198 = vld [vmem:[%s7 + $0x24c] sm:$0xff]
    %v2199 = vld [vmem:[%s7 + $0x254] sm:$0xff]
    %v2200 = vld [vmem:[%s7 + $0x25c] sm:$0xff]
    %v2201 = vld [vmem:[%s7 + $0x264] sm:$0xf]
    %v2202 = vld [vmem:[%s7 + $0x268] sm:$0xff]
    %v2203 = vld [vmem:[%s7 + $0x270] sm:$0xff]
    %v2204 = vld [vmem:[%s7 + $0x278] sm:$0xff]
    %v2205 = vld [vmem:[%s7 + $0x280] sm:$0xf]
    %v2206 = vld [vmem:[%s7 + $0x284] sm:$0xff]
    %v2207 = vld [vmem:[%s7 + $0x28c] sm:$0xff]
    %v2208 = vld [vmem:[%s7 + $0x294] sm:$0xff]
    %v2209 = vld [vmem:[%s7 + $0x29c] sm:$0xf]
    %v2210 = vld [vmem:[%s7 + $0x2a0] sm:$0xff]
    %v2211 = vld [vmem:[%s7 + $0x2a8] sm:$0xff]
    %v2212 = vld [vmem:[%s7 + $0x2b0] sm:$0xff]
    %v2213 = vld [vmem:[%s7 + $0x2b8] sm:$0xf]
    %v2214 = vld [vmem:[%s7 + $0x2bc] sm:$0xff]
    %v2215 = vld [vmem:[%s7 + $0x2c4] sm:$0xff]
    %v2216 = vld [vmem:[%s7 + $0x2cc] sm:$0xff]
    %v2217 = vld [vmem:[%s7 + $0x2d4] sm:$0xf]
    %v2218 = vld [vmem:[%s7 + $0x2d8] sm:$0xff]
    %v2219 = vld [vmem:[%s7 + $0x2e0] sm:$0xff]
    %v2220 = vld [vmem:[%s7 + $0x2e8] sm:$0xff]
    %v2221 = vld [vmem:[%s7 + $0x2f0] sm:$0xf]
    %v2222 = vld [vmem:[%s7 + $0x2f4] sm:$0xff]
    %v2223 = vld [vmem:[%s7 + $0x2fc] sm:$0xff]
    %v2224 = vld [vmem:[%s7 + $0x304] sm:$0xff]
    %v2225 = vld [vmem:[%s7 + $0x30c] sm:$0xf]
    %v2226 = vld [vmem:[%s7 + $0x310] sm:$0xff]
    %v2227 = vld [vmem:[%s7 + $0x318] sm:$0xff]
    %v2228 = vld [vmem:[%s7 + $0x320] sm:$0xff]
    %v2229 = vld [vmem:[%s7 + $0x328] sm:$0xf]
    %v2230 = vld [vmem:[%s7 + $0x32c] sm:$0xff]
    %v2231 = vld [vmem:[%s7 + $0x334] sm:$0xff]
    %v2232 = vld [vmem:[%s7 + $0x33c] sm:$0xff]
    %v2233 = vld [vmem:[%s7 + $0x344] sm:$0xf]
    %v2234 = vld [vmem:[%s7 + $0x348] sm:$0xff]
    %v2235 = vld [vmem:[%s7 + $0x350] sm:$0xff]
    %v2236 = vld [vmem:[%s7 + $0x358] sm:$0xff]
    %v2237 = vld [vmem:[%s7 + $0x360] sm:$0xf]
    %v2238 = vld [vmem:[%s7 + $0x364] sm:$0xff]
    %v2239 = vld [vmem:[%s7 + $0x36c] sm:$0xff]
    %v2240 = vld [vmem:[%s7 + $0x374] sm:$0xff]
    %v2241 = vld [vmem:[%s7 + $0x37c] sm:$0xf]
    %v2242 = vld [vmem:[%s7 + $0x380] sm:$0xff]
    %v2243 = vld [vmem:[%s7 + $0x388] sm:$0xff]
    %v2244 = vld [vmem:[%s7 + $0x390] sm:$0xff]
    %v2245 = vld [vmem:[%s7 + $0x398] sm:$0xf]
    %v2246 = vld [vmem:[%s7 + $0x39c] sm:$0xff]
    %v2247 = vld [vmem:[%s7 + $0x3a4] sm:$0xff]
    %v2248 = vld [vmem:[%s7 + $0x3ac] sm:$0xff]
    %v2249 = vld [vmem:[%s7 + $0x3b4] sm:$0xf]
    %v2250 = vld [vmem:[%s7 + $0x3b8] sm:$0xff]
    %v2251 = vld [vmem:[%s7 + $0x3c0] sm:$0xff]
    %v2252 = vld [vmem:[%s7 + $0x3c8] sm:$0xff]
    %v2253 = vld [vmem:[%s7 + $0x3d0] sm:$0xf]
    %v2254 = vld [vmem:[%s7 + $0x3d4] sm:$0xff]
    %v2255 = vld [vmem:[%s7 + $0x3dc] sm:$0xff]
    %v2256 = vld [vmem:[%s7 + $0x3e4] sm:$0xff]
    %v2257 = vld [vmem:[%s7 + $0x3ec] sm:$0xf]
    %v2258 = vld [vmem:[%s7 + $0x3f0] sm:$0xff]
    %v2259 = vld [vmem:[%s7 + $0x3f8] sm:$0xff]
    %v2260 = vld [vmem:[%s7 + $0x400] sm:$0xff]
    %v2261 = vld [vmem:[%s7 + $0x408] sm:$0xf]
    %v2262 = vld [vmem:[%s7 + $0x40c] sm:$0xff]
    %v2263 = vld [vmem:[%s7 + $0x414] sm:$0xff]
    %v2264 = vld [vmem:[%s7 + $0x41c] sm:$0xff]
    %v2265 = vld [vmem:[%s7 + $0x424] sm:$0xf]
    %v2266 = vld [vmem:[%s7 + $0x428] sm:$0xff]
    %v2267 = vld [vmem:[%s7 + $0x430] sm:$0xff]
    %v2268 = vld [vmem:[%s7 + $0x438] sm:$0xff]
    %v2269 = vld [vmem:[%s7 + $0x440] sm:$0xf]
    %v2270 = vld [vmem:[%s7 + $0x444] sm:$0xff]
    %v2271 = vld [vmem:[%s7 + $0x44c] sm:$0xff]
    %v2272 = vld [vmem:[%s7 + $0x454] sm:$0xff]
    %v2273 = vld [vmem:[%s7 + $0x45c] sm:$0xf]
    %v2274 = vld [vmem:[%s7 + $0x460] sm:$0xff]
    %v2275 = vld [vmem:[%s7 + $0x468] sm:$0xff]
    %v2276 = vld [vmem:[%s7 + $0x470] sm:$0xff]
    %v2277 = vld [vmem:[%s7 + $0x478] sm:$0xf]
    %v2278 = vld [vmem:[%s7 + $0x47c] sm:$0xff]
    %v2279 = vld [vmem:[%s7 + $0x484] sm:$0xff]
    %v2280 = vld [vmem:[%s7 + $0x48c] sm:$0xff]
    %v2281 = vld [vmem:[%s7 + $0x494] sm:$0xf]
    %v2282 = vld [vmem:[%s7 + $0x498] sm:$0xff]
    %v2283 = vld [vmem:[%s7 + $0x4a0] sm:$0xff]
    %v2284 = vld [vmem:[%s7 + $0x4a8] sm:$0xff]
    %v2285 = vld [vmem:[%s7 + $0x4b0] sm:$0xf]
    %v2286 = vld [vmem:[%s7 + $0x4b4] sm:$0xff]
    %v2287 = vld [vmem:[%s7 + $0x4bc] sm:$0xff]
    %v2288 = vld [vmem:[%s7 + $0x4c4] sm:$0xff]
    %v2289 = vld [vmem:[%s7 + $0x4cc] sm:$0xf]
    %v2290 = vld [vmem:[%s7 + $0x4d0] sm:$0xff]
    %v2291 = vld [vmem:[%s7 + $0x4d8] sm:$0xff]
    %v2292 = vld [vmem:[%s7 + $0x4e0] sm:$0xff]
    %v2293 = vld [vmem:[%s7 + $0x4e8] sm:$0xf]
    %v2294 = vld [vmem:[%s7 + $0x4ec] sm:$0xff]
    %v2295 = vld [vmem:[%s7 + $0x4f4] sm:$0xff]
    %v2296 = vld [vmem:[%s7 + $0x4fc] sm:$0xff]
    %v2297 = vld [vmem:[%s7 + $0x504] sm:$0xf]
    %v2298 = vld [vmem:[%s7 + $0x508] sm:$0xff]
    %v2299 = vld [vmem:[%s7 + $0x510] sm:$0xff]
    %v2300 = vld [vmem:[%s7 + $0x518] sm:$0xff]
    %v2301 = vld [vmem:[%s7 + $0x520] sm:$0xf]
    %v2302 = vld [vmem:[%s7 + $0x524] sm:$0xff]
    %v2303 = vld [vmem:[%s7 + $0x52c] sm:$0xff]
    %v2304 = vld [vmem:[%s7 + $0x534] sm:$0xff]
    %v2305 = vld [vmem:[%s7 + $0x53c] sm:$0xf]
    %v2306 = vld [vmem:[%s7 + $0x540] sm:$0xff]
    %v2307 = vld [vmem:[%s7 + $0x548] sm:$0xff]
    %v2308 = vld [vmem:[%s7 + $0x550] sm:$0xff]
    %v2309 = vld [vmem:[%s7 + $0x558] sm:$0xf]
    %v2310 = vld [vmem:[%s7 + $0x55c] sm:$0xff]
    %v2311 = vld [vmem:[%s7 + $0x564] sm:$0xff]
    %v2312 = vld [vmem:[%s7 + $0x56c] sm:$0xff]
    %v2313 = vld [vmem:[%s7 + $0x574] sm:$0xf]
    %v2314 = vld [vmem:[%s7 + $0x578] sm:$0xff]
    %v2315 = vld [vmem:[%s7 + $0x580] sm:$0xff]
    %v2316 = vld [vmem:[%s7 + $0x588] sm:$0xff]
    %v2317 = vld [vmem:[%s7 + $0x590] sm:$0xf]
    %v2318 = vld [vmem:[%s7 + $0x594] sm:$0xff]
    %v2319 = vld [vmem:[%s7 + $0x59c] sm:$0xff]
    %v2320 = vld [vmem:[%s7 + $0x5a4] sm:$0xff]
    %v2321 = vld [vmem:[%s7 + $0x5ac] sm:$0xf]
    %v2322 = vld [vmem:[%s7 + $0x5b0] sm:$0xff]
    %v2323 = vld [vmem:[%s7 + $0x5b8] sm:$0xff]
    %v2324 = vld [vmem:[%s7 + $0x5c0] sm:$0xff]
    %v2325 = vld [vmem:[%s7 + $0x5c8] sm:$0xf]
    %v2326 = vld [vmem:[%s7 + $0x5cc] sm:$0xff]
    %v2327 = vld [vmem:[%s7 + $0x5d4] sm:$0xff]
    %v2328 = vld [vmem:[%s7 + $0x5dc] sm:$0xff]
    %v2329 = vld [vmem:[%s7 + $0x5e4] sm:$0xf]
    %v2330 = vld [vmem:[%s7 + $0x5e8] sm:$0xff]
    %v2331 = vld [vmem:[%s7 + $0x5f0] sm:$0xff]
    %v2332 = vld [vmem:[%s7 + $0x5f8] sm:$0xff]
    %v2333 = vld [vmem:[%s7 + $0x600] sm:$0xf]
    %v2334 = vld [vmem:[%s7 + $0x604] sm:$0xff]
    %v2335 = vld [vmem:[%s7 + $0x60c] sm:$0xff]
    %v2336 = vld [vmem:[%s7 + $0x614] sm:$0xff]
    %v2337 = vld [vmem:[%s7 + $0x61c] sm:$0xf]
    %v2338 = vld [vmem:[%s7 + $0x620] sm:$0xff]
    %v2339 = vld [vmem:[%s7 + $0x628] sm:$0xff]
    %v2340 = vld [vmem:[%s7 + $0x630] sm:$0xff]
    %v2341 = vld [vmem:[%s7 + $0x638] sm:$0xf]
    %v2342 = vld [vmem:[%s7 + $0x63c] sm:$0xff]
    %v2343 = vld [vmem:[%s7 + $0x644] sm:$0xff]
    %v2344 = vld [vmem:[%s7 + $0x64c] sm:$0xff]
    %v2345 = vld [vmem:[%s7 + $0x654] sm:$0xf]
    %v2346 = vld [vmem:[%s7 + $0x658] sm:$0xff]
    %v2347 = vld [vmem:[%s7 + $0x660] sm:$0xff]
    %v2348 = vld [vmem:[%s7 + $0x668] sm:$0xff]
    %v2349 = vld [vmem:[%s7 + $0x670] sm:$0xf]
    %v2350 = vld [vmem:[%s7 + $0x674] sm:$0xff]
    %v2351 = vld [vmem:[%s7 + $0x67c] sm:$0xff]
    %v2352 = vld [vmem:[%s7 + $0x684] sm:$0xff]
    %v2353 = vld [vmem:[%s7 + $0x68c] sm:$0xf]
    %v2354 = vld [vmem:[%s7 + $0x690] sm:$0xff]
    %v2355 = vld [vmem:[%s7 + $0x698] sm:$0xff]
    %v2356 = vld [vmem:[%s7 + $0x6a0] sm:$0xff]
    %v2357 = vld [vmem:[%s7 + $0x6a8] sm:$0xf]
    %v2358 = vld [vmem:[%s7 + $0x6ac] sm:$0xff]
    %v2359 = vld [vmem:[%s7 + $0x6b4] sm:$0xff]
    %v2360 = vld [vmem:[%s7 + $0x6bc] sm:$0xff]
    %v2361 = vld [vmem:[%s7 + $0x6c4] sm:$0xf]
    %v2362 = vld [vmem:[%s7 + $0x6c8] sm:$0xff]
    %v2363 = vld [vmem:[%s7 + $0x6d0] sm:$0xff]
    %v2364 = vld [vmem:[%s7 + $0x6d8] sm:$0xff]
    %v2365 = vld [vmem:[%s7 + $0x6e0] sm:$0xf]
    %v2366 = vld [vmem:[%s7 + $0x6e4] sm:$0xff]
    %v2367 = vld [vmem:[%s7 + $0x6ec] sm:$0xff]
    %v2368 = vld [vmem:[%s7 + $0x6f4] sm:$0xff]
    %v2369 = vld [vmem:[%s7 + $0x6fc] sm:$0xf]
    %v2370 = vld [vmem:[%s8] sm:$0x7f]
    %v2372 = vperm.slane %v2370, 0
    %v2373 = vperm.slane %v2370, 1
    %v2374 = vperm.slane %v2370, 2
    %v2375 = vperm.slane %v2370, 3
    %v2376 = vperm.slane %v2370, 4
    %v2377 = vperm.slane %v2370, 5
    %v2378 = vperm.slane %v2370, 6
    %v2642 = vunpack.c.l.b16 %v2114
    %v2643 = vunpack.c.h.b16 %v2114
    %v2644 = vunpack.c.l.b16 %v2115
    %v2645 = vunpack.c.h.b16 %v2115
    %v2646 = vunpack.c.l.b16 %v2116
    %v2647 = vunpack.c.h.b16 %v2116
    %v2648 = vunpack.c.l.b16 %v2117
    %v2649 = vunpack.c.l.b16 %v2118
    %v2650 = vunpack.c.h.b16 %v2118
    %v2651 = vunpack.c.l.b16 %v2119
    %v2652 = vunpack.c.h.b16 %v2119
    %v2653 = vunpack.c.l.b16 %v2120
    %v2654 = vunpack.c.h.b16 %v2120
    %v2655 = vunpack.c.l.b16 %v2121
    %v2656 = vunpack.c.l.b16 %v2122
    %v2657 = vunpack.c.h.b16 %v2122
    %v2658 = vunpack.c.l.b16 %v2123
    %v2659 = vunpack.c.h.b16 %v2123
    %v2660 = vunpack.c.l.b16 %v2124
    %v2661 = vunpack.c.h.b16 %v2124
    %v2662 = vunpack.c.l.b16 %v2125
    %v2663 = vunpack.c.l.b16 %v2126
    %v2664 = vunpack.c.h.b16 %v2126
    %v2665 = vunpack.c.l.b16 %v2127
    %v2666 = vunpack.c.h.b16 %v2127
    %v2667 = vunpack.c.l.b16 %v2128
    %v2668 = vunpack.c.h.b16 %v2128
    %v2669 = vunpack.c.l.b16 %v2129
    %v2670 = vunpack.c.l.b16 %v2130
    %v2671 = vunpack.c.h.b16 %v2130
    %v2672 = vunpack.c.l.b16 %v2131
    %v2673 = vunpack.c.h.b16 %v2131
    %v2674 = vunpack.c.l.b16 %v2132
    %v2675 = vunpack.c.h.b16 %v2132
    %v2676 = vunpack.c.l.b16 %v2133
    %v2677 = vunpack.c.l.b16 %v2134
    %v2678 = vunpack.c.h.b16 %v2134
    %v2679 = vunpack.c.l.b16 %v2135
    %v2680 = vunpack.c.h.b16 %v2135
    %v2681 = vunpack.c.l.b16 %v2136
    %v2682 = vunpack.c.h.b16 %v2136
    %v2683 = vunpack.c.l.b16 %v2137
    %v2684 = vunpack.c.l.b16 %v2138
    %v2685 = vunpack.c.h.b16 %v2138
    %v2686 = vunpack.c.l.b16 %v2139
    %v2687 = vunpack.c.h.b16 %v2139
    %v2688 = vunpack.c.l.b16 %v2140
    %v2689 = vunpack.c.h.b16 %v2140
    %v2690 = vunpack.c.l.b16 %v2141
    %v2691 = vunpack.c.l.b16 %v2142
    %v2692 = vunpack.c.h.b16 %v2142
    %v2693 = vunpack.c.l.b16 %v2143
    %v2694 = vunpack.c.h.b16 %v2143
    %v2695 = vunpack.c.l.b16 %v2144
    %v2696 = vunpack.c.h.b16 %v2144
    %v2697 = vunpack.c.l.b16 %v2145
    %v2698 = vunpack.c.l.b16 %v2146
    %v2699 = vunpack.c.h.b16 %v2146
    %v2700 = vunpack.c.l.b16 %v2147
    %v2701 = vunpack.c.h.b16 %v2147
    %v2702 = vunpack.c.l.b16 %v2148
    %v2703 = vunpack.c.h.b16 %v2148
    %v2704 = vunpack.c.l.b16 %v2149
    %v2705 = vunpack.c.l.b16 %v2150
    %v2706 = vunpack.c.h.b16 %v2150
    %v2707 = vunpack.c.l.b16 %v2151
    %v2708 = vunpack.c.h.b16 %v2151
    %v2709 = vunpack.c.l.b16 %v2152
    %v2710 = vunpack.c.h.b16 %v2152
    %v2711 = vunpack.c.l.b16 %v2153
    %v2712 = vunpack.c.l.b16 %v2154
    %v2713 = vunpack.c.h.b16 %v2154
    %v2714 = vunpack.c.l.b16 %v2155
    %v2715 = vunpack.c.h.b16 %v2155
    %v2716 = vunpack.c.l.b16 %v2156
    %v2717 = vunpack.c.h.b16 %v2156
    %v2718 = vunpack.c.l.b16 %v2157
    %v2719 = vunpack.c.l.b16 %v2158
    %v2720 = vunpack.c.h.b16 %v2158
    %v2721 = vunpack.c.l.b16 %v2159
    %v2722 = vunpack.c.h.b16 %v2159
    %v2723 = vunpack.c.l.b16 %v2160
    %v2724 = vunpack.c.h.b16 %v2160
    %v2725 = vunpack.c.l.b16 %v2161
    %v2726 = vunpack.c.l.b16 %v2162
    %v2727 = vunpack.c.h.b16 %v2162
    %v2728 = vunpack.c.l.b16 %v2163
    %v2729 = vunpack.c.h.b16 %v2163
    %v2730 = vunpack.c.l.b16 %v2164
    %v2731 = vunpack.c.h.b16 %v2164
    %v2732 = vunpack.c.l.b16 %v2165
    %v2733 = vunpack.c.l.b16 %v2166
    %v2734 = vunpack.c.h.b16 %v2166
    %v2735 = vunpack.c.l.b16 %v2167
    %v2736 = vunpack.c.h.b16 %v2167
    %v2737 = vunpack.c.l.b16 %v2168
    %v2738 = vunpack.c.h.b16 %v2168
    %v2739 = vunpack.c.l.b16 %v2169
    %v2740 = vunpack.c.l.b16 %v2170
    %v2741 = vunpack.c.h.b16 %v2170
    %v2742 = vunpack.c.l.b16 %v2171
    %v2743 = vunpack.c.h.b16 %v2171
    %v2744 = vunpack.c.l.b16 %v2172
    %v2745 = vunpack.c.h.b16 %v2172
    %v2746 = vunpack.c.l.b16 %v2173
    %v2747 = vunpack.c.l.b16 %v2174
    %v2748 = vunpack.c.h.b16 %v2174
    %v2749 = vunpack.c.l.b16 %v2175
    %v2750 = vunpack.c.h.b16 %v2175
    %v2751 = vunpack.c.l.b16 %v2176
    %v2752 = vunpack.c.h.b16 %v2176
    %v2753 = vunpack.c.l.b16 %v2177
    %v2754 = vunpack.c.l.b16 %v2178
    %v2755 = vunpack.c.h.b16 %v2178
    %v2756 = vunpack.c.l.b16 %v2179
    %v2757 = vunpack.c.h.b16 %v2179
    %v2758 = vunpack.c.l.b16 %v2180
    %v2759 = vunpack.c.h.b16 %v2180
    %v2760 = vunpack.c.l.b16 %v2181
    %v2761 = vunpack.c.l.b16 %v2182
    %v2762 = vunpack.c.h.b16 %v2182
    %v2763 = vunpack.c.l.b16 %v2183
    %v2764 = vunpack.c.h.b16 %v2183
    %v2765 = vunpack.c.l.b16 %v2184
    %v2766 = vunpack.c.h.b16 %v2184
    %v2767 = vunpack.c.l.b16 %v2185
    %v2768 = vunpack.c.l.b16 %v2186
    %v2769 = vunpack.c.h.b16 %v2186
    %v2770 = vunpack.c.l.b16 %v2187
    %v2771 = vunpack.c.h.b16 %v2187
    %v2772 = vunpack.c.l.b16 %v2188
    %v2773 = vunpack.c.h.b16 %v2188
    %v2774 = vunpack.c.l.b16 %v2189
    %v2775 = vunpack.c.l.b16 %v2190
    %v2776 = vunpack.c.h.b16 %v2190
    %v2777 = vunpack.c.l.b16 %v2191
    %v2778 = vunpack.c.h.b16 %v2191
    %v2779 = vunpack.c.l.b16 %v2192
    %v2780 = vunpack.c.h.b16 %v2192
    %v2781 = vunpack.c.l.b16 %v2193
    %v2782 = vunpack.c.l.b16 %v2194
    %v2783 = vunpack.c.h.b16 %v2194
    %v2784 = vunpack.c.l.b16 %v2195
    %v2785 = vunpack.c.h.b16 %v2195
    %v2786 = vunpack.c.l.b16 %v2196
    %v2787 = vunpack.c.h.b16 %v2196
    %v2788 = vunpack.c.l.b16 %v2197
    %v2789 = vunpack.c.l.b16 %v2198
    %v2790 = vunpack.c.h.b16 %v2198
    %v2791 = vunpack.c.l.b16 %v2199
    %v2792 = vunpack.c.h.b16 %v2199
    %v2793 = vunpack.c.l.b16 %v2200
    %v2794 = vunpack.c.h.b16 %v2200
    %v2795 = vunpack.c.l.b16 %v2201
    %v2796 = vunpack.c.l.b16 %v2202
    %v2797 = vunpack.c.h.b16 %v2202
    %v2798 = vunpack.c.l.b16 %v2203
    %v2799 = vunpack.c.h.b16 %v2203
    %v2800 = vunpack.c.l.b16 %v2204
    %v2801 = vunpack.c.h.b16 %v2204
    %v2802 = vunpack.c.l.b16 %v2205
    %v2803 = vunpack.c.l.b16 %v2206
    %v2804 = vunpack.c.h.b16 %v2206
    %v2805 = vunpack.c.l.b16 %v2207
    %v2806 = vunpack.c.h.b16 %v2207
    %v2807 = vunpack.c.l.b16 %v2208
    %v2808 = vunpack.c.h.b16 %v2208
    %v2809 = vunpack.c.l.b16 %v2209
    %v2810 = vunpack.c.l.b16 %v2210
    %v2811 = vunpack.c.h.b16 %v2210
    %v2812 = vunpack.c.l.b16 %v2211
    %v2813 = vunpack.c.h.b16 %v2211
    %v2814 = vunpack.c.l.b16 %v2212
    %v2815 = vunpack.c.h.b16 %v2212
    %v2816 = vunpack.c.l.b16 %v2213
    %v2817 = vunpack.c.l.b16 %v2214
    %v2818 = vunpack.c.h.b16 %v2214
    %v2819 = vunpack.c.l.b16 %v2215
    %v2820 = vunpack.c.h.b16 %v2215
    %v2821 = vunpack.c.l.b16 %v2216
    %v2822 = vunpack.c.h.b16 %v2216
    %v2823 = vunpack.c.l.b16 %v2217
    %v2824 = vunpack.c.l.b16 %v2218
    %v2825 = vunpack.c.h.b16 %v2218
    %v2826 = vunpack.c.l.b16 %v2219
    %v2827 = vunpack.c.h.b16 %v2219
    %v2828 = vunpack.c.l.b16 %v2220
    %v2829 = vunpack.c.h.b16 %v2220
    %v2830 = vunpack.c.l.b16 %v2221
    %v2831 = vunpack.c.l.b16 %v2222
    %v2832 = vunpack.c.h.b16 %v2222
    %v2833 = vunpack.c.l.b16 %v2223
    %v2834 = vunpack.c.h.b16 %v2223
    %v2835 = vunpack.c.l.b16 %v2224
    %v2836 = vunpack.c.h.b16 %v2224
    %v2837 = vunpack.c.l.b16 %v2225
    %v2838 = vunpack.c.l.b16 %v2226
    %v2839 = vunpack.c.h.b16 %v2226
    %v2840 = vunpack.c.l.b16 %v2227
    %v2841 = vunpack.c.h.b16 %v2227
    %v2842 = vunpack.c.l.b16 %v2228
    %v2843 = vunpack.c.h.b16 %v2228
    %v2844 = vunpack.c.l.b16 %v2229
    %v2845 = vunpack.c.l.b16 %v2230
    %v2846 = vunpack.c.h.b16 %v2230
    %v2847 = vunpack.c.l.b16 %v2231
    %v2848 = vunpack.c.h.b16 %v2231
    %v2849 = vunpack.c.l.b16 %v2232
    %v2850 = vunpack.c.h.b16 %v2232
    %v2851 = vunpack.c.l.b16 %v2233
    %v2852 = vunpack.c.l.b16 %v2234
    %v2853 = vunpack.c.h.b16 %v2234
    %v2854 = vunpack.c.l.b16 %v2235
    %v2855 = vunpack.c.h.b16 %v2235
    %v2856 = vunpack.c.l.b16 %v2236
    %v2857 = vunpack.c.h.b16 %v2236
    %v2858 = vunpack.c.l.b16 %v2237
    %v2859 = vunpack.c.l.b16 %v2238
    %v2860 = vunpack.c.h.b16 %v2238
    %v2861 = vunpack.c.l.b16 %v2239
    %v2862 = vunpack.c.h.b16 %v2239
    %v2863 = vunpack.c.l.b16 %v2240
    %v2864 = vunpack.c.h.b16 %v2240
    %v2865 = vunpack.c.l.b16 %v2241
    %v2866 = vunpack.c.l.b16 %v2242
    %v2867 = vunpack.c.h.b16 %v2242
    %v2868 = vunpack.c.l.b16 %v2243
    %v2869 = vunpack.c.h.b16 %v2243
    %v2870 = vunpack.c.l.b16 %v2244
    %v2871 = vunpack.c.h.b16 %v2244
    %v2872 = vunpack.c.l.b16 %v2245
    %v2873 = vunpack.c.l.b16 %v2246
    %v2874 = vunpack.c.h.b16 %v2246
    %v2875 = vunpack.c.l.b16 %v2247
    %v2876 = vunpack.c.h.b16 %v2247
    %v2877 = vunpack.c.l.b16 %v2248
    %v2878 = vunpack.c.h.b16 %v2248
    %v2879 = vunpack.c.l.b16 %v2249
    %v2880 = vunpack.c.l.b16 %v2250
    %v2881 = vunpack.c.h.b16 %v2250
    %v2882 = vunpack.c.l.b16 %v2251
    %v2883 = vunpack.c.h.b16 %v2251
    %v2884 = vunpack.c.l.b16 %v2252
    %v2885 = vunpack.c.h.b16 %v2252
    %v2886 = vunpack.c.l.b16 %v2253
    %v2887 = vunpack.c.l.b16 %v2254
    %v2888 = vunpack.c.h.b16 %v2254
    %v2889 = vunpack.c.l.b16 %v2255
    %v2890 = vunpack.c.h.b16 %v2255
    %v2891 = vunpack.c.l.b16 %v2256
    %v2892 = vunpack.c.h.b16 %v2256
    %v2893 = vunpack.c.l.b16 %v2257
    %v2894 = vunpack.c.l.b16 %v2258
    %v2895 = vunpack.c.h.b16 %v2258
    %v2896 = vunpack.c.l.b16 %v2259
    %v2897 = vunpack.c.h.b16 %v2259
    %v2898 = vunpack.c.l.b16 %v2260
    %v2899 = vunpack.c.h.b16 %v2260
    %v2900 = vunpack.c.l.b16 %v2261
    %v2901 = vunpack.c.l.b16 %v2262
    %v2902 = vunpack.c.h.b16 %v2262
    %v2903 = vunpack.c.l.b16 %v2263
    %v2904 = vunpack.c.h.b16 %v2263
    %v2905 = vunpack.c.l.b16 %v2264
    %v2906 = vunpack.c.h.b16 %v2264
    %v2907 = vunpack.c.l.b16 %v2265
    %v2908 = vunpack.c.l.b16 %v2266
    %v2909 = vunpack.c.h.b16 %v2266
    %v2910 = vunpack.c.l.b16 %v2267
    %v2911 = vunpack.c.h.b16 %v2267
    %v2912 = vunpack.c.l.b16 %v2268
    %v2913 = vunpack.c.h.b16 %v2268
    %v2914 = vunpack.c.l.b16 %v2269
    %v2915 = vunpack.c.l.b16 %v2270
    %v2916 = vunpack.c.h.b16 %v2270
    %v2917 = vunpack.c.l.b16 %v2271
    %v2918 = vunpack.c.h.b16 %v2271
    %v2919 = vunpack.c.l.b16 %v2272
    %v2920 = vunpack.c.h.b16 %v2272
    %v2921 = vunpack.c.l.b16 %v2273
    %v2922 = vunpack.c.l.b16 %v2274
    %v2923 = vunpack.c.h.b16 %v2274
    %v2924 = vunpack.c.l.b16 %v2275
    %v2925 = vunpack.c.h.b16 %v2275
    %v2926 = vunpack.c.l.b16 %v2276
    %v2927 = vunpack.c.h.b16 %v2276
    %v2928 = vunpack.c.l.b16 %v2277
    %v2929 = vunpack.c.l.b16 %v2278
    %v2930 = vunpack.c.h.b16 %v2278
    %v2931 = vunpack.c.l.b16 %v2279
    %v2932 = vunpack.c.h.b16 %v2279
    %v2933 = vunpack.c.l.b16 %v2280
    %v2934 = vunpack.c.h.b16 %v2280
    %v2935 = vunpack.c.l.b16 %v2281
    %v2936 = vunpack.c.l.b16 %v2282
    %v2937 = vunpack.c.h.b16 %v2282
    %v2938 = vunpack.c.l.b16 %v2283
    %v2939 = vunpack.c.h.b16 %v2283
    %v2940 = vunpack.c.l.b16 %v2284
    %v2941 = vunpack.c.h.b16 %v2284
    %v2942 = vunpack.c.l.b16 %v2285
    %v2943 = vunpack.c.l.b16 %v2286
    %v2944 = vunpack.c.h.b16 %v2286
    %v2945 = vunpack.c.l.b16 %v2287
    %v2946 = vunpack.c.h.b16 %v2287
    %v2947 = vunpack.c.l.b16 %v2288
    %v2948 = vunpack.c.h.b16 %v2288
    %v2949 = vunpack.c.l.b16 %v2289
    %v2950 = vunpack.c.l.b16 %v2290
    %v2951 = vunpack.c.h.b16 %v2290
    %v2952 = vunpack.c.l.b16 %v2291
    %v2953 = vunpack.c.h.b16 %v2291
    %v2954 = vunpack.c.l.b16 %v2292
    %v2955 = vunpack.c.h.b16 %v2292
    %v2956 = vunpack.c.l.b16 %v2293
    %v2957 = vunpack.c.l.b16 %v2294
    %v2958 = vunpack.c.h.b16 %v2294
    %v2959 = vunpack.c.l.b16 %v2295
    %v2960 = vunpack.c.h.b16 %v2295
    %v2961 = vunpack.c.l.b16 %v2296
    %v2962 = vunpack.c.h.b16 %v2296
    %v2963 = vunpack.c.l.b16 %v2297
    %v2964 = vunpack.c.l.b16 %v2298
    %v2965 = vunpack.c.h.b16 %v2298
    %v2966 = vunpack.c.l.b16 %v2299
    %v2967 = vunpack.c.h.b16 %v2299
    %v2968 = vunpack.c.l.b16 %v2300
    %v2969 = vunpack.c.h.b16 %v2300
    %v2970 = vunpack.c.l.b16 %v2301
    %v2971 = vunpack.c.l.b16 %v2302
    %v2972 = vunpack.c.h.b16 %v2302
    %v2973 = vunpack.c.l.b16 %v2303
    %v2974 = vunpack.c.h.b16 %v2303
    %v2975 = vunpack.c.l.b16 %v2304
    %v2976 = vunpack.c.h.b16 %v2304
    %v2977 = vunpack.c.l.b16 %v2305
    %v2978 = vunpack.c.l.b16 %v2306
    %v2979 = vunpack.c.h.b16 %v2306
    %v2980 = vunpack.c.l.b16 %v2307
    %v2981 = vunpack.c.h.b16 %v2307
    %v2982 = vunpack.c.l.b16 %v2308
    %v2983 = vunpack.c.h.b16 %v2308
    %v2984 = vunpack.c.l.b16 %v2309
    %v2985 = vunpack.c.l.b16 %v2310
    %v2986 = vunpack.c.h.b16 %v2310
    %v2987 = vunpack.c.l.b16 %v2311
    %v2988 = vunpack.c.h.b16 %v2311
    %v2989 = vunpack.c.l.b16 %v2312
    %v2990 = vunpack.c.h.b16 %v2312
    %v2991 = vunpack.c.l.b16 %v2313
    %v2992 = vunpack.c.l.b16 %v2314
    %v2993 = vunpack.c.h.b16 %v2314
    %v2994 = vunpack.c.l.b16 %v2315
    %v2995 = vunpack.c.h.b16 %v2315
    %v2996 = vunpack.c.l.b16 %v2316
    %v2997 = vunpack.c.h.b16 %v2316
    %v2998 = vunpack.c.l.b16 %v2317
    %v2999 = vunpack.c.l.b16 %v2318
    %v3000 = vunpack.c.h.b16 %v2318
    %v3001 = vunpack.c.l.b16 %v2319
    %v3002 = vunpack.c.h.b16 %v2319
    %v3003 = vunpack.c.l.b16 %v2320
    %v3004 = vunpack.c.h.b16 %v2320
    %v3005 = vunpack.c.l.b16 %v2321
    %v3006 = vunpack.c.l.b16 %v2322
    %v3007 = vunpack.c.h.b16 %v2322
    %v3008 = vunpack.c.l.b16 %v2323
    %v3009 = vunpack.c.h.b16 %v2323
    %v3010 = vunpack.c.l.b16 %v2324
    %v3011 = vunpack.c.h.b16 %v2324
    %v3012 = vunpack.c.l.b16 %v2325
    %v3013 = vunpack.c.l.b16 %v2326
    %v3014 = vunpack.c.h.b16 %v2326
    %v3015 = vunpack.c.l.b16 %v2327
    %v3016 = vunpack.c.h.b16 %v2327
    %v3017 = vunpack.c.l.b16 %v2328
    %v3018 = vunpack.c.h.b16 %v2328
    %v3019 = vunpack.c.l.b16 %v2329
    %v3020 = vunpack.c.l.b16 %v2330
    %v3021 = vunpack.c.h.b16 %v2330
    %v3022 = vunpack.c.l.b16 %v2331
    %v3023 = vunpack.c.h.b16 %v2331
    %v3024 = vunpack.c.l.b16 %v2332
    %v3025 = vunpack.c.h.b16 %v2332
    %v3026 = vunpack.c.l.b16 %v2333
    %v3027 = vunpack.c.l.b16 %v2334
    %v3028 = vunpack.c.h.b16 %v2334
    %v3029 = vunpack.c.l.b16 %v2335
    %v3030 = vunpack.c.h.b16 %v2335
    %v3031 = vunpack.c.l.b16 %v2336
    %v3032 = vunpack.c.h.b16 %v2336
    %v3033 = vunpack.c.l.b16 %v2337
    %v3034 = vunpack.c.l.b16 %v2338
    %v3035 = vunpack.c.h.b16 %v2338
    %v3036 = vunpack.c.l.b16 %v2339
    %v3037 = vunpack.c.h.b16 %v2339
    %v3038 = vunpack.c.l.b16 %v2340
    %v3039 = vunpack.c.h.b16 %v2340
    %v3040 = vunpack.c.l.b16 %v2341
    %v3041 = vunpack.c.l.b16 %v2342
    %v3042 = vunpack.c.h.b16 %v2342
    %v3043 = vunpack.c.l.b16 %v2343
    %v3044 = vunpack.c.h.b16 %v2343
    %v3045 = vunpack.c.l.b16 %v2344
    %v3046 = vunpack.c.h.b16 %v2344
    %v3047 = vunpack.c.l.b16 %v2345
    %v3048 = vunpack.c.l.b16 %v2346
    %v3049 = vunpack.c.h.b16 %v2346
    %v3050 = vunpack.c.l.b16 %v2347
    %v3051 = vunpack.c.h.b16 %v2347
    %v3052 = vunpack.c.l.b16 %v2348
    %v3053 = vunpack.c.h.b16 %v2348
    %v3054 = vunpack.c.l.b16 %v2349
    %v3055 = vunpack.c.l.b16 %v2350
    %v3056 = vunpack.c.h.b16 %v2350
    %v3057 = vunpack.c.l.b16 %v2351
    %v3058 = vunpack.c.h.b16 %v2351
    %v3059 = vunpack.c.l.b16 %v2352
    %v3060 = vunpack.c.h.b16 %v2352
    %v3061 = vunpack.c.l.b16 %v2353
    %v3062 = vunpack.c.l.b16 %v2354
    %v3063 = vunpack.c.h.b16 %v2354
    %v3064 = vunpack.c.l.b16 %v2355
    %v3065 = vunpack.c.h.b16 %v2355
    %v3066 = vunpack.c.l.b16 %v2356
    %v3067 = vunpack.c.h.b16 %v2356
    %v3068 = vunpack.c.l.b16 %v2357
    %v3069 = vunpack.c.l.b16 %v2358
    %v3070 = vunpack.c.h.b16 %v2358
    %v3071 = vunpack.c.l.b16 %v2359
    %v3072 = vunpack.c.h.b16 %v2359
    %v3073 = vunpack.c.l.b16 %v2360
    %v3074 = vunpack.c.h.b16 %v2360
    %v3075 = vunpack.c.l.b16 %v2361
    %v3076 = vunpack.c.l.b16 %v2362
    %v3077 = vunpack.c.h.b16 %v2362
    %v3078 = vunpack.c.l.b16 %v2363
    %v3079 = vunpack.c.h.b16 %v2363
    %v3080 = vunpack.c.l.b16 %v2364
    %v3081 = vunpack.c.h.b16 %v2364
    %v3082 = vunpack.c.l.b16 %v2365
    %v3083 = vunpack.c.l.b16 %v2366
    %v3084 = vunpack.c.h.b16 %v2366
    %v3085 = vunpack.c.l.b16 %v2367
    %v3086 = vunpack.c.h.b16 %v2367
    %v3087 = vunpack.c.l.b16 %v2368
    %v3088 = vunpack.c.h.b16 %v2368
    %v3089 = vunpack.c.l.b16 %v2369
    %v3090 = vpack.c.b16 %v2649, %v2642
    %v3091 = vpack.c.b16 %v2650, %v2643
    %v3092 = vpack.c.b16 %v2651, %v2644
    %v3093 = vpack.c.b16 %v2652, %v2645
    %v3094 = vpack.c.b16 %v2653, %v2646
    %v3095 = vpack.c.b16 %v2654, %v2647
    %v3096 = vpack.c.b16 %v2655, %v2648
    %v3097 = vpack.c.b16 %v2663, %v2656
    %v3098 = vpack.c.b16 %v2664, %v2657
    %v3099 = vpack.c.b16 %v2665, %v2658
    %v3100 = vpack.c.b16 %v2666, %v2659
    %v3101 = vpack.c.b16 %v2667, %v2660
    %v3102 = vpack.c.b16 %v2668, %v2661
    %v3103 = vpack.c.b16 %v2669, %v2662
    %v3104 = vpack.c.b16 %v2677, %v2670
    %v3105 = vpack.c.b16 %v2678, %v2671
    %v3106 = vpack.c.b16 %v2679, %v2672
    %v3107 = vpack.c.b16 %v2680, %v2673
    %v3108 = vpack.c.b16 %v2681, %v2674
    %v3109 = vpack.c.b16 %v2682, %v2675
    %v3110 = vpack.c.b16 %v2683, %v2676
    %v3111 = vpack.c.b16 %v2691, %v2684
    %v3112 = vpack.c.b16 %v2692, %v2685
    %v3113 = vpack.c.b16 %v2693, %v2686
    %v3114 = vpack.c.b16 %v2694, %v2687
    %v3115 = vpack.c.b16 %v2695, %v2688
    %v3116 = vpack.c.b16 %v2696, %v2689
    %v3117 = vpack.c.b16 %v2697, %v2690
    %v3118 = vpack.c.b16 %v2705, %v2698
    %v3119 = vpack.c.b16 %v2706, %v2699
    %v3120 = vpack.c.b16 %v2707, %v2700
    %v3121 = vpack.c.b16 %v2708, %v2701
    %v3122 = vpack.c.b16 %v2709, %v2702
    %v3123 = vpack.c.b16 %v2710, %v2703
    %v3124 = vpack.c.b16 %v2711, %v2704
    %v3125 = vpack.c.b16 %v2719, %v2712
    %v3126 = vpack.c.b16 %v2720, %v2713
    %v3127 = vpack.c.b16 %v2721, %v2714
    %v3128 = vpack.c.b16 %v2722, %v2715
    %v3129 = vpack.c.b16 %v2723, %v2716
    %v3130 = vpack.c.b16 %v2724, %v2717
    %v3131 = vpack.c.b16 %v2725, %v2718
    %v3132 = vpack.c.b16 %v2733, %v2726
    %v3133 = vpack.c.b16 %v2734, %v2727
    %v3134 = vpack.c.b16 %v2735, %v2728
    %v3135 = vpack.c.b16 %v2736, %v2729
    %v3136 = vpack.c.b16 %v2737, %v2730
    %v3137 = vpack.c.b16 %v2738, %v2731
    %v3138 = vpack.c.b16 %v2739, %v2732
    %v3139 = vpack.c.b16 %v2747, %v2740
    %v3140 = vpack.c.b16 %v2748, %v2741
    %v3141 = vpack.c.b16 %v2749, %v2742
    %v3142 = vpack.c.b16 %v2750, %v2743
    %v3143 = vpack.c.b16 %v2751, %v2744
    %v3144 = vpack.c.b16 %v2752, %v2745
    %v3145 = vpack.c.b16 %v2753, %v2746
    %v3146 = vpack.c.b16 %v2761, %v2754
    %v3147 = vpack.c.b16 %v2762, %v2755
    %v3148 = vpack.c.b16 %v2763, %v2756
    %v3149 = vpack.c.b16 %v2764, %v2757
    %v3150 = vpack.c.b16 %v2765, %v2758
    %v3151 = vpack.c.b16 %v2766, %v2759
    %v3152 = vpack.c.b16 %v2767, %v2760
    %v3153 = vpack.c.b16 %v2775, %v2768
    %v3154 = vpack.c.b16 %v2776, %v2769
    %v3155 = vpack.c.b16 %v2777, %v2770
    %v3156 = vpack.c.b16 %v2778, %v2771
    %v3157 = vpack.c.b16 %v2779, %v2772
    %v3158 = vpack.c.b16 %v2780, %v2773
    %v3159 = vpack.c.b16 %v2781, %v2774
    %v3160 = vpack.c.b16 %v2789, %v2782
    %v3161 = vpack.c.b16 %v2790, %v2783
    %v3162 = vpack.c.b16 %v2791, %v2784
    %v3163 = vpack.c.b16 %v2792, %v2785
    %v3164 = vpack.c.b16 %v2793, %v2786
    %v3165 = vpack.c.b16 %v2794, %v2787
    %v3166 = vpack.c.b16 %v2795, %v2788
    %v3167 = vpack.c.b16 %v2803, %v2796
    %v3168 = vpack.c.b16 %v2804, %v2797
    %v3169 = vpack.c.b16 %v2805, %v2798
    %v3170 = vpack.c.b16 %v2806, %v2799
    %v3171 = vpack.c.b16 %v2807, %v2800
    %v3172 = vpack.c.b16 %v2808, %v2801
    %v3173 = vpack.c.b16 %v2809, %v2802
    %v3174 = vpack.c.b16 %v2817, %v2810
    %v3175 = vpack.c.b16 %v2818, %v2811
    %v3176 = vpack.c.b16 %v2819, %v2812
    %v3177 = vpack.c.b16 %v2820, %v2813
    %v3178 = vpack.c.b16 %v2821, %v2814
    %v3179 = vpack.c.b16 %v2822, %v2815
    %v3180 = vpack.c.b16 %v2823, %v2816
    %v3181 = vpack.c.b16 %v2831, %v2824
    %v3182 = vpack.c.b16 %v2832, %v2825
    %v3183 = vpack.c.b16 %v2833, %v2826
    %v3184 = vpack.c.b16 %v2834, %v2827
    %v3185 = vpack.c.b16 %v2835, %v2828
    %v3186 = vpack.c.b16 %v2836, %v2829
    %v3187 = vpack.c.b16 %v2837, %v2830
    %v3188 = vpack.c.b16 %v2845, %v2838
    %v3189 = vpack.c.b16 %v2846, %v2839
    %v3190 = vpack.c.b16 %v2847, %v2840
    %v3191 = vpack.c.b16 %v2848, %v2841
    %v3192 = vpack.c.b16 %v2849, %v2842
    %v3193 = vpack.c.b16 %v2850, %v2843
    %v3194 = vpack.c.b16 %v2851, %v2844
    %v3195 = vpack.c.b16 %v2859, %v2852
    %v3196 = vpack.c.b16 %v2860, %v2853
    %v3197 = vpack.c.b16 %v2861, %v2854
    %v3198 = vpack.c.b16 %v2862, %v2855
    %v3199 = vpack.c.b16 %v2863, %v2856
    %v3200 = vpack.c.b16 %v2864, %v2857
    %v3201 = vpack.c.b16 %v2865, %v2858
    %v3202 = vpack.c.b16 %v2873, %v2866
    %v3203 = vpack.c.b16 %v2874, %v2867
    %v3204 = vpack.c.b16 %v2875, %v2868
    %v3205 = vpack.c.b16 %v2876, %v2869
    %v3206 = vpack.c.b16 %v2877, %v2870
    %v3207 = vpack.c.b16 %v2878, %v2871
    %v3208 = vpack.c.b16 %v2879, %v2872
    %v3209 = vpack.c.b16 %v2887, %v2880
    %v3210 = vpack.c.b16 %v2888, %v2881
    %v3211 = vpack.c.b16 %v2889, %v2882
    %v3212 = vpack.c.b16 %v2890, %v2883
    %v3213 = vpack.c.b16 %v2891, %v2884
    %v3214 = vpack.c.b16 %v2892, %v2885
    %v3215 = vpack.c.b16 %v2893, %v2886
    %v3216 = vpack.c.b16 %v2901, %v2894
    %v3217 = vpack.c.b16 %v2902, %v2895
    %v3218 = vpack.c.b16 %v2903, %v2896
    %v3219 = vpack.c.b16 %v2904, %v2897
    %v3220 = vpack.c.b16 %v2905, %v2898
    %v3221 = vpack.c.b16 %v2906, %v2899
    %v3222 = vpack.c.b16 %v2907, %v2900
    %v3223 = vpack.c.b16 %v2915, %v2908
    %v3224 = vpack.c.b16 %v2916, %v2909
    %v3225 = vpack.c.b16 %v2917, %v2910
    %v3226 = vpack.c.b16 %v2918, %v2911
    %v3227 = vpack.c.b16 %v2919, %v2912
    %v3228 = vpack.c.b16 %v2920, %v2913
    %v3229 = vpack.c.b16 %v2921, %v2914
    %v3230 = vpack.c.b16 %v2929, %v2922
    %v3231 = vpack.c.b16 %v2930, %v2923
    %v3232 = vpack.c.b16 %v2931, %v2924
    %v3233 = vpack.c.b16 %v2932, %v2925
    %v3234 = vpack.c.b16 %v2933, %v2926
    %v3235 = vpack.c.b16 %v2934, %v2927
    %v3236 = vpack.c.b16 %v2935, %v2928
    %v3237 = vpack.c.b16 %v2943, %v2936
    %v3238 = vpack.c.b16 %v2944, %v2937
    %v3239 = vpack.c.b16 %v2945, %v2938
    %v3240 = vpack.c.b16 %v2946, %v2939
    %v3241 = vpack.c.b16 %v2947, %v2940
    %v3242 = vpack.c.b16 %v2948, %v2941
    %v3243 = vpack.c.b16 %v2949, %v2942
    %v3244 = vpack.c.b16 %v2957, %v2950
    %v3245 = vpack.c.b16 %v2958, %v2951
    %v3246 = vpack.c.b16 %v2959, %v2952
    %v3247 = vpack.c.b16 %v2960, %v2953
    %v3248 = vpack.c.b16 %v2961, %v2954
    %v3249 = vpack.c.b16 %v2962, %v2955
    %v3250 = vpack.c.b16 %v2963, %v2956
    %v3251 = vpack.c.b16 %v2971, %v2964
    %v3252 = vpack.c.b16 %v2972, %v2965
    %v3253 = vpack.c.b16 %v2973, %v2966
    %v3254 = vpack.c.b16 %v2974, %v2967
    %v3255 = vpack.c.b16 %v2975, %v2968
    %v3256 = vpack.c.b16 %v2976, %v2969
    %v3257 = vpack.c.b16 %v2977, %v2970
    %v3258 = vpack.c.b16 %v2985, %v2978
    %v3259 = vpack.c.b16 %v2986, %v2979
    %v3260 = vpack.c.b16 %v2987, %v2980
    %v3261 = vpack.c.b16 %v2988, %v2981
    %v3262 = vpack.c.b16 %v2989, %v2982
    %v3263 = vpack.c.b16 %v2990, %v2983
    %v3264 = vpack.c.b16 %v2991, %v2984
    %v3265 = vpack.c.b16 %v2999, %v2992
    %v3266 = vpack.c.b16 %v3000, %v2993
    %v3267 = vpack.c.b16 %v3001, %v2994
    %v3268 = vpack.c.b16 %v3002, %v2995
    %v3269 = vpack.c.b16 %v3003, %v2996
    %v3270 = vpack.c.b16 %v3004, %v2997
    %v3271 = vpack.c.b16 %v3005, %v2998
    %v3272 = vpack.c.b16 %v3013, %v3006
    %v3273 = vpack.c.b16 %v3014, %v3007
    %v3274 = vpack.c.b16 %v3015, %v3008
    %v3275 = vpack.c.b16 %v3016, %v3009
    %v3276 = vpack.c.b16 %v3017, %v3010
    %v3277 = vpack.c.b16 %v3018, %v3011
    %v3278 = vpack.c.b16 %v3019, %v3012
    %v3279 = vpack.c.b16 %v3027, %v3020
    %v3280 = vpack.c.b16 %v3028, %v3021
    %v3281 = vpack.c.b16 %v3029, %v3022
    %v3282 = vpack.c.b16 %v3030, %v3023
    %v3283 = vpack.c.b16 %v3031, %v3024
    %v3284 = vpack.c.b16 %v3032, %v3025
    %v3285 = vpack.c.b16 %v3033, %v3026
    %v3286 = vpack.c.b16 %v3041, %v3034
    %v3287 = vpack.c.b16 %v3042, %v3035
    %v3288 = vpack.c.b16 %v3043, %v3036
    %v3289 = vpack.c.b16 %v3044, %v3037
    %v3290 = vpack.c.b16 %v3045, %v3038
    %v3291 = vpack.c.b16 %v3046, %v3039
    %v3292 = vpack.c.b16 %v3047, %v3040
    %v3293 = vpack.c.b16 %v3055, %v3048
    %v3294 = vpack.c.b16 %v3056, %v3049
    %v3295 = vpack.c.b16 %v3057, %v3050
    %v3296 = vpack.c.b16 %v3058, %v3051
    %v3297 = vpack.c.b16 %v3059, %v3052
    %v3298 = vpack.c.b16 %v3060, %v3053
    %v3299 = vpack.c.b16 %v3061, %v3054
    %v3300 = vpack.c.b16 %v3069, %v3062
    %v3301 = vpack.c.b16 %v3070, %v3063
    %v3302 = vpack.c.b16 %v3071, %v3064
    %v3303 = vpack.c.b16 %v3072, %v3065
    %v3304 = vpack.c.b16 %v3073, %v3066
    %v3305 = vpack.c.b16 %v3074, %v3067
    %v3306 = vpack.c.b16 %v3075, %v3068
    %v3307 = vpack.c.b16 %v3083, %v3076
    %v3308 = vpack.c.b16 %v3084, %v3077
    %v3309 = vpack.c.b16 %v3085, %v3078
    %v3310 = vpack.c.b16 %v3086, %v3079
    %v3311 = vpack.c.b16 %v3087, %v3080
    %v3312 = vpack.c.b16 %v3088, %v3081
    %v3313 = vpack.c.b16 %v3089, %v3082
    %3538 = vmatpush.bf16.msra.mxu0 %v3139
    %3539 = vmatpush.bf16.msra.mxu0 %v3132
    %3540 = vmatpush.bf16.msra.mxu0 %v3125
    %3541 = vmatpush.bf16.msra.mxu0 %v3118
    %3542 = vmatpush.bf16.msra.mxu0 %v3111
    %3543 = vmatpush.bf16.msra.mxu0 %v3104
    %3544 = vmatpush.bf16.msra.mxu0 %v3097
    %3545 = vmatpush.bf16.msra.mxu0 %v3090
    %3546 = vmatmul.bf16.gmra.mxu0 %v2110
    %v3547 = vpop.f32.mrf.mxu0
    %v3548 = vadd.f32 %v2372, %v3547
    %v3549 = vpop.f32.mrf.mxu0
    %v3550 = vadd.f32 %v2372, %v3549
    %3551 = vdwg.mxu0
    %3552 = vmatpush.bf16.msra.mxu0 %v3195
    %3553 = vmatpush.bf16.msra.mxu0 %v3188
    %3554 = vmatpush.bf16.msra.mxu0 %v3181
    %3555 = vmatpush.bf16.msra.mxu0 %v3174
    %3556 = vmatpush.bf16.msra.mxu0 %v3167
    %3557 = vmatpush.bf16.msra.mxu0 %v3160
    %3558 = vmatpush.bf16.msra.mxu0 %v3153
    %3559 = vmatpush.bf16.msra.mxu0 %v3146
    %3560 = vmatmul.bf16.gmra.mxu0 %v2111
    %v3561 = vpop.f32.mrf.mxu0
    %v3562 = vadd.f32 %v3548, %v3561
    %v3563 = vpop.f32.mrf.mxu0
    %v3564 = vadd.f32 %v3550, %v3563
    %3565 = vdwg.mxu0
    %3566 = vmatpush.bf16.msra.mxu0 %v3251
    %3567 = vmatpush.bf16.msra.mxu0 %v3244
    %3568 = vmatpush.bf16.msra.mxu0 %v3237
    %3569 = vmatpush.bf16.msra.mxu0 %v3230
    %3570 = vmatpush.bf16.msra.mxu0 %v3223
    %3571 = vmatpush.bf16.msra.mxu0 %v3216
    %3572 = vmatpush.bf16.msra.mxu0 %v3209
    %3573 = vmatpush.bf16.msra.mxu0 %v3202
    %3574 = vmatmul.bf16.gmra.mxu0 %v2112
    %v3575 = vpop.f32.mrf.mxu0
    %v3576 = vadd.f32 %v3562, %v3575
    %v3577 = vpop.f32.mrf.mxu0
    %v3578 = vadd.f32 %v3564, %v3577
    %3579 = vdwg.mxu0
    %3580 = vmatpush.bf16.msra.mxu0 %v3307
    %3581 = vmatpush.bf16.msra.mxu0 %v3300
    %3582 = vmatpush.bf16.msra.mxu0 %v3293
    %3583 = vmatpush.bf16.msra.mxu0 %v3286
    %3584 = vmatpush.bf16.msra.mxu0 %v3279
    %3585 = vmatpush.bf16.msra.mxu0 %v3272
    %3586 = vmatpush.bf16.msra.mxu0 %v3265
    %3587 = vmatpush.bf16.msra.mxu0 %v3258
    %3588 = vmatmul.bf16.gmra.mxu0 %v2113
    %v3589 = vpop.f32.mrf.mxu0
    %v3590 = vadd.f32 %v3576, %v3589
    %v3591 = vpop.f32.mrf.mxu0
    %v3592 = vadd.f32 %v3578, %v3591
    %3593 = vdwg.mxu0
    %3594 = vmatpush.bf16.msra.mxu0 %v3140
    %3595 = vmatpush.bf16.msra.mxu0 %v3133
    %3596 = vmatpush.bf16.msra.mxu0 %v3126
    %3597 = vmatpush.bf16.msra.mxu0 %v3119
    %3598 = vmatpush.bf16.msra.mxu0 %v3112
    %3599 = vmatpush.bf16.msra.mxu0 %v3105
    %3600 = vmatpush.bf16.msra.mxu0 %v3098
    %3601 = vmatpush.bf16.msra.mxu0 %v3091
    %3602 = vmatmul.bf16.gmra.mxu0 %v2110
    %v3603 = vpop.f32.mrf.mxu0
    %v3604 = vadd.f32 %v2373, %v3603
    %v3605 = vpop.f32.mrf.mxu0
    %v3606 = vadd.f32 %v2373, %v3605
    %3607 = vdwg.mxu0
    %3608 = vmatpush.bf16.msra.mxu0 %v3196
    %3609 = vmatpush.bf16.msra.mxu0 %v3189
    %3610 = vmatpush.bf16.msra.mxu0 %v3182
    %3611 = vmatpush.bf16.msra.mxu0 %v3175
    %3612 = vmatpush.bf16.msra.mxu0 %v3168
    %3613 = vmatpush.bf16.msra.mxu0 %v3161
    %3614 = vmatpush.bf16.msra.mxu0 %v3154
    %3615 = vmatpush.bf16.msra.mxu0 %v3147
    %3616 = vmatmul.bf16.gmra.mxu0 %v2111
    %v3617 = vpop.f32.mrf.mxu0
    %v3618 = vadd.f32 %v3604, %v3617
    %v3619 = vpop.f32.mrf.mxu0
    %v3620 = vadd.f32 %v3606, %v3619
    %3621 = vdwg.mxu0
    %3622 = vmatpush.bf16.msra.mxu0 %v3252
    %3623 = vmatpush.bf16.msra.mxu0 %v3245
    %3624 = vmatpush.bf16.msra.mxu0 %v3238
    %3625 = vmatpush.bf16.msra.mxu0 %v3231
    %3626 = vmatpush.bf16.msra.mxu0 %v3224
    %3627 = vmatpush.bf16.msra.mxu0 %v3217
    %3628 = vmatpush.bf16.msra.mxu0 %v3210
    %3629 = vmatpush.bf16.msra.mxu0 %v3203
    %3630 = vmatmul.bf16.gmra.mxu0 %v2112
    %v3631 = vpop.f32.mrf.mxu0
    %v3632 = vadd.f32 %v3618, %v3631
    %v3633 = vpop.f32.mrf.mxu0
    %v3634 = vadd.f32 %v3620, %v3633
    %3635 = vdwg.mxu0
    %3636 = vmatpush.bf16.msra.mxu0 %v3308
    %3637 = vmatpush.bf16.msra.mxu0 %v3301
    %3638 = vmatpush.bf16.msra.mxu0 %v3294
    %3639 = vmatpush.bf16.msra.mxu0 %v3287
    %3640 = vmatpush.bf16.msra.mxu0 %v3280
    %3641 = vmatpush.bf16.msra.mxu0 %v3273
    %3642 = vmatpush.bf16.msra.mxu0 %v3266
    %3643 = vmatpush.bf16.msra.mxu0 %v3259
    %3644 = vmatmul.bf16.gmra.mxu0 %v2113
    %v3645 = vpop.f32.mrf.mxu0
    %v3646 = vadd.f32 %v3632, %v3645
    %v3647 = vpop.f32.mrf.mxu0
    %v3648 = vadd.f32 %v3634, %v3647
    %3649 = vdwg.mxu0
    %3650 = vmatpush.bf16.msra.mxu0 %v3141
    %3651 = vmatpush.bf16.msra.mxu0 %v3134
    %3652 = vmatpush.bf16.msra.mxu0 %v3127
    %3653 = vmatpush.bf16.msra.mxu0 %v3120
    %3654 = vmatpush.bf16.msra.mxu0 %v3113
    %3655 = vmatpush.bf16.msra.mxu0 %v3106
    %3656 = vmatpush.bf16.msra.mxu0 %v3099
    %3657 = vmatpush.bf16.msra.mxu0 %v3092
    %3658 = vmatmul.bf16.gmra.mxu0 %v2110
    %v3659 = vpop.f32.mrf.mxu0
    %v3660 = vadd.f32 %v2374, %v3659
    %v3661 = vpop.f32.mrf.mxu0
    %v3662 = vadd.f32 %v2374, %v3661
    %3663 = vdwg.mxu0
    %3664 = vmatpush.bf16.msra.mxu0 %v3197
    %3665 = vmatpush.bf16.msra.mxu0 %v3190
    %3666 = vmatpush.bf16.msra.mxu0 %v3183
    %3667 = vmatpush.bf16.msra.mxu0 %v3176
    %3668 = vmatpush.bf16.msra.mxu0 %v3169
    %3669 = vmatpush.bf16.msra.mxu0 %v3162
    %3670 = vmatpush.bf16.msra.mxu0 %v3155
    %3671 = vmatpush.bf16.msra.mxu0 %v3148
    %3672 = vmatmul.bf16.gmra.mxu0 %v2111
    %v3673 = vpop.f32.mrf.mxu0
    %v3674 = vadd.f32 %v3660, %v3673
    %v3675 = vpop.f32.mrf.mxu0
    %v3676 = vadd.f32 %v3662, %v3675
    %3677 = vdwg.mxu0
    %3678 = vmatpush.bf16.msra.mxu0 %v3253
    %3679 = vmatpush.bf16.msra.mxu0 %v3246
    %3680 = vmatpush.bf16.msra.mxu0 %v3239
    %3681 = vmatpush.bf16.msra.mxu0 %v3232
    %3682 = vmatpush.bf16.msra.mxu0 %v3225
    %3683 = vmatpush.bf16.msra.mxu0 %v3218
    %3684 = vmatpush.bf16.msra.mxu0 %v3211
    %3685 = vmatpush.bf16.msra.mxu0 %v3204
    %3686 = vmatmul.bf16.gmra.mxu0 %v2112
    %v3687 = vpop.f32.mrf.mxu0
    %v3688 = vadd.f32 %v3674, %v3687
    %v3689 = vpop.f32.mrf.mxu0
    %v3690 = vadd.f32 %v3676, %v3689
    %3691 = vdwg.mxu0
    %3692 = vmatpush.bf16.msra.mxu0 %v3309
    %3693 = vmatpush.bf16.msra.mxu0 %v3302
    %3694 = vmatpush.bf16.msra.mxu0 %v3295
    %3695 = vmatpush.bf16.msra.mxu0 %v3288
    %3696 = vmatpush.bf16.msra.mxu0 %v3281
    %3697 = vmatpush.bf16.msra.mxu0 %v3274
    %3698 = vmatpush.bf16.msra.mxu0 %v3267
    %3699 = vmatpush.bf16.msra.mxu0 %v3260
    %3700 = vmatmul.bf16.gmra.mxu0 %v2113
    %v3701 = vpop.f32.mrf.mxu0
    %v3702 = vadd.f32 %v3688, %v3701
    %v3703 = vpop.f32.mrf.mxu0
    %v3704 = vadd.f32 %v3690, %v3703
    %3705 = vdwg.mxu0
    %3706 = vmatpush.bf16.msra.mxu0 %v3142
    %3707 = vmatpush.bf16.msra.mxu0 %v3135
    %3708 = vmatpush.bf16.msra.mxu0 %v3128
    %3709 = vmatpush.bf16.msra.mxu0 %v3121
    %3710 = vmatpush.bf16.msra.mxu0 %v3114
    %3711 = vmatpush.bf16.msra.mxu0 %v3107
    %3712 = vmatpush.bf16.msra.mxu0 %v3100
    %3713 = vmatpush.bf16.msra.mxu0 %v3093
    %3714 = vmatmul.bf16.gmra.mxu0 %v2110
    %v3715 = vpop.f32.mrf.mxu0
    %v3716 = vadd.f32 %v2375, %v3715
    %v3717 = vpop.f32.mrf.mxu0
    %v3718 = vadd.f32 %v2375, %v3717
    %3719 = vdwg.mxu0
    %3720 = vmatpush.bf16.msra.mxu0 %v3198
    %3721 = vmatpush.bf16.msra.mxu0 %v3191
    %3722 = vmatpush.bf16.msra.mxu0 %v3184
    %3723 = vmatpush.bf16.msra.mxu0 %v3177
    %3724 = vmatpush.bf16.msra.mxu0 %v3170
    %3725 = vmatpush.bf16.msra.mxu0 %v3163
    %3726 = vmatpush.bf16.msra.mxu0 %v3156
    %3727 = vmatpush.bf16.msra.mxu0 %v3149
    %3728 = vmatmul.bf16.gmra.mxu0 %v2111
    %v3729 = vpop.f32.mrf.mxu0
    %v3730 = vadd.f32 %v3716, %v3729
    %v3731 = vpop.f32.mrf.mxu0
    %v3732 = vadd.f32 %v3718, %v3731
    %3733 = vdwg.mxu0
    %3734 = vmatpush.bf16.msra.mxu0 %v3254
    %3735 = vmatpush.bf16.msra.mxu0 %v3247
    %3736 = vmatpush.bf16.msra.mxu0 %v3240
    %3737 = vmatpush.bf16.msra.mxu0 %v3233
    %3738 = vmatpush.bf16.msra.mxu0 %v3226
    %3739 = vmatpush.bf16.msra.mxu0 %v3219
    %3740 = vmatpush.bf16.msra.mxu0 %v3212
    %3741 = vmatpush.bf16.msra.mxu0 %v3205
    %3742 = vmatmul.bf16.gmra.mxu0 %v2112
    %v3743 = vpop.f32.mrf.mxu0
    %v3744 = vadd.f32 %v3730, %v3743
    %v3745 = vpop.f32.mrf.mxu0
    %v3746 = vadd.f32 %v3732, %v3745
    %3747 = vdwg.mxu0
    %3748 = vmatpush.bf16.msra.mxu0 %v3310
    %3749 = vmatpush.bf16.msra.mxu0 %v3303
    %3750 = vmatpush.bf16.msra.mxu0 %v3296
    %3751 = vmatpush.bf16.msra.mxu0 %v3289
    %3752 = vmatpush.bf16.msra.mxu0 %v3282
    %3753 = vmatpush.bf16.msra.mxu0 %v3275
    %3754 = vmatpush.bf16.msra.mxu0 %v3268
    %3755 = vmatpush.bf16.msra.mxu0 %v3261
    %3756 = vmatmul.bf16.gmra.mxu0 %v2113
    %v3757 = vpop.f32.mrf.mxu0
    %v3758 = vadd.f32 %v3744, %v3757
    %v3759 = vpop.f32.mrf.mxu0
    %v3760 = vadd.f32 %v3746, %v3759
    %3761 = vdwg.mxu0
    %3762 = vmatpush.bf16.msra.mxu0 %v3143
    %3763 = vmatpush.bf16.msra.mxu0 %v3136
    %3764 = vmatpush.bf16.msra.mxu0 %v3129
    %3765 = vmatpush.bf16.msra.mxu0 %v3122
    %3766 = vmatpush.bf16.msra.mxu0 %v3115
    %3767 = vmatpush.bf16.msra.mxu0 %v3108
    %3768 = vmatpush.bf16.msra.mxu0 %v3101
    %3769 = vmatpush.bf16.msra.mxu0 %v3094
    %3770 = vmatmul.bf16.gmra.mxu0 %v2110
    %v3771 = vpop.f32.mrf.mxu0
    %v3772 = vadd.f32 %v2376, %v3771
    %v3773 = vpop.f32.mrf.mxu0
    %v3774 = vadd.f32 %v2376, %v3773
    %3775 = vdwg.mxu0
    %3776 = vmatpush.bf16.msra.mxu0 %v3199
    %3777 = vmatpush.bf16.msra.mxu0 %v3192
    %3778 = vmatpush.bf16.msra.mxu0 %v3185
    %3779 = vmatpush.bf16.msra.mxu0 %v3178
    %3780 = vmatpush.bf16.msra.mxu0 %v3171
    %3781 = vmatpush.bf16.msra.mxu0 %v3164
    %3782 = vmatpush.bf16.msra.mxu0 %v3157
    %3783 = vmatpush.bf16.msra.mxu0 %v3150
    %3784 = vmatmul.bf16.gmra.mxu0 %v2111
    %v3785 = vpop.f32.mrf.mxu0
    %v3786 = vadd.f32 %v3772, %v3785
    %v3787 = vpop.f32.mrf.mxu0
    %v3788 = vadd.f32 %v3774, %v3787
    %3789 = vdwg.mxu0
    %3790 = vmatpush.bf16.msra.mxu0 %v3255
    %3791 = vmatpush.bf16.msra.mxu0 %v3248
    %3792 = vmatpush.bf16.msra.mxu0 %v3241
    %3793 = vmatpush.bf16.msra.mxu0 %v3234
    %3794 = vmatpush.bf16.msra.mxu0 %v3227
    %3795 = vmatpush.bf16.msra.mxu0 %v3220
    %3796 = vmatpush.bf16.msra.mxu0 %v3213
    %3797 = vmatpush.bf16.msra.mxu0 %v3206
    %3798 = vmatmul.bf16.gmra.mxu0 %v2112
    %v3799 = vpop.f32.mrf.mxu0
    %v3800 = vadd.f32 %v3786, %v3799
    %v3801 = vpop.f32.mrf.mxu0
    %v3802 = vadd.f32 %v3788, %v3801
    %3803 = vdwg.mxu0
    %3804 = vmatpush.bf16.msra.mxu0 %v3311
    %3805 = vmatpush.bf16.msra.mxu0 %v3304
    %3806 = vmatpush.bf16.msra.mxu0 %v3297
    %3807 = vmatpush.bf16.msra.mxu0 %v3290
    %3808 = vmatpush.bf16.msra.mxu0 %v3283
    %3809 = vmatpush.bf16.msra.mxu0 %v3276
    %3810 = vmatpush.bf16.msra.mxu0 %v3269
    %3811 = vmatpush.bf16.msra.mxu0 %v3262
    %3812 = vmatmul.bf16.gmra.mxu0 %v2113
    %v3813 = vpop.f32.mrf.mxu0
    %v3814 = vadd.f32 %v3800, %v3813
    %v3815 = vpop.f32.mrf.mxu0
    %v3816 = vadd.f32 %v3802, %v3815
    %3817 = vdwg.mxu0
    %3818 = vmatpush.bf16.msra.mxu0 %v3144
    %3819 = vmatpush.bf16.msra.mxu0 %v3137
    %3820 = vmatpush.bf16.msra.mxu0 %v3130
    %3821 = vmatpush.bf16.msra.mxu0 %v3123
    %3822 = vmatpush.bf16.msra.mxu0 %v3116
    %3823 = vmatpush.bf16.msra.mxu0 %v3109
    %3824 = vmatpush.bf16.msra.mxu0 %v3102
    %3825 = vmatpush.bf16.msra.mxu0 %v3095
    %3826 = vmatmul.bf16.gmra.mxu0 %v2110
    %v3827 = vpop.f32.mrf.mxu0
    %v3828 = vadd.f32 %v2377, %v3827
    %v3829 = vpop.f32.mrf.mxu0
    %v3830 = vadd.f32 %v2377, %v3829
    %3831 = vdwg.mxu0
    %3832 = vmatpush.bf16.msra.mxu0 %v3200
    %3833 = vmatpush.bf16.msra.mxu0 %v3193
    %3834 = vmatpush.bf16.msra.mxu0 %v3186
    %3835 = vmatpush.bf16.msra.mxu0 %v3179
    %3836 = vmatpush.bf16.msra.mxu0 %v3172
    %3837 = vmatpush.bf16.msra.mxu0 %v3165
    %3838 = vmatpush.bf16.msra.mxu0 %v3158
    %3839 = vmatpush.bf16.msra.mxu0 %v3151
    %3840 = vmatmul.bf16.gmra.mxu0 %v2111
    %v3841 = vpop.f32.mrf.mxu0
    %v3842 = vadd.f32 %v3828, %v3841
    %v3843 = vpop.f32.mrf.mxu0
    %v3844 = vadd.f32 %v3830, %v3843
    %3845 = vdwg.mxu0
    %3846 = vmatpush.bf16.msra.mxu0 %v3256
    %3847 = vmatpush.bf16.msra.mxu0 %v3249
    %3848 = vmatpush.bf16.msra.mxu0 %v3242
    %3849 = vmatpush.bf16.msra.mxu0 %v3235
    %3850 = vmatpush.bf16.msra.mxu0 %v3228
    %3851 = vmatpush.bf16.msra.mxu0 %v3221
    %3852 = vmatpush.bf16.msra.mxu0 %v3214
    %3853 = vmatpush.bf16.msra.mxu0 %v3207
    %3854 = vmatmul.bf16.gmra.mxu0 %v2112
    %v3855 = vpop.f32.mrf.mxu0
    %v3856 = vadd.f32 %v3842, %v3855
    %v3857 = vpop.f32.mrf.mxu0
    %v3858 = vadd.f32 %v3844, %v3857
    %3859 = vdwg.mxu0
    %3860 = vmatpush.bf16.msra.mxu0 %v3312
    %3861 = vmatpush.bf16.msra.mxu0 %v3305
    %3862 = vmatpush.bf16.msra.mxu0 %v3298
    %3863 = vmatpush.bf16.msra.mxu0 %v3291
    %3864 = vmatpush.bf16.msra.mxu0 %v3284
    %3865 = vmatpush.bf16.msra.mxu0 %v3277
    %3866 = vmatpush.bf16.msra.mxu0 %v3270
    %3867 = vmatpush.bf16.msra.mxu0 %v3263
    %3868 = vmatmul.bf16.gmra.mxu0 %v2113
    %v3869 = vpop.f32.mrf.mxu0
    %v3870 = vadd.f32 %v3856, %v3869
    %v3871 = vpop.f32.mrf.mxu0
    %v3872 = vadd.f32 %v3858, %v3871
    %3873 = vdwg.mxu0
    %3874 = vmatpush.bf16.msra.mxu0 %v3145
    %3875 = vmatpush.bf16.msra.mxu0 %v3138
    %3876 = vmatpush.bf16.msra.mxu0 %v3131
    %3877 = vmatpush.bf16.msra.mxu0 %v3124
    %3878 = vmatpush.bf16.msra.mxu0 %v3117
    %3879 = vmatpush.bf16.msra.mxu0 %v3110
    %3880 = vmatpush.bf16.msra.mxu0 %v3103
    %3881 = vmatpush.bf16.msra.mxu0 %v3096
    %3882 = vmatmul.bf16.gmra.mxu0 %v2110
    %v3883 = vpop.f32.mrf.mxu0
    %v3884 = vadd.f32 %v2378, %v3883
    %v3885 = vpop.f32.mrf.mxu0
    %v3886 = vadd.f32 %v2378, %v3885
    %3887 = vdwg.mxu0
    %3888 = vmatpush.bf16.msra.mxu0 %v3201
    %3889 = vmatpush.bf16.msra.mxu0 %v3194
    %3890 = vmatpush.bf16.msra.mxu0 %v3187
    %3891 = vmatpush.bf16.msra.mxu0 %v3180
    %3892 = vmatpush.bf16.msra.mxu0 %v3173
    %3893 = vmatpush.bf16.msra.mxu0 %v3166
    %3894 = vmatpush.bf16.msra.mxu0 %v3159
    %3895 = vmatpush.bf16.msra.mxu0 %v3152
    %3896 = vmatmul.bf16.gmra.mxu0 %v2111
    %v3897 = vpop.f32.mrf.mxu0
    %v3898 = vadd.f32 %v3884, %v3897
    %v3899 = vpop.f32.mrf.mxu0
    %v3900 = vadd.f32 %v3886, %v3899
    %3901 = vdwg.mxu0
    %3902 = vmatpush.bf16.msra.mxu0 %v3257
    %3903 = vmatpush.bf16.msra.mxu0 %v3250
    %3904 = vmatpush.bf16.msra.mxu0 %v3243
    %3905 = vmatpush.bf16.msra.mxu0 %v3236
    %3906 = vmatpush.bf16.msra.mxu0 %v3229
    %3907 = vmatpush.bf16.msra.mxu0 %v3222
    %3908 = vmatpush.bf16.msra.mxu0 %v3215
    %3909 = vmatpush.bf16.msra.mxu0 %v3208
    %3910 = vmatmul.bf16.gmra.mxu0 %v2112
    %v3911 = vpop.f32.mrf.mxu0
    %v3912 = vadd.f32 %v3898, %v3911
    %v3913 = vpop.f32.mrf.mxu0
    %v3914 = vadd.f32 %v3900, %v3913
    %3915 = vdwg.mxu0
    %3916 = vmatpush.bf16.msra.mxu0 %v3313
    %3917 = vmatpush.bf16.msra.mxu0 %v3306
    %3918 = vmatpush.bf16.msra.mxu0 %v3299
    %3919 = vmatpush.bf16.msra.mxu0 %v3292
    %3920 = vmatpush.bf16.msra.mxu0 %v3285
    %3921 = vmatpush.bf16.msra.mxu0 %v3278
    %3922 = vmatpush.bf16.msra.mxu0 %v3271
    %3923 = vmatpush.bf16.msra.mxu0 %v3264
    %3924 = vmatmul.bf16.gmra.mxu0 %v2113
    %v3925 = vpop.f32.mrf.mxu0
    %v3926 = vadd.f32 %v3912, %v3925
    %v3927 = vpop.f32.mrf.mxu0
    %v3928 = vadd.f32 %v3914, %v3927
    %3929 = vdwg.mxu0
    %v3930 = vxor.u32 %v3590, 2147483648
    %v3931 = vxor.u32 %v3646, 2147483648
    %v3932 = vxor.u32 %v3702, 2147483648
    %v3933 = vxor.u32 %v3758, 2147483648
    %v3934 = vxor.u32 %v3814, 2147483648
    %v3935 = vxor.u32 %v3870, 2147483648
    %v3936 = vxor.u32 %v3926, 2147483648
    %v3937 = vxor.u32 %v3592, 2147483648
    %v3938 = vxor.u32 %v3648, 2147483648
    %v3939 = vxor.u32 %v3704, 2147483648
    %v3940 = vxor.u32 %v3760, 2147483648
    %v3941 = vxor.u32 %v3816, 2147483648
    %v3942 = vxor.u32 %v3872, 2147483648
    %v3943 = vxor.u32 %v3928, 2147483648
    %v3944 = vmul.f32 %v3930, 1.442695
    %v3945 = vpow.pop %v3944
    %v3946 = vmul.f32 %v3931, 1.442695
    %v3947 = vpow.pop %v3946
    %v3948 = vmul.f32 %v3932, 1.442695
    %v3949 = vpow.pop %v3948
    %v3950 = vmul.f32 %v3933, 1.442695
    %v3951 = vpow.pop %v3950
    %v3952 = vmul.f32 %v3934, 1.442695
    %v3953 = vpow.pop %v3952
    %v3954 = vmul.f32 %v3935, 1.442695
    %v3955 = vpow.pop %v3954
    %v3956 = vmul.f32 %v3936, 1.442695
    %v3957 = vpow.pop %v3956
    %v3958 = vmul.f32 %v3937, 1.442695
    %v3959 = vpow.pop %v3958
    %v3960 = vmul.f32 %v3938, 1.442695
    %v3961 = vpow.pop %v3960
    %v3962 = vmul.f32 %v3939, 1.442695
    %v3963 = vpow.pop %v3962
    %v3964 = vmul.f32 %v3940, 1.442695
    %v3965 = vpow.pop %v3964
    %v3966 = vmul.f32 %v3941, 1.442695
    %v3967 = vpow.pop %v3966
    %v3968 = vmul.f32 %v3942, 1.442695
    %v3969 = vpow.pop %v3968
    %v3970 = vmul.f32 %v3943, 1.442695
    %v3971 = vpow.pop %v3970
    %v3972 = vadd.f32 %v3945, 1.0
    %v3973 = vadd.f32 %v3947, 1.0
    %v3974 = vadd.f32 %v3949, 1.0
    %v3975 = vadd.f32 %v3951, 1.0
    %v3976 = vadd.f32 %v3953, 1.0
    %v3977 = vadd.f32 %v3955, 1.0
    %v3978 = vadd.f32 %v3957, 1.0
    %v3979 = vadd.f32 %v3959, 1.0
    %v3980 = vadd.f32 %v3961, 1.0
    %v3981 = vadd.f32 %v3963, 1.0
    %v3982 = vadd.f32 %v3965, 1.0
    %v3983 = vadd.f32 %v3967, 1.0
    %v3984 = vadd.f32 %v3969, 1.0
    %v3985 = vadd.f32 %v3971, 1.0
    %v3986 = vrcp.pop %v3972
    %v3987 = vmul.f32 %v3972, %v3986
    %v3988 = vsub.f32 1.0, %v3987
    %v3989 = vmul.f32 %v3986, %v3988
    %v3990 = vadd.f32 %v3986, %v3989
    %vm3991 = vweird.f32 %v3972
    %vm3992 = vweird.f32 %v3986
    %vm3993 = vmor %vm3991, %vm3992
    %v3994 = vsel %vm3993, %v3986, %v3990
    %v3995 = vand.u32 2147483647, %v3972
    %vm3996 = vcmp.eq.f32.partialorder %v3995, 8.507059e+37
    %v3997 = vand.u32 %v3972, 2147483648
    %v3998 = vor.u32 1.1754944e-38, %v3997
    %v3999 = vsel %vm3996, %v3998, %v3994
    %v4000 = vmul.f32 1.0, %v3999
    %v4001 = vrcp.pop %v3973
    %v4002 = vmul.f32 %v3973, %v4001
    %v4003 = vsub.f32 1.0, %v4002
    %v4004 = vmul.f32 %v4001, %v4003
    %v4005 = vadd.f32 %v4001, %v4004
    %vm4006 = vweird.f32 %v3973
    %vm4007 = vweird.f32 %v4001
    %vm4008 = vmor %vm4006, %vm4007
    %v4009 = vsel %vm4008, %v4001, %v4005
    %v4010 = vand.u32 2147483647, %v3973
    %vm4011 = vcmp.eq.f32.partialorder %v4010, 8.507059e+37
    %v4012 = vand.u32 %v3973, 2147483648
    %v4013 = vor.u32 1.1754944e-38, %v4012
    %v4014 = vsel %vm4011, %v4013, %v4009
    %v4015 = vmul.f32 1.0, %v4014
    %v4016 = vrcp.pop %v3974
    %v4017 = vmul.f32 %v3974, %v4016
    %v4018 = vsub.f32 1.0, %v4017
    %v4019 = vmul.f32 %v4016, %v4018
    %v4020 = vadd.f32 %v4016, %v4019
    %vm4021 = vweird.f32 %v3974
    %vm4022 = vweird.f32 %v4016
    %vm4023 = vmor %vm4021, %vm4022
    %v4024 = vsel %vm4023, %v4016, %v4020
    %v4025 = vand.u32 2147483647, %v3974
    %vm4026 = vcmp.eq.f32.partialorder %v4025, 8.507059e+37
    %v4027 = vand.u32 %v3974, 2147483648
    %v4028 = vor.u32 1.1754944e-38, %v4027
    %v4029 = vsel %vm4026, %v4028, %v4024
    %v4030 = vmul.f32 1.0, %v4029
    %v4031 = vrcp.pop %v3975
    %v4032 = vmul.f32 %v3975, %v4031
    %v4033 = vsub.f32 1.0, %v4032
    %v4034 = vmul.f32 %v4031, %v4033
    %v4035 = vadd.f32 %v4031, %v4034
    %vm4036 = vweird.f32 %v3975
    %vm4037 = vweird.f32 %v4031
    %vm4038 = vmor %vm4036, %vm4037
    %v4039 = vsel %vm4038, %v4031, %v4035
    %v4040 = vand.u32 2147483647, %v3975
    %vm4041 = vcmp.eq.f32.partialorder %v4040, 8.507059e+37
    %v4042 = vand.u32 %v3975, 2147483648
    %v4043 = vor.u32 1.1754944e-38, %v4042
    %v4044 = vsel %vm4041, %v4043, %v4039
    %v4045 = vmul.f32 1.0, %v4044
    %v4046 = vrcp.pop %v3976
    %v4047 = vmul.f32 %v3976, %v4046
    %v4048 = vsub.f32 1.0, %v4047
    %v4049 = vmul.f32 %v4046, %v4048
    %v4050 = vadd.f32 %v4046, %v4049
    %vm4051 = vweird.f32 %v3976
    %vm4052 = vweird.f32 %v4046
    %vm4053 = vmor %vm4051, %vm4052
    %v4054 = vsel %vm4053, %v4046, %v4050
    %v4055 = vand.u32 2147483647, %v3976
    %vm4056 = vcmp.eq.f32.partialorder %v4055, 8.507059e+37
    %v4057 = vand.u32 %v3976, 2147483648
    %v4058 = vor.u32 1.1754944e-38, %v4057
    %v4059 = vsel %vm4056, %v4058, %v4054
    %v4060 = vmul.f32 1.0, %v4059
    %v4061 = vrcp.pop %v3977
    %v4062 = vmul.f32 %v3977, %v4061
    %v4063 = vsub.f32 1.0, %v4062
    %v4064 = vmul.f32 %v4061, %v4063
    %v4065 = vadd.f32 %v4061, %v4064
    %vm4066 = vweird.f32 %v3977
    %vm4067 = vweird.f32 %v4061
    %vm4068 = vmor %vm4066, %vm4067
    %v4069 = vsel %vm4068, %v4061, %v4065
    %v4070 = vand.u32 2147483647, %v3977
    %vm4071 = vcmp.eq.f32.partialorder %v4070, 8.507059e+37
    %v4072 = vand.u32 %v3977, 2147483648
    %v4073 = vor.u32 1.1754944e-38, %v4072
    %v4074 = vsel %vm4071, %v4073, %v4069
    %v4075 = vmul.f32 1.0, %v4074
    %v4076 = vrcp.pop %v3978
    %v4077 = vmul.f32 %v3978, %v4076
    %v4078 = vsub.f32 1.0, %v4077
    %v4079 = vmul.f32 %v4076, %v4078
    %v4080 = vadd.f32 %v4076, %v4079
    %vm4081 = vweird.f32 %v3978
    %vm4082 = vweird.f32 %v4076
    %vm4083 = vmor %vm4081, %vm4082
    %v4084 = vsel %vm4083, %v4076, %v4080
    %v4085 = vand.u32 2147483647, %v3978
    %vm4086 = vcmp.eq.f32.partialorder %v4085, 8.507059e+37
    %v4087 = vand.u32 %v3978, 2147483648
    %v4088 = vor.u32 1.1754944e-38, %v4087
    %v4089 = vsel %vm4086, %v4088, %v4084
    %v4090 = vmul.f32 1.0, %v4089
    %v4091 = vrcp.pop %v3979
    %v4092 = vmul.f32 %v3979, %v4091
    %v4093 = vsub.f32 1.0, %v4092
    %v4094 = vmul.f32 %v4091, %v4093
    %v4095 = vadd.f32 %v4091, %v4094
    %vm4096 = vweird.f32 %v3979
    %vm4097 = vweird.f32 %v4091
    %vm4098 = vmor %vm4096, %vm4097
    %v4099 = vsel %vm4098, %v4091, %v4095
    %v4100 = vand.u32 2147483647, %v3979
    %vm4101 = vcmp.eq.f32.partialorder %v4100, 8.507059e+37
    %v4102 = vand.u32 %v3979, 2147483648
    %v4103 = vor.u32 1.1754944e-38, %v4102
    %v4104 = vsel %vm4101, %v4103, %v4099
    %v4105 = vmul.f32 1.0, %v4104
    %v4106 = vrcp.pop %v3980
    %v4107 = vmul.f32 %v3980, %v4106
    %v4108 = vsub.f32 1.0, %v4107
    %v4109 = vmul.f32 %v4106, %v4108
    %v4110 = vadd.f32 %v4106, %v4109
    %vm4111 = vweird.f32 %v3980
    %vm4112 = vweird.f32 %v4106
    %vm4113 = vmor %vm4111, %vm4112
    %v4114 = vsel %vm4113, %v4106, %v4110
    %v4115 = vand.u32 2147483647, %v3980
    %vm4116 = vcmp.eq.f32.partialorder %v4115, 8.507059e+37
    %v4117 = vand.u32 %v3980, 2147483648
    %v4118 = vor.u32 1.1754944e-38, %v4117
    %v4119 = vsel %vm4116, %v4118, %v4114
    %v4120 = vmul.f32 1.0, %v4119
    %v4121 = vrcp.pop %v3981
    %v4122 = vmul.f32 %v3981, %v4121
    %v4123 = vsub.f32 1.0, %v4122
    %v4124 = vmul.f32 %v4121, %v4123
    %v4125 = vadd.f32 %v4121, %v4124
    %vm4126 = vweird.f32 %v3981
    %vm4127 = vweird.f32 %v4121
    %vm4128 = vmor %vm4126, %vm4127
    %v4129 = vsel %vm4128, %v4121, %v4125
    %v4130 = vand.u32 2147483647, %v3981
    %vm4131 = vcmp.eq.f32.partialorder %v4130, 8.507059e+37
    %v4132 = vand.u32 %v3981, 2147483648
    %v4133 = vor.u32 1.1754944e-38, %v4132
    %v4134 = vsel %vm4131, %v4133, %v4129
    %v4135 = vmul.f32 1.0, %v4134
    %v4136 = vrcp.pop %v3982
    %v4137 = vmul.f32 %v3982, %v4136
    %v4138 = vsub.f32 1.0, %v4137
    %v4139 = vmul.f32 %v4136, %v4138
    %v4140 = vadd.f32 %v4136, %v4139
    %vm4141 = vweird.f32 %v3982
    %vm4142 = vweird.f32 %v4136
    %vm4143 = vmor %vm4141, %vm4142
    %v4144 = vsel %vm4143, %v4136, %v4140
    %v4145 = vand.u32 2147483647, %v3982
    %vm4146 = vcmp.eq.f32.partialorder %v4145, 8.507059e+37
    %v4147 = vand.u32 %v3982, 2147483648
    %v4148 = vor.u32 1.1754944e-38, %v4147
    %v4149 = vsel %vm4146, %v4148, %v4144
    %v4150 = vmul.f32 1.0, %v4149
    %v4151 = vrcp.pop %v3983
    %v4152 = vmul.f32 %v3983, %v4151
    %v4153 = vsub.f32 1.0, %v4152
    %v4154 = vmul.f32 %v4151, %v4153
    %v4155 = vadd.f32 %v4151, %v4154
    %vm4156 = vweird.f32 %v3983
    %vm4157 = vweird.f32 %v4151
    %vm4158 = vmor %vm4156, %vm4157
    %v4159 = vsel %vm4158, %v4151, %v4155
    %v4160 = vand.u32 2147483647, %v3983
    %vm4161 = vcmp.eq.f32.partialorder %v4160, 8.507059e+37
    %v4162 = vand.u32 %v3983, 2147483648
    %v4163 = vor.u32 1.1754944e-38, %v4162
    %v4164 = vsel %vm4161, %v4163, %v4159
    %v4165 = vmul.f32 1.0, %v4164
    %v4166 = vrcp.pop %v3984
    %v4167 = vmul.f32 %v3984, %v4166
    %v4168 = vsub.f32 1.0, %v4167
    %v4169 = vmul.f32 %v4166, %v4168
    %v4170 = vadd.f32 %v4166, %v4169
    %vm4171 = vweird.f32 %v3984
    %vm4172 = vweird.f32 %v4166
    %vm4173 = vmor %vm4171, %vm4172
    %v4174 = vsel %vm4173, %v4166, %v4170
    %v4175 = vand.u32 2147483647, %v3984
    %vm4176 = vcmp.eq.f32.partialorder %v4175, 8.507059e+37
    %v4177 = vand.u32 %v3984, 2147483648
    %v4178 = vor.u32 1.1754944e-38, %v4177
    %v4179 = vsel %vm4176, %v4178, %v4174
    %v4180 = vmul.f32 1.0, %v4179
    %v4181 = vrcp.pop %v3985
    %v4182 = vmul.f32 %v3985, %v4181
    %v4183 = vsub.f32 1.0, %v4182
    %v4184 = vmul.f32 %v4181, %v4183
    %v4185 = vadd.f32 %v4181, %v4184
    %vm4186 = vweird.f32 %v3985
    %vm4187 = vweird.f32 %v4181
    %vm4188 = vmor %vm4186, %vm4187
    %v4189 = vsel %vm4188, %v4181, %v4185
    %v4190 = vand.u32 2147483647, %v3985
    %vm4191 = vcmp.eq.f32.partialorder %v4190, 8.507059e+37
    %v4192 = vand.u32 %v3985, 2147483648
    %v4193 = vor.u32 1.1754944e-38, %v4192
    %v4194 = vsel %vm4191, %v4193, %v4189
    %v4195 = vmul.f32 1.0, %v4194
    %v4196 = vpack.c.bf16 %v4015, %v4000
    %v4197 = vpack.c.bf16 %v4045, %v4030
    %v4198 = vpack.c.bf16 %v4075, %v4060
    %v4199 = vpack.c.bf16 %v4090, %v4090
    %v4200 = vpack.c.bf16 %v4120, %v4105
    %v4201 = vpack.c.bf16 %v4150, %v4135
    %v4202 = vpack.c.bf16 %v4180, %v4165
    %v4203 = vpack.c.bf16 %v4195, %v4195
    %4204 = vst [vmem:[#allocation2] sm:$0xff] %v4196
    %4205 = vst [vmem:[#allocation2 + $0x8] sm:$0xff] %v4197
    %4206 = vst [vmem:[#allocation2 + $0x10] sm:$0xff] %v4198
    %vm4207 = vcmask 125952
    %4208 = vst.msk [vmem:[#allocation2 + $0x18] sm:$0xf] %vm4207, %v4199
    %4209 = vst [vmem:[#allocation2 + $0x1c] sm:$0xff] %v4200
    %4210 = vst [vmem:[#allocation2 + $0x24] sm:$0xff] %v4201
    %4211 = vst [vmem:[#allocation2 + $0x2c] sm:$0xff] %v4202
    %4212 = vst.msk [vmem:[#allocation2 + $0x34] sm:$0xf] %vm4207, %v4203
    %4213 = vst.msk [vmem:[#allocation4] sm:$0xff] %vm2029, %v1873
    %4214 = vst.msk [vmem:[#allocation4 + $0x8] sm:$0xff] %vm2029, %v1876
    %4215 = vst.msk [vmem:[#allocation6] sm:$0xff] %vm2029, %v1965
    %4216 = vst.msk [vmem:[#allocation6 + $0x8] sm:$0xff] %vm2029, %v1968
    // Predicated region
    $region42: #{tpu_custom_call.1} parent=1 // pred_check
      _
    $region43: #{tpu_custom_call.1} parent=1 // pred_check_branch
      %4218 = sbr.rel (0) target = $region45
    $region44: #{tpu_custom_call.1} parent=1 // pred_region
      %4220 = vsyncadd [#allocation3], 0
      %s4221 = sshll.u32 [#allocation2], 4
      %s4222 = int_to_ptr.vmem [resolvable:$true] %s4221
      %s4223 = sshll.u32 %s10, 4
      %s4224 = int_to_ptr.hbm [resolvable:$true] %s4223
      %4229 = dma.vmem_to_hbm [thread:$0]  %s4222, 896, %s4224, [#allocation3], 448, 448, 28
    $region45: #{tpu_custom_call.1} parent=1 // pred_fallthru
      _
    // Predicated region
    $region46: #{tpu_custom_call.1} parent=1 // pred_check
      _
    $region47: #{tpu_custom_call.1} parent=1 // pred_check_branch
      %4231 = sbr.rel (0) target = $region49
    $region48: #{tpu_custom_call.1} parent=1 // pred_region
      %4233 = vsyncadd [#allocation5], 0
      %s4234 = sshll.u32 [#allocation4], 4
      %s4235 = int_to_ptr.vmem [resolvable:$true] %s4234
      %s4236 = sshll.u32 %s11, 4
      %s4237 = int_to_ptr.hbm [resolvable:$true] %s4236
      %4242 = dma.vmem_to_hbm [thread:$0]  %s4235, 256, %s4237, [#allocation5], 128, 128, 8
    $region49: #{tpu_custom_call.1} parent=1 // pred_fallthru
      _
    // Predicated region
    $region50: #{tpu_custom_call.1} parent=1 // pred_check
      _
    $region51: #{tpu_custom_call.1} parent=1 // pred_check_branch
      %4244 = sbr.rel (0) target = $region53
    $region52: #{tpu_custom_call.1} parent=1 // pred_region
      %4246 = vsyncadd [#allocation5], 0
      %s4247 = sshll.u32 [#allocation6], 4
      %s4248 = int_to_ptr.vmem [resolvable:$true] %s4247
      %s4249 = sshll.u32 %s12, 4
      %s4250 = int_to_ptr.hbm [resolvable:$true] %s4249
      %4255 = dma.vmem_to_hbm [thread:$0]  %s4248, 256, %s4250, [#allocation5], 128, 128, 8
    $region53: #{tpu_custom_call.1} parent=1 // pred_fallthru
      _
    // Predicated region
    $region54: #{tpu_custom_call.1} parent=1 // pred_check
      _
    $region55: #{tpu_custom_call.1} parent=1 // pred_check_branch
      %4257 = sbr.rel (0) target = $region57
    $region56: #{tpu_custom_call.1} parent=1 // pred_region
      %4259 = dma.done [#allocation3], 896
    $region57: #{tpu_custom_call.1} parent=1 // pred_fallthru
      _
    // Predicated region
    $region58: #{tpu_custom_call.1} parent=1 // pred_check
      _
    $region59: #{tpu_custom_call.1} parent=1 // pred_check_branch
      %4261 = sbr.rel (0) target = $region61
    $region60: #{tpu_custom_call.1} parent=1 // pred_region
      %4263 = dma.done [#allocation5], 256
    $region61: #{tpu_custom_call.1} parent=1 // pred_fallthru
      _
    // Predicated region
    $region62: #{tpu_custom_call.1} parent=1 // pred_check
      _
    $region63: #{tpu_custom_call.1} parent=1 // pred_check_branch
      %4265 = sbr.rel (0) target = $region65
    $region64: #{tpu_custom_call.1} parent=1 // pred_region
      %4267 = dma.done [#allocation5], 256
    $region65: #{tpu_custom_call.1} parent=1 // pred_fallthru
      _
    %4268 = vsyncpa [#allocation3], 1
    %4269 = vsyncpa [#allocation5], 1

</llo_original>
